<compile_context>
chip_gen: v5e
topology: v5e:2x2
jax: 0.10.0
libtpu: 0.0.40
codegen_flags: <defaults>
</compile_context>

<pallas_src>
import functools
import math

import jax
import jax.numpy as jnp
from jax import lax
from jax.experimental import pallas as pl
from jax.experimental.pallas import tpu as pltpu


COMPUTE_DTYPE = jnp.bfloat16        # activations + weights; MXU accumulates in f32
LN_EPS = 1e-12                      # HF VideoMAE layer_norm_eps


def _default_vmem_limit():
    """3/4 of physical VMEM, capped at 100 MiB (v5e/v6e: ~96 MiB, v7x: 48 MiB)."""
    cap = 128 * 1024 * 1024
    try:
        info_fn = getattr(pltpu, "get_tpu_info", None)
        if info_fn is not None:
            cap = int(getattr(info_fn(), "vmem_capacity_bytes", cap))
    except Exception:
        pass
    return min((cap * 3) // 4, 100 * 1024 * 1024)


_VMEM_LIMIT = _default_vmem_limit()


def _pick_tile(dim, pref, align):
    """Largest tile <= pref that divides `dim`, preferring `align` multiples
    (then 8-aligned), falling back to the full dimension (always legal)."""
    if dim <= pref:
        return dim
    aligns = (align, 8) if align > 8 else (align,)
    for a in aligns:
        t = (pref // a) * a
        while t >= a:
            if dim % t == 0:
                return t
            t -= a
    return dim


# ----------------------------------------------------------------------------
# Tiled matmul (+bias, optional GELU, optional fused residual) kernels
# ----------------------------------------------------------------------------

def _matmul_kernel(x_ref, w_ref, b_ref, o_ref, acc_ref, *, activation):
    k = pl.program_id(2)

    @pl.when(k == 0)
    def _():
        acc_ref[...] = jnp.zeros_like(acc_ref)

    acc_ref[...] += jnp.dot(x_ref[...], w_ref[...],
                            preferred_element_type=jnp.float32)

    @pl.when(k == pl.num_programs(2) - 1)
    def _():
        y = acc_ref[...] + b_ref[...].astype(jnp.float32)
        if activation == "gelu":
            y = jax.nn.gelu(y, approximate=True)
        o_ref[...] = y.astype(o_ref.dtype)


def _matmul_res_kernel(x_ref, w_ref, b_ref, res_ref, o_ref, acc_ref, *, activation):
    k = pl.program_id(2)

    @pl.when(k == 0)
    def _():
        acc_ref[...] = jnp.zeros_like(acc_ref)

    acc_ref[...] += jnp.dot(x_ref[...], w_ref[...],
                            preferred_element_type=jnp.float32)

    @pl.when(k == pl.num_programs(2) - 1)
    def _():
        y = acc_ref[...] + b_ref[...].astype(jnp.float32)
        if activation == "gelu":
            y = jax.nn.gelu(y, approximate=True)
        y = y + res_ref[...].astype(jnp.float32)      # residual fused into epilogue
        o_ref[...] = y.astype(o_ref.dtype)


def matmul_bias(x, w, b, *, activation=None, residual=None, out_dtype=COMPUTE_DTYPE):
    """(M,K) @ (K,N) + b  [+ GELU] [+ residual], tiled over (M, N, K)."""
    M, K = x.shape
    N = w.shape[1]
    tm = _pick_tile(M, 512, 128)
    tn = _pick_tile(N, 512, 128)
    tk = _pick_tile(K, 1024, 128)
    grid = (M // tm, N // tn, K // tk)
    b2 = b.reshape(1, N)

    # TODO(synk): pipeline_mode=pl.Buffered(3) on the weight spec for v5e.
    in_specs = [
        pl.BlockSpec((tm, tk), lambda i, j, k: (i, k)),
        pl.BlockSpec((tk, tn), lambda i, j, k: (k, j)),
        pl.BlockSpec((1, tn), lambda i, j, k: (0, j)),
    ]
    args = [x, w, b2]
    if residual is not None:
        in_specs.append(pl.BlockSpec((tm, tn), lambda i, j, k: (i, j)))
        args.append(residual)
        kernel = functools.partial(_matmul_res_kernel, activation=activation)
    else:
        kernel = functools.partial(_matmul_kernel, activation=activation)

    return pl.pallas_call(
        kernel,
        grid=grid,
        out_shape=jax.ShapeDtypeStruct((M, N), out_dtype),
        in_specs=in_specs,
        out_specs=pl.BlockSpec((tm, tn), lambda i, j, k: (i, j)),
        scratch_shapes=[pltpu.VMEM((tm, tn), jnp.float32)],
        compiler_params=pltpu.CompilerParams(
            dimension_semantics=("parallel", "parallel", "arbitrary"),
            vmem_limit_bytes=_VMEM_LIMIT),
    )(*args)


# ----------------------------------------------------------------------------
# LayerNorm fused into a projection (+bias, optional GELU).
# The normalized row block is computed once (j == 0) into a VMEM scratch and
# reused for every N tile of that row block.
# ----------------------------------------------------------------------------

def _ln_matmul_kernel(x_ref, g_ref, bg_ref, w_ref, b_ref, o_ref, xn_ref,
                      *, activation, eps):
    j = pl.program_id(1)

    @pl.when(j == 0)
    def _():
        x = x_ref[...].astype(jnp.float32)
        mu = jnp.mean(x, axis=-1, keepdims=True)
        var = jnp.mean(jnp.square(x - mu), axis=-1, keepdims=True)
        xn = (x - mu) * lax.rsqrt(var + eps)
        xn = xn * g_ref[...].astype(jnp.float32) + bg_ref[...].astype(jnp.float32)
        xn_ref[...] = xn.astype(xn_ref.dtype)

    y = jnp.dot(xn_ref[...], w_ref[...], preferred_element_type=jnp.float32)
    y = y + b_ref[...].astype(jnp.float32)
    if activation == "gelu":
        y = jax.nn.gelu(y, approximate=True)
    o_ref[...] = y.astype(o_ref.dtype)


def ln_matmul_bias(x, gamma, beta, w, b, *, activation=None, eps=LN_EPS,
                   out_dtype=COMPUTE_DTYPE):
    """LayerNorm(x) @ w + b [+ GELU]; K kept whole (LN needs the full row)."""
    M, K = x.shape
    N = w.shape[1]
    tm = _pick_tile(M, 512, 128)
    tn = _pick_tile(N, 512, 128)
    grid = (M // tm, N // tn)
    kernel = functools.partial(_ln_matmul_kernel, activation=activation, eps=eps)
    return pl.pallas_call(
        kernel,
        grid=grid,
        out_shape=jax.ShapeDtypeStruct((M, N), out_dtype),
        in_specs=[
            pl.BlockSpec((tm, K), lambda i, j: (i, 0)),
            pl.BlockSpec((1, K), lambda i, j: (0, 0)),
            pl.BlockSpec((1, K), lambda i, j: (0, 0)),
            pl.BlockSpec((K, tn), lambda i, j: (0, j)),
            pl.BlockSpec((1, tn), lambda i, j: (0, j)),
        ],
        out_specs=pl.BlockSpec((tm, tn), lambda i, j: (i, j)),
        scratch_shapes=[pltpu.VMEM((tm, K), COMPUTE_DTYPE)],
        compiler_params=pltpu.CompilerParams(
            dimension_semantics=("parallel", "arbitrary"),
            vmem_limit_bytes=_VMEM_LIMIT),
    )(x, gamma.reshape(1, K), beta.reshape(1, K), w, b.reshape(1, N))


# ----------------------------------------------------------------------------
# Multi-head attention: one (batch, head) pair per grid step.
# qkv is pre-laid out as (B, heads, 3, S, dh) so every block is a contiguous,
# full-extent slab; probs are emitted per head (VMEM-safe at real sizes).
# ----------------------------------------------------------------------------

def _attention_kernel(qkv_ref, ctx_ref, p_ref, *, scale):
    q = qkv_ref[0, 0, 0]                               # (S, dh)
    k = qkv_ref[0, 0, 1]
    v = qkv_ref[0, 0, 2]
    s = lax.dot_general(q, k, (((1,), (1,)), ((), ())),
                        preferred_element_type=jnp.float32) * scale
    s = s - jnp.max(s, axis=-1, keepdims=True)
    e = jnp.exp(s)
    denom = jnp.sum(e, axis=-1, keepdims=True)
    p = (e / denom).astype(p_ref.dtype)                # exact softmax, single cast
    p_ref[0, 0] = p
    ctx_ref[0, 0] = jnp.dot(p, v,
                            preferred_element_type=jnp.float32).astype(ctx_ref.dtype)


def attention(qkv, num_heads):
    """qkv: (B, S, 3H) fused projection -> (ctx (B,S,H), probs (B,heads,S,S))."""
    B, S, H3 = qkv.shape
    hidden = H3 // 3
    dh = hidden // num_heads
    scale = 1.0 / math.sqrt(dh)

    # (B,S,3H) -> (B, heads, 3, S, dh): contiguous per-head Q/K/V slabs.
    qkv5 = qkv.reshape(B, S, 3, num_heads, dh).transpose(0, 3, 2, 1, 4)

    kernel = functools.partial(_attention_kernel, scale=scale)
    ctx, probs = pl.pallas_call(
        kernel,
        grid=(B, num_heads),
        out_shape=(
            jax.ShapeDtypeStruct((B, num_heads, S, dh), qkv.dtype),
            jax.ShapeDtypeStruct((B, num_heads, S, S), qkv.dtype),
        ),
        in_specs=[pl.BlockSpec((1, 1, 3, S, dh), lambda b, h: (b, h, 0, 0, 0))],
        out_specs=(
            pl.BlockSpec((1, 1, S, dh), lambda b, h: (b, h, 0, 0)),
            pl.BlockSpec((1, 1, S, S), lambda b, h: (b, h, 0, 0)),
        ),
        compiler_params=pltpu.CompilerParams(
            dimension_semantics=("parallel", "parallel"),
            vmem_limit_bytes=_VMEM_LIMIT),
    )(qkv5)

    # (B, heads, S, dh) -> (B, S, H); XLA transpose (small vs. the attn matmuls).
    ctx = ctx.transpose(0, 2, 1, 3).reshape(B, S, hidden)
    return ctx, probs


# ----------------------------------------------------------------------------
# Classification head: mean-pool + fc_norm LN + classifier (lane-padded output)
# ----------------------------------------------------------------------------

def _head_kernel(x_ref, g_ref, b_ref, w_ref, bc_ref, o_ref, *, eps):
    x = x_ref[...].astype(jnp.float32)
    pooled = jnp.mean(x, axis=1)
    mu = jnp.mean(pooled, axis=-1, keepdims=True)
    var = jnp.mean(jnp.square(pooled - mu), axis=-1, keepdims=True)
    nrm = (pooled - mu) * lax.rsqrt(var + eps)
    nrm = nrm * g_ref[...].astype(jnp.float32) + b_ref[...].astype(jnp.float32)
    y = jnp.dot(nrm.astype(w_ref.dtype), w_ref[...],
                preferred_element_type=jnp.float32)
    o_ref[...] = y + bc_ref[...].astype(jnp.float32)


def classification_head(h, fc_g, fc_b, cls_w_padded, cls_b_padded, num_labels,
                        eps=LN_EPS):
    B, S, H = h.shape
    Lp = cls_w_padded.shape[1]          # padded to a multiple of 128 lanes
    kernel = functools.partial(_head_kernel, eps=eps)
    out = pl.pallas_call(
        kernel,
        out_shape=jax.ShapeDtypeStruct((B, Lp), jnp.float32),
        in_specs=[
            pl.BlockSpec((B, S, H), lambda: (0, 0, 0)),
            pl.BlockSpec((1, H), lambda: (0, 0)),
            pl.BlockSpec((1, H), lambda: (0, 0)),
            pl.BlockSpec((H, Lp), lambda: (0, 0)),
            pl.BlockSpec((1, Lp), lambda: (0, 0)),
        ],
        out_specs=pl.BlockSpec((B, Lp), lambda: (0, 0)),
        compiler_params=pltpu.CompilerParams(vmem_limit_bytes=_VMEM_LIMIT),
    )(h, fc_g.reshape(1, H), fc_b.reshape(1, H), cls_w_padded,
      cls_b_padded.reshape(1, Lp))
    return out[:, :num_labels]


# ----------------------------------------------------------------------------
# VideoMAE-style model (glue built from the kernels above)
# ----------------------------------------------------------------------------

def sinusoid_pos_embed(seq_len, hidden):
    pos = jnp.arange(seq_len, dtype=jnp.float32)[:, None]
    i = jnp.arange(hidden)
    angle = pos / jnp.power(10000.0, (2.0 * (i // 2)).astype(jnp.float32) / hidden)
    table = jnp.where(i % 2 == 0, jnp.sin(angle), jnp.cos(angle))
    return table[None, :, :].astype(COMPUTE_DTYPE)      # (1, S, H)


def init_linear(key, in_dim, out_dim):
    w = (jax.random.normal(key, (in_dim, out_dim), jnp.float32) * 0.02)
    return w.astype(COMPUTE_DTYPE), jnp.zeros((out_dim,), COMPUTE_DTYPE)


def init_videomae_params(key, *, hidden, num_layers, num_heads, num_labels,
                         patch_dim, seq_len):
    del num_heads  # head split handled at attention time
    inter = hidden * 4
    keys = jax.random.split(key, 2 + 7 * num_layers)
    k_iter = iter(keys)
    params = {}
    params["patch_w"], params["patch_b"] = init_linear(next(k_iter), patch_dim, hidden)
    params["pos_embed"] = sinusoid_pos_embed(seq_len, hidden)
    layers = []
    for _ in range(num_layers):
        lp = {}
        lp["ln1_g"] = jnp.ones((hidden,), COMPUTE_DTYPE)
        lp["ln1_b"] = jnp.zeros((hidden,), COMPUTE_DTYPE)
        q_w, q_b = init_linear(next(k_iter), hidden, hidden)
        k_w, k_b = init_linear(next(k_iter), hidden, hidden)
        v_w, v_b = init_linear(next(k_iter), hidden, hidden)
        lp["qkv_w"] = jnp.concatenate([q_w, k_w, v_w], axis=1)   # fused (H, 3H)
        lp["qkv_b"] = jnp.concatenate([q_b, k_b, v_b], axis=0)
        lp["o_w"], lp["o_b"] = init_linear(next(k_iter), hidden, hidden)
        lp["ln2_g"] = jnp.ones((hidden,), COMPUTE_DTYPE)
        lp["ln2_b"] = jnp.zeros((hidden,), COMPUTE_DTYPE)
        lp["fc1_w"], lp["fc1_b"] = init_linear(next(k_iter), hidden, inter)
        lp["fc2_w"], lp["fc2_b"] = init_linear(next(k_iter), inter, hidden)
        layers.append(lp)
    params["layers"] = layers
    params["fc_norm_g"] = jnp.ones((hidden,), COMPUTE_DTYPE)
    params["fc_norm_b"] = jnp.zeros((hidden,), COMPUTE_DTYPE)
    cls_w, cls_b = init_linear(next(k_iter), hidden, num_labels)
    # Pad classifier to 128 lanes so the head writes lane-dense; slice in wrapper.
    l_pad = max(128, ((num_labels + 127) // 128) * 128)
    params["cls_w"] = jnp.pad(cls_w, ((0, 0), (0, l_pad - num_labels)))
    params["cls_b"] = jnp.pad(cls_b, (0, l_pad - num_labels))
    return params


def transformer_layer(h, lp, num_heads):
    B, S, H = h.shape
    h2d = h.reshape(B * S, H)

    # LN1 fused into the fused-QKV projection: one (M,H)x(H,3H) matmul.
    qkv = ln_matmul_bias(h2d, lp["ln1_g"], lp["ln1_b"], lp["qkv_w"], lp["qkv_b"])
    ctx, probs = attention(qkv.reshape(B, S, 3 * H), num_heads)

    # Output projection with residual add fused into the epilogue.
    h2d = matmul_bias(ctx.reshape(B * S, H), lp["o_w"], lp["o_b"], residual=h2d)

    # LN2 fused into FC1 (+GELU); residual fused into FC2 epilogue.
    inter = ln_matmul_bias(h2d, lp["ln2_g"], lp["ln2_b"], lp["fc1_w"], lp["fc1_b"],
                           activation="gelu")
    h2d = matmul_bias(inter, lp["fc2_w"], lp["fc2_b"], residual=h2d)
    return h2d.reshape(B, S, H), probs


def extract_tubelet_patches(pixel_values, tubelet, patch):
    """Tubelet patch extraction == Conv3d(kernel=stride=(tubelet,P,P)) flatten
    order (c, dt, dh, dw); token order (t, h, w) row-major.  Done ONCE and
    shared by all three models."""
    B, T, C, Hh, Ww = pixel_values.shape
    nt, nh, nw = T // tubelet, Hh // patch, Ww // patch
    S = nt * nh * nw
    x = pixel_values.astype(COMPUTE_DTYPE).transpose(0, 2, 1, 3, 4)   # B,C,T,H,W
    x = x.reshape(B, C, nt, tubelet, nh, patch, nw, patch)
    x = x.transpose(0, 2, 4, 6, 1, 3, 5, 7)
    x = x.reshape(B * S, C * tubelet * patch * patch)
    return x, B, S


def videomae_forward(params, patches, B, S, *, num_heads, num_labels, labels=None):
    """patches: (B*S, patch_dim) pre-extracted tubelet patches."""
    hidden = params["patch_w"].shape[1]

    # Patch-embedding matmul with the position embedding fused as the residual.
    # TODO(synk): feed pos as (S,H) via a wrapping index_map instead of a
    # materialized (B*S,H) broadcast.
    pos = jnp.broadcast_to(params["pos_embed"], (B, S, hidden)).reshape(B * S, hidden)
    h = matmul_bias(patches, params["patch_w"], params["patch_b"], residual=pos)
    h = h.reshape(B, S, hidden)

    hidden_states = [h]
    attentions = []
    for lp in params["layers"]:
        h, probs = transformer_layer(h, lp, num_heads)
        hidden_states.append(h)
        attentions.append(probs)

    logits = classification_head(h, params["fc_norm_g"], params["fc_norm_b"],
                                 params["cls_w"], params["cls_b"], num_labels)

    out = {"logits": logits,
           "hidden_states": tuple(hidden_states),
           "attentions": tuple(attentions)}
    if labels is not None:
        logp = jax.nn.log_softmax(logits.astype(jnp.float32), axis=-1)
        nll = -jnp.take_along_axis(logp, labels[:, None], axis=-1)[:, 0]
        out["loss"] = jnp.mean(nll)
    return out


# ----------------------------------------------------------------------------
# TriModelDistillationFramework forward
# ----------------------------------------------------------------------------

def tri_model_forward(student_params, teacher_params, assistant_params,
                      pixel_values, labels, *, student_heads, teacher_heads,
                      tubelet, patch, num_labels):
    # Patch extraction hoisted: identical for all three models.
    patches, B, S = extract_tubelet_patches(pixel_values, tubelet, patch)

    student_outputs = videomae_forward(
        student_params, patches, B, S, num_heads=student_heads,
        num_labels=num_labels, labels=labels)
    # teacher / assistant are frozen (no-grad in torch); plain forward here.
    # TODO(synk): stack teacher+assistant params on a leading model axis and run
    # one batched pallas_call sequence (v7x: shard across the 2 TensorCores).
    teacher_outputs = videomae_forward(
        teacher_params, patches, B, S, num_heads=teacher_heads,
        num_labels=num_labels)
    assistant_outputs = videomae_forward(
        assistant_params, patches, B, S, num_heads=teacher_heads,
        num_labels=num_labels)
    return {"student": student_outputs,
            "teacher": teacher_outputs,
            "assistant": assistant_outputs}


if __name__ == "__main__":
    key = jax.random.PRNGKey(0)
    k_px, k_teacher, k_assistant, k_student = jax.random.split(key, 4)

    # Small-but-consistent VideoMAE-ish geometry.
    B, T, C, H, W = 2, 4, 3, 16, 16
    tubelet, patch = 2, 8
    num_labels = 2
    seq_len = (T // tubelet) * (H // patch) * (W // patch)      # 8 tokens
    patch_dim = C * tubelet * patch * patch                     # 384

    # Teacher / assistant: "ViT-B"-like (scaled down): hidden 64, 2 layers, 4 heads.
    # Student: tiny (smaller hidden, fewer heads), per load_student_model.
    teacher_params = init_videomae_params(
        k_teacher, hidden=64, num_layers=2, num_heads=4,
        num_labels=num_labels, patch_dim=patch_dim, seq_len=seq_len)
    assistant_params = init_videomae_params(
        k_assistant, hidden=64, num_layers=2, num_heads=4,
        num_labels=num_labels, patch_dim=patch_dim, seq_len=seq_len)
    student_params = init_videomae_params(
        k_student, hidden=32, num_layers=2, num_heads=2,
        num_labels=num_labels, patch_dim=patch_dim, seq_len=seq_len)

    pixel_values = jax.random.normal(k_px, (B, T, C, H, W), jnp.float32)
    labels = jnp.array([0, 1], dtype=jnp.int32)

    fwd = jax.jit(functools.partial(
        tri_model_forward, student_heads=2, teacher_heads=4,
        tubelet=tubelet, patch=patch, num_labels=num_labels))

    outputs = fwd(student_params, teacher_params, assistant_params,
                  pixel_values, labels)
    jax.block_until_ready(outputs)

    assert outputs["student"]["logits"].shape == (B, num_labels)
    assert outputs["teacher"]["logits"].shape == (B, num_labels)
    assert outputs["assistant"]["logits"].shape == (B, num_labels)
    assert len(outputs["student"]["hidden_states"]) == 3   # embed + 2 layers
    assert len(outputs["teacher"]["attentions"]) == 2
    assert outputs["teacher"]["attentions"][0].shape == (B, 4, seq_len, seq_len)
    assert outputs["student"]["attentions"][0].shape == (B, 2, seq_len, seq_len)
    assert jnp.isfinite(outputs["student"]["loss"])

    print("KERNEL_OK")
</pallas_src>

<mosaic_0001>
module attributes {stable_mosaic.version = 11 : i64} {
  func.func @_matmul_res_kernel(%arg0: i32, %arg1: i32, %arg2: i32, %arg3: memref<16x384xbf16, #tpu.memory_space<vmem>>, %arg4: memref<384x32xbf16, #tpu.memory_space<vmem>>, %arg5: memref<1x32xbf16, #tpu.memory_space<vmem>>, %arg6: memref<16x32xbf16, #tpu.memory_space<vmem>>, %arg7: memref<16x32xbf16, #tpu.memory_space<vmem>>, %arg8: memref<16x32xf32, #tpu.memory_space<vmem>>) attributes {dimension_semantics = [#tpu.dimension_semantics<parallel>, #tpu.dimension_semantics<parallel>, #tpu.dimension_semantics<arbitrary>], iteration_bounds = array<i64: 1, 1, 1>, scalar_prefetch = 0 : i64, scratch_operands = 1 : i64, tpu.core_type = #tpu.core_type<tc>, window_params = [{transform_indices = @transform_0, window_bounds = array<i64: 16, 384>}, {transform_indices = @transform_1, window_bounds = array<i64: 384, 32>}, {transform_indices = @transform_2, window_bounds = array<i64: 1, 32>}, {transform_indices = @transform_3, window_bounds = array<i64: 16, 32>}, {transform_indices = @transform_4, window_bounds = array<i64: 16, 32>}]} {
    %c0_i32 = arith.constant 0 : i32
    %0 = arith.cmpi eq, %arg2, %c0_i32 : i32
    %1 = arith.extui %0 : i1 to i32
    %c0_i32_0 = arith.constant 0 : i32
    %2 = arith.cmpi ne, %1, %c0_i32_0 : i32
    scf.if %2 {
      %cst_10 = arith.constant 0.000000e+00 : f32
      %12 = vector.broadcast %cst_10 : f32 to vector<16x32xf32>
      %c0_11 = arith.constant 0 : index
      %c0_12 = arith.constant 0 : index
      %13 = vector.load %arg8[%c0_11, %c0_12] : memref<16x32xf32, #tpu.memory_space<vmem>>, vector<16x32xf32>
      tpu.vector_store %arg8[%c0_11, %c0_12], %12 {strides = array<i32>} : memref<16x32xf32, #tpu.memory_space<vmem>>, vector<16x32xf32>,
    } else {
    }
    %c0 = arith.constant 0 : index
    %c0_1 = arith.constant 0 : index
    %3 = vector.load %arg8[%c0, %c0_1] : memref<16x32xf32, #tpu.memory_space<vmem>>, vector<16x32xf32>
    %c0_2 = arith.constant 0 : index
    %c0_3 = arith.constant 0 : index
    %4 = vector.load %arg3[%c0_2, %c0_3] : memref<16x384xbf16, #tpu.memory_space<vmem>>, vector<16x384xbf16>
    %c0_4 = arith.constant 0 : index
    %c0_5 = arith.constant 0 : index
    %5 = vector.load %arg4[%c0_4, %c0_5] : memref<384x32xbf16, #tpu.memory_space<vmem>>, vector<384x32xbf16>
    %cst = arith.constant dense<0.000000e+00> : vector<16x32xf32>
    %6 = tpu.matmul %4, %5, %cst {dimension_numbers = #tpu.dot_dimension_numbers<[1], [0], [0], [1], [0, 0, 1, 1], [], []>} : vector<16x384xbf16>, vector<384x32xbf16>, vector<16x32xf32> -> vector<16x32xf32>
    %7 = arith.addf %3, %6 : vector<16x32xf32>
    %c0_6 = arith.constant 0 : index
    %c0_7 = arith.constant 0 : index
    %8 = vector.load %arg8[%c0_6, %c0_7] : memref<16x32xf32, #tpu.memory_space<vmem>>, vector<16x32xf32>
    tpu.vector_store %arg8[%c0_6, %c0_7], %7 {strides = array<i32>} : memref<16x32xf32, #tpu.memory_space<vmem>>, vector<16x32xf32>,
    %c0_i32_8 = arith.constant 0 : i32
    %9 = arith.cmpi eq, %arg2, %c0_i32_8 : i32
    %10 = arith.extui %9 : i1 to i32
    %c0_i32_9 = arith.constant 0 : i32
    %11 = arith.cmpi ne, %10, %c0_i32_9 : i32
    scf.if %11 {
      %c0_10 = arith.constant 0 : index
      %c0_11 = arith.constant 0 : index
      %12 = vector.load %arg8[%c0_10, %c0_11] : memref<16x32xf32, #tpu.memory_space<vmem>>, vector<16x32xf32>
      %c0_12 = arith.constant 0 : index
      %c0_13 = arith.constant 0 : index
      %13 = vector.load %arg5[%c0_12, %c0_13] : memref<1x32xbf16, #tpu.memory_space<vmem>>, vector<1x32xbf16>
      %14 = arith.extf %13 : vector<1x32xbf16> to vector<1x32xf32>
      %15 = vector.broadcast %14 : vector<1x32xf32> to vector<16x32xf32>
      %16 = arith.addf %12, %15 : vector<16x32xf32>
      %c0_14 = arith.constant 0 : index
      %c0_15 = arith.constant 0 : index
      %17 = vector.load %arg6[%c0_14, %c0_15] : memref<16x32xbf16, #tpu.memory_space<vmem>>, vector<16x32xbf16>
      %18 = arith.extf %17 : vector<16x32xbf16> to vector<16x32xf32>
      %19 = arith.addf %16, %18 : vector<16x32xf32>
      %20 = arith.truncf %19 : vector<16x32xf32> to vector<16x32xbf16>
      %c0_16 = arith.constant 0 : index
      %c0_17 = arith.constant 0 : index
      %21 = vector.load %arg7[%c0_16, %c0_17] : memref<16x32xbf16, #tpu.memory_space<vmem>>, vector<16x32xbf16>
      tpu.vector_store %arg7[%c0_16, %c0_17], %20 {strides = array<i32>} : memref<16x32xbf16, #tpu.memory_space<vmem>>, vector<16x32xbf16>,
    } else {
    }
    return
  }
  func.func @transform_0(%arg0: i32, %arg1: i32, %arg2: i32) -> (i32, i32) {
    %c0_i32 = arith.constant 0 : i32
    return %arg0, %arg2 : i32, i32
  }
  func.func @transform_1(%arg0: i32, %arg1: i32, %arg2: i32) -> (i32, i32) {
    %c0_i32 = arith.constant 0 : i32
    return %arg2, %arg1 : i32, i32
  }
  func.func @transform_2(%arg0: i32, %arg1: i32, %arg2: i32) -> (i32, i32) {
    %c0_i32 = arith.constant 0 : i32
    %c0_i32_0 = arith.constant 0 : i32
    return %c0_i32, %arg1 : i32, i32
  }
  func.func @transform_3(%arg0: i32, %arg1: i32, %arg2: i32) -> (i32, i32) {
    %c0_i32 = arith.constant 0 : i32
    return %arg0, %arg1 : i32, i32
  }
  func.func @transform_4(%arg0: i32, %arg1: i32, %arg2: i32) -> (i32, i32) {
    %c0_i32 = arith.constant 0 : i32
    return %arg0, %arg1 : i32, i32
  }
}

module attributes {stable_mosaic.version = 11 : i64} {
  func.func @_ln_matmul_kernel(%arg0: i32, %arg1: i32, %arg2: memref<16x32xbf16, #tpu.memory_space<vmem>>, %arg3: memref<1x32xbf16, #tpu.memory_space<vmem>>, %arg4: memref<1x32xbf16, #tpu.memory_space<vmem>>, %arg5: memref<32x96xbf16, #tpu.memory_space<vmem>>, %arg6: memref<1x96xbf16, #tpu.memory_space<vmem>>, %arg7: memref<16x96xbf16, #tpu.memory_space<vmem>>, %arg8: memref<16x32xbf16, #tpu.memory_space<vmem>>) attributes {dimension_semantics = [#tpu.dimension_semantics<parallel>, #tpu.dimension_semantics<arbitrary>], iteration_bounds = array<i64: 1, 1>, scalar_prefetch = 0 : i64, scratch_operands = 1 : i64, tpu.core_type = #tpu.core_type<tc>, window_params = [{transform_indices = @transform_0, window_bounds = array<i64: 16, 32>}, {pipeline_mode = #tpu.pipeline_mode<synchronous>, transform_indices = @transform_1, window_bounds = array<i64: 1, 32>}, {pipeline_mode = #tpu.pipeline_mode<synchronous>, transform_indices = @transform_2, window_bounds = array<i64: 1, 32>}, {transform_indices = @transform_3, window_bounds = array<i64: 32, 96>}, {transform_indices = @transform_4, window_bounds = array<i64: 1, 96>}, {transform_indices = @transform_5, window_bounds = array<i64: 16, 96>}]} {
    %c0_i32 = arith.constant 0 : i32
    %0 = arith.cmpi eq, %arg1, %c0_i32 : i32
    %1 = arith.extui %0 : i1 to i32
    %c0_i32_0 = arith.constant 0 : i32
    %2 = arith.cmpi ne, %1, %c0_i32_0 : i32
    scf.if %2 {
      %c0_8 = arith.constant 0 : index
      %c0_9 = arith.constant 0 : index
      %12 = vector.load %arg2[%c0_8, %c0_9] : memref<16x32xbf16, #tpu.memory_space<vmem>>, vector<16x32xbf16>
      %13 = arith.extf %12 : vector<16x32xbf16> to vector<16x32xf32>
      %cst_10 = arith.constant dense<0.000000e+00> : vector<16xf32>
      %14 = vector.multi_reduction <add>, %13, %cst_10 [1] : vector<16x32xf32> to vector<16xf32>
      %15 = vector.shape_cast %14 : vector<16xf32> to vector<16x1xf32>
      %cst_11 = arith.constant 3.200000e+01 : f32
      %16 = vector.broadcast %cst_11 : f32 to vector<16x1xf32>
      %17 = arith.divf %15, %16 : vector<16x1xf32>
      %18 = vector.broadcast %17 : vector<16x1xf32> to vector<16x32xf32>
      %19 = arith.subf %13, %18 : vector<16x32xf32>
      %20 = arith.mulf %19, %19 : vector<16x32xf32>
      %cst_12 = arith.constant dense<0.000000e+00> : vector<16xf32>
      %21 = vector.multi_reduction <add>, %20, %cst_12 [1] : vector<16x32xf32> to vector<16xf32>
      %22 = vector.shape_cast %21 : vector<16xf32> to vector<16x1xf32>
      %cst_13 = arith.constant 3.200000e+01 : f32
      %23 = vector.broadcast %cst_13 : f32 to vector<16x1xf32>
      %24 = arith.divf %22, %23 : vector<16x1xf32>
      %25 = vector.broadcast %17 : vector<16x1xf32> to vector<16x32xf32>
      %26 = arith.subf %13, %25 : vector<16x32xf32>
      %cst_14 = arith.constant 9.99999996E-13 : f32
      %27 = vector.broadcast %cst_14 : f32 to vector<16x1xf32>
      %28 = arith.addf %24, %27 : vector<16x1xf32>
      %29 = math.rsqrt %28 : vector<16x1xf32>
      %30 = vector.broadcast %29 : vector<16x1xf32> to vector<16x32xf32>
      %31 = arith.mulf %26, %30 : vector<16x32xf32>
      %c0_15 = arith.constant 0 : index
      %c0_16 = arith.constant 0 : index
      %32 = vector.load %arg3[%c0_15, %c0_16] : memref<1x32xbf16, #tpu.memory_space<vmem>>, vector<1x32xbf16>
      %33 = arith.extf %32 : vector<1x32xbf16> to vector<1x32xf32>
      %34 = vector.broadcast %33 : vector<1x32xf32> to vector<16x32xf32>
      %35 = arith.mulf %31, %34 : vector<16x32xf32>
      %c0_17 = arith.constant 0 : index
      %c0_18 = arith.constant 0 : index
      %36 = vector.load %arg4[%c0_17, %c0_18] : memref<1x32xbf16, #tpu.memory_space<vmem>>, vector<1x32xbf16>
      %37 = arith.extf %36 : vector<1x32xbf16> to vector<1x32xf32>
      %38 = vector.broadcast %37 : vector<1x32xf32> to vector<16x32xf32>
      %39 = arith.addf %35, %38 : vector<16x32xf32>
      %40 = arith.truncf %39 : vector<16x32xf32> to vector<16x32xbf16>
      %c0_19 = arith.constant 0 : index
      %c0_20 = arith.constant 0 : index
      %41 = vector.load %arg8[%c0_19, %c0_20] : memref<16x32xbf16, #tpu.memory_space<vmem>>, vector<16x32xbf16>
      tpu.vector_store %arg8[%c0_19, %c0_20], %40 {strides = array<i32>} : memref<16x32xbf16, #tpu.memory_space<vmem>>, vector<16x32xbf16>,
    } else {
    }
    %c0 = arith.constant 0 : index
    %c0_1 = arith.constant 0 : index
    %3 = vector.load %arg8[%c0, %c0_1] : memref<16x32xbf16, #tpu.memory_space<vmem>>, vector<16x32xbf16>
    %c0_2 = arith.constant 0 : index
    %c0_3 = arith.constant 0 : index
    %4 = vector.load %arg5[%c0_2, %c0_3] : memref<32x96xbf16, #tpu.memory_space<vmem>>, vector<32x96xbf16>
    %cst = arith.constant dense<0.000000e+00> : vector<16x96xf32>
    %5 = tpu.matmul %3, %4, %cst {dimension_numbers = #tpu.dot_dimension_numbers<[1], [0], [0], [1], [0, 0, 1, 1], [], []>} : vector<16x32xbf16>, vector<32x96xbf16>, vector<16x96xf32> -> vector<16x96xf32>
    %c0_4 = arith.constant 0 : index
    %c0_5 = arith.constant 0 : index
    %6 = vector.load %arg6[%c0_4, %c0_5] : memref<1x96xbf16, #tpu.memory_space<vmem>>, vector<1x96xbf16>
    %7 = arith.extf %6 : vector<1x96xbf16> to vector<1x96xf32>
    %8 = vector.broadcast %7 : vector<1x96xf32> to vector<16x96xf32>
    %9 = arith.addf %5, %8 : vector<16x96xf32>
    %10 = arith.truncf %9 : vector<16x96xf32> to vector<16x96xbf16>
    %c0_6 = arith.constant 0 : index
    %c0_7 = arith.constant 0 : index
    %11 = vector.load %arg7[%c0_6, %c0_7] : memref<16x96xbf16, #tpu.memory_space<vmem>>, vector<16x96xbf16>
    tpu.vector_store %arg7[%c0_6, %c0_7], %10 {strides = array<i32>} : memref<16x96xbf16, #tpu.memory_space<vmem>>, vector<16x96xbf16>,
    return
  }
  func.func @transform_0(%arg0: i32, %arg1: i32) -> (i32, i32) {
    %c0_i32 = arith.constant 0 : i32
    %c0_i32_0 = arith.constant 0 : i32
    return %arg0, %c0_i32 : i32, i32
  }
  func.func @transform_1(%arg0: i32, %arg1: i32) -> (i32, i32) {
    %c0_i32 = arith.constant 0 : i32
    %c0_i32_0 = arith.constant 0 : i32
    %c0_i32_1 = arith.constant 0 : i32
    return %c0_i32, %c0_i32_0 : i32, i32
  }
  func.func @transform_2(%arg0: i32, %arg1: i32) -> (i32, i32) {
    %c0_i32 = arith.constant 0 : i32
    %c0_i32_0 = arith.constant 0 : i32
    %c0_i32_1 = arith.constant 0 : i32
    return %c0_i32, %c0_i32_0 : i32, i32
  }
  func.func @transform_3(%arg0: i32, %arg1: i32) -> (i32, i32) {
    %c0_i32 = arith.constant 0 : i32
    %c0_i32_0 = arith.constant 0 : i32
    return %c0_i32, %arg1 : i32, i32
  }
  func.func @transform_4(%arg0: i32, %arg1: i32) -> (i32, i32) {
    %c0_i32 = arith.constant 0 : i32
    %c0_i32_0 = arith.constant 0 : i32
    return %c0_i32, %arg1 : i32, i32
  }
  func.func @transform_5(%arg0: i32, %arg1: i32) -> (i32, i32) {
    %c0_i32 = arith.constant 0 : i32
    return %arg0, %arg1 : i32, i32
  }
}

module attributes {stable_mosaic.version = 11 : i64} {
  func.func @_attention_kernel(%arg0: i32, %arg1: i32, %arg2: memref<1x1x3x8x16xbf16, #tpu.memory_space<vmem>>, %arg3: memref<1x1x8x16xbf16, #tpu.memory_space<vmem>>, %arg4: memref<1x1x8x8xbf16, #tpu.memory_space<vmem>>) attributes {dimension_semantics = [#tpu.dimension_semantics<parallel>, #tpu.dimension_semantics<parallel>], iteration_bounds = array<i64: 2, 2>, scalar_prefetch = 0 : i64, scratch_operands = 0 : i64, tpu.core_type = #tpu.core_type<tc>, window_params = [{transform_indices = @transform_0, window_bounds = array<i64: 1, 1, 3, 8, 16>}, {transform_indices = @transform_1, window_bounds = array<i64: 1, 1, 8, 16>}, {transform_indices = @transform_2, window_bounds = array<i64: 1, 1, 8, 8>}]} {
    %c0 = arith.constant 0 : index
    %c0_0 = arith.constant 0 : index
    %c0_1 = arith.constant 0 : index
    %c0_2 = arith.constant 0 : index
    %c0_3 = arith.constant 0 : index
    %0 = vector.load %arg2[%c0, %c0_0, %c0_1, %c0_2, %c0_3] : memref<1x1x3x8x16xbf16, #tpu.memory_space<vmem>>, vector<1x1x1x8x16xbf16>
    %1 = vector.shape_cast %0 : vector<1x1x1x8x16xbf16> to vector<8x16xbf16>
    %c0_4 = arith.constant 0 : index
    %c0_5 = arith.constant 0 : index
    %c1 = arith.constant 1 : index
    %c0_6 = arith.constant 0 : index
    %c0_7 = arith.constant 0 : index
    %2 = vector.load %arg2[%c0_4, %c0_5, %c1, %c0_6, %c0_7] : memref<1x1x3x8x16xbf16, #tpu.memory_space<vmem>>, vector<1x1x1x8x16xbf16>
    %3 = vector.shape_cast %2 : vector<1x1x1x8x16xbf16> to vector<8x16xbf16>
    %c0_8 = arith.constant 0 : index
    %c0_9 = arith.constant 0 : index
    %c2 = arith.constant 2 : index
    %c0_10 = arith.constant 0 : index
    %c0_11 = arith.constant 0 : index
    %4 = vector.load %arg2[%c0_8, %c0_9, %c2, %c0_10, %c0_11] : memref<1x1x3x8x16xbf16, #tpu.memory_space<vmem>>, vector<1x1x1x8x16xbf16>
    %5 = vector.shape_cast %4 : vector<1x1x1x8x16xbf16> to vector<8x16xbf16>
    %cst = arith.constant dense<0.000000e+00> : vector<8x8xf32>
    %6 = tpu.matmul %1, %3, %cst {dimension_numbers = #tpu.dot_dimension_numbers<[1], [1], [0], [0], [0, 0, 1, 0], [], []>} : vector<8x16xbf16>, vector<8x16xbf16>, vector<8x8xf32> -> vector<8x8xf32>
    %cst_12 = arith.constant 2.500000e-01 : f32
    %7 = vector.broadcast %cst_12 : f32 to vector<8x8xf32>
    %8 = arith.mulf %6, %7 : vector<8x8xf32>
    %cst_13 = arith.constant dense<0xFF800000> : vector<8xf32>
    %9 = vector.multi_reduction <maximumf>, %8, %cst_13 [1] : vector<8x8xf32> to vector<8xf32>
    %10 = vector.shape_cast %9 : vector<8xf32> to vector<8x1xf32>
    %11 = vector.broadcast %10 : vector<8x1xf32> to vector<8x8xf32>
    %12 = arith.subf %8, %11 : vector<8x8xf32>
    %13 = math.exp %12 : vector<8x8xf32>
    %cst_14 = arith.constant dense<0.000000e+00> : vector<8xf32>
    %14 = vector.multi_reduction <add>, %13, %cst_14 [1] : vector<8x8xf32> to vector<8xf32>
    %15 = vector.shape_cast %14 : vector<8xf32> to vector<8x1xf32>
    %16 = vector.broadcast %15 : vector<8x1xf32> to vector<8x8xf32>
    %17 = arith.divf %13, %16 : vector<8x8xf32>
    %18 = arith.truncf %17 : vector<8x8xf32> to vector<8x8xbf16>
    %c0_15 = arith.constant 0 : index
    %c0_16 = arith.constant 0 : index
    %c0_17 = arith.constant 0 : index
    %c0_18 = arith.constant 0 : index
    %19 = vector.load %arg4[%c0_15, %c0_16, %c0_17, %c0_18] : memref<1x1x8x8xbf16, #tpu.memory_space<vmem>>, vector<1x1x8x8xbf16>
    %20 = vector.shape_cast %19 : vector<1x1x8x8xbf16> to vector<8x8xbf16>
    %21 = vector.shape_cast %18 : vector<8x8xbf16> to vector<1x1x8x8xbf16>
    tpu.vector_store %arg4[%c0_15, %c0_16, %c0_17, %c0_18], %21 {strides = array<i32>} : memref<1x1x8x8xbf16, #tpu.memory_space<vmem>>, vector<1x1x8x8xbf16>,
    %cst_19 = arith.constant dense<0.000000e+00> : vector<8x16xf32>
    %22 = tpu.matmul %18, %5, %cst_19 {dimension_numbers = #tpu.dot_dimension_numbers<[1], [0], [0], [1], [0, 0, 1, 1], [], []>} : vector<8x8xbf16>, vector<8x16xbf16>, vector<8x16xf32> -> vector<8x16xf32>
    %23 = arith.truncf %22 : vector<8x16xf32> to vector<8x16xbf16>
    %c0_20 = arith.constant 0 : index
    %c0_21 = arith.constant 0 : index
    %c0_22 = arith.constant 0 : index
    %c0_23 = arith.constant 0 : index
    %24 = vector.load %arg3[%c0_20, %c0_21, %c0_22, %c0_23] : memref<1x1x8x16xbf16, #tpu.memory_space<vmem>>, vector<1x1x8x16xbf16>
    %25 = vector.shape_cast %24 : vector<1x1x8x16xbf16> to vector<8x16xbf16>
    %26 = vector.shape_cast %23 : vector<8x16xbf16> to vector<1x1x8x16xbf16>
    tpu.vector_store %arg3[%c0_20, %c0_21, %c0_22, %c0_23], %26 {strides = array<i32>} : memref<1x1x8x16xbf16, #tpu.memory_space<vmem>>, vector<1x1x8x16xbf16>,
    return
  }
  func.func @transform_0(%arg0: i32, %arg1: i32) -> (i32, i32, i32, i32, i32) {
    %c0_i32 = arith.constant 0 : i32
    %c0_i32_0 = arith.constant 0 : i32
    %c0_i32_1 = arith.constant 0 : i32
    %c0_i32_2 = arith.constant 0 : i32
    return %arg0, %arg1, %c0_i32, %c0_i32_0, %c0_i32_1 : i32, i32, i32, i32, i32
  }
  func.func @transform_1(%arg0: i32, %arg1: i32) -> (i32, i32, i32, i32) {
    %c0_i32 = arith.constant 0 : i32
    %c0_i32_0 = arith.constant 0 : i32
    %c0_i32_1 = arith.constant 0 : i32
    return %arg0, %arg1, %c0_i32, %c0_i32_0 : i32, i32, i32, i32
  }
  func.func @transform_2(%arg0: i32, %arg1: i32) -> (i32, i32, i32, i32) {
    %c0_i32 = arith.constant 0 : i32
    %c0_i32_0 = arith.constant 0 : i32
    %c0_i32_1 = arith.constant 0 : i32
    return %arg0, %arg1, %c0_i32, %c0_i32_0 : i32, i32, i32, i32
  }
}

module attributes {stable_mosaic.version = 11 : i64} {
  func.func @_matmul_res_kernel(%arg0: i32, %arg1: i32, %arg2: i32, %arg3: memref<16x32xbf16, #tpu.memory_space<vmem>>, %arg4: memref<32x32xbf16, #tpu.memory_space<vmem>>, %arg5: memref<1x32xbf16, #tpu.memory_space<vmem>>, %arg6: memref<16x32xbf16, #tpu.memory_space<vmem>>, %arg7: memref<16x32xbf16, #tpu.memory_space<vmem>>, %arg8: memref<16x32xf32, #tpu.memory_space<vmem>>) attributes {dimension_semantics = [#tpu.dimension_semantics<parallel>, #tpu.dimension_semantics<parallel>, #tpu.dimension_semantics<arbitrary>], iteration_bounds = array<i64: 1, 1, 1>, scalar_prefetch = 0 : i64, scratch_operands = 1 : i64, tpu.core_type = #tpu.core_type<tc>, window_params = [{transform_indices = @transform_0, window_bounds = array<i64: 16, 32>}, {transform_indices = @transform_1, window_bounds = array<i64: 32, 32>}, {transform_indices = @transform_2, window_bounds = array<i64: 1, 32>}, {transform_indices = @transform_3, window_bounds = array<i64: 16, 32>}, {transform_indices = @transform_4, window_bounds = array<i64: 16, 32>}]} {
    %c0_i32 = arith.constant 0 : i32
    %0 = arith.cmpi eq, %arg2, %c0_i32 : i32
    %1 = arith.extui %0 : i1 to i32
    %c0_i32_0 = arith.constant 0 : i32
    %2 = arith.cmpi ne, %1, %c0_i32_0 : i32
    scf.if %2 {
      %cst_10 = arith.constant 0.000000e+00 : f32
      %12 = vector.broadcast %cst_10 : f32 to vector<16x32xf32>
      %c0_11 = arith.constant 0 : index
      %c0_12 = arith.constant 0 : index
      %13 = vector.load %arg8[%c0_11, %c0_12] : memref<16x32xf32, #tpu.memory_space<vmem>>, vector<16x32xf32>
      tpu.vector_store %arg8[%c0_11, %c0_12], %12 {strides = array<i32>} : memref<16x32xf32, #tpu.memory_space<vmem>>, vector<16x32xf32>,
    } else {
    }
    %c0 = arith.constant 0 : index
    %c0_1 = arith.constant 0 : index
    %3 = vector.load %arg8[%c0, %c0_1] : memref<16x32xf32, #tpu.memory_space<vmem>>, vector<16x32xf32>
    %c0_2 = arith.constant 0 : index
    %c0_3 = arith.constant 0 : index
    %4 = vector.load %arg3[%c0_2, %c0_3] : memref<16x32xbf16, #tpu.memory_space<vmem>>, vector<16x32xbf16>
    %c0_4 = arith.constant 0 : index
    %c0_5 = arith.constant 0 : index
    %5 = vector.load %arg4[%c0_4, %c0_5] : memref<32x32xbf16, #tpu.memory_space<vmem>>, vector<32x32xbf16>
    %cst = arith.constant dense<0.000000e+00> : vector<16x32xf32>
    %6 = tpu.matmul %4, %5, %cst {dimension_numbers = #tpu.dot_dimension_numbers<[1], [0], [0], [1], [0, 0, 1, 1], [], []>} : vector<16x32xbf16>, vector<32x32xbf16>, vector<16x32xf32> -> vector<16x32xf32>
    %7 = arith.addf %3, %6 : vector<16x32xf32>
    %c0_6 = arith.constant 0 : index
    %c0_7 = arith.constant 0 : index
    %8 = vector.load %arg8[%c0_6, %c0_7] : memref<16x32xf32, #tpu.memory_space<vmem>>, vector<16x32xf32>
    tpu.vector_store %arg8[%c0_6, %c0_7], %7 {strides = array<i32>} : memref<16x32xf32, #tpu.memory_space<vmem>>, vector<16x32xf32>,
    %c0_i32_8 = arith.constant 0 : i32
    %9 = arith.cmpi eq, %arg2, %c0_i32_8 : i32
    %10 = arith.extui %9 : i1 to i32
    %c0_i32_9 = arith.constant 0 : i32
    %11 = arith.cmpi ne, %10, %c0_i32_9 : i32
    scf.if %11 {
      %c0_10 = arith.constant 0 : index
      %c0_11 = arith.constant 0 : index
      %12 = vector.load %arg8[%c0_10, %c0_11] : memref<16x32xf32, #tpu.memory_space<vmem>>, vector<16x32xf32>
      %c0_12 = arith.constant 0 : index
      %c0_13 = arith.constant 0 : index
      %13 = vector.load %arg5[%c0_12, %c0_13] : memref<1x32xbf16, #tpu.memory_space<vmem>>, vector<1x32xbf16>
      %14 = arith.extf %13 : vector<1x32xbf16> to vector<1x32xf32>
      %15 = vector.broadcast %14 : vector<1x32xf32> to vector<16x32xf32>
      %16 = arith.addf %12, %15 : vector<16x32xf32>
      %c0_14 = arith.constant 0 : index
      %c0_15 = arith.constant 0 : index
      %17 = vector.load %arg6[%c0_14, %c0_15] : memref<16x32xbf16, #tpu.memory_space<vmem>>, vector<16x32xbf16>
      %18 = arith.extf %17 : vector<16x32xbf16> to vector<16x32xf32>
      %19 = arith.addf %16, %18 : vector<16x32xf32>
      %20 = arith.truncf %19 : vector<16x32xf32> to vector<16x32xbf16>
      %c0_16 = arith.constant 0 : index
      %c0_17 = arith.constant 0 : index
      %21 = vector.load %arg7[%c0_16, %c0_17] : memref<16x32xbf16, #tpu.memory_space<vmem>>, vector<16x32xbf16>
      tpu.vector_store %arg7[%c0_16, %c0_17], %20 {strides = array<i32>} : memref<16x32xbf16, #tpu.memory_space<vmem>>, vector<16x32xbf16>,
    } else {
    }
    return
  }
  func.func @transform_0(%arg0: i32, %arg1: i32, %arg2: i32) -> (i32, i32) {
    %c0_i32 = arith.constant 0 : i32
    return %arg0, %arg2 : i32, i32
  }
  func.func @transform_1(%arg0: i32, %arg1: i32, %arg2: i32) -> (i32, i32) {
    %c0_i32 = arith.constant 0 : i32
    return %arg2, %arg1 : i32, i32
  }
  func.func @transform_2(%arg0: i32, %arg1: i32, %arg2: i32) -> (i32, i32) {
    %c0_i32 = arith.constant 0 : i32
    %c0_i32_0 = arith.constant 0 : i32
    return %c0_i32, %arg1 : i32, i32
  }
  func.func @transform_3(%arg0: i32, %arg1: i32, %arg2: i32) -> (i32, i32) {
    %c0_i32 = arith.constant 0 : i32
    return %arg0, %arg1 : i32, i32
  }
  func.func @transform_4(%arg0: i32, %arg1: i32, %arg2: i32) -> (i32, i32) {
    %c0_i32 = arith.constant 0 : i32
    return %arg0, %arg1 : i32, i32
  }
}

module attributes {stable_mosaic.version = 11 : i64} {
  func.func @_ln_matmul_kernel(%arg0: i32, %arg1: i32, %arg2: memref<16x32xbf16, #tpu.memory_space<vmem>>, %arg3: memref<1x32xbf16, #tpu.memory_space<vmem>>, %arg4: memref<1x32xbf16, #tpu.memory_space<vmem>>, %arg5: memref<32x128xbf16, #tpu.memory_space<vmem>>, %arg6: memref<1x128xbf16, #tpu.memory_space<vmem>>, %arg7: memref<16x128xbf16, #tpu.memory_space<vmem>>, %arg8: memref<16x32xbf16, #tpu.memory_space<vmem>>) attributes {dimension_semantics = [#tpu.dimension_semantics<parallel>, #tpu.dimension_semantics<arbitrary>], iteration_bounds = array<i64: 1, 1>, scalar_prefetch = 0 : i64, scratch_operands = 1 : i64, tpu.core_type = #tpu.core_type<tc>, window_params = [{transform_indices = @transform_0, window_bounds = array<i64: 16, 32>}, {pipeline_mode = #tpu.pipeline_mode<synchronous>, transform_indices = @transform_1, window_bounds = array<i64: 1, 32>}, {pipeline_mode = #tpu.pipeline_mode<synchronous>, transform_indices = @transform_2, window_bounds = array<i64: 1, 32>}, {transform_indices = @transform_3, window_bounds = array<i64: 32, 128>}, {transform_indices = @transform_4, window_bounds = array<i64: 1, 128>}, {transform_indices = @transform_5, window_bounds = array<i64: 16, 128>}]} {
    %c0_i32 = arith.constant 0 : i32
    %0 = arith.cmpi eq, %arg1, %c0_i32 : i32
    %1 = arith.extui %0 : i1 to i32
    %c0_i32_0 = arith.constant 0 : i32
    %2 = arith.cmpi ne, %1, %c0_i32_0 : i32
    scf.if %2 {
      %c0_12 = arith.constant 0 : index
      %c0_13 = arith.constant 0 : index
      %25 = vector.load %arg2[%c0_12, %c0_13] : memref<16x32xbf16, #tpu.memory_space<vmem>>, vector<16x32xbf16>
      %26 = arith.extf %25 : vector<16x32xbf16> to vector<16x32xf32>
      %cst_14 = arith.constant dense<0.000000e+00> : vector<16xf32>
      %27 = vector.multi_reduction <add>, %26, %cst_14 [1] : vector<16x32xf32> to vector<16xf32>
      %28 = vector.shape_cast %27 : vector<16xf32> to vector<16x1xf32>
      %cst_15 = arith.constant 3.200000e+01 : f32
      %29 = vector.broadcast %cst_15 : f32 to vector<16x1xf32>
      %30 = arith.divf %28, %29 : vector<16x1xf32>
      %31 = vector.broadcast %30 : vector<16x1xf32> to vector<16x32xf32>
      %32 = arith.subf %26, %31 : vector<16x32xf32>
      %33 = arith.mulf %32, %32 : vector<16x32xf32>
      %cst_16 = arith.constant dense<0.000000e+00> : vector<16xf32>
      %34 = vector.multi_reduction <add>, %33, %cst_16 [1] : vector<16x32xf32> to vector<16xf32>
      %35 = vector.shape_cast %34 : vector<16xf32> to vector<16x1xf32>
      %cst_17 = arith.constant 3.200000e+01 : f32
      %36 = vector.broadcast %cst_17 : f32 to vector<16x1xf32>
      %37 = arith.divf %35, %36 : vector<16x1xf32>
      %38 = vector.broadcast %30 : vector<16x1xf32> to vector<16x32xf32>
      %39 = arith.subf %26, %38 : vector<16x32xf32>
      %cst_18 = arith.constant 9.99999996E-13 : f32
      %40 = vector.broadcast %cst_18 : f32 to vector<16x1xf32>
      %41 = arith.addf %37, %40 : vector<16x1xf32>
      %42 = math.rsqrt %41 : vector<16x1xf32>
      %43 = vector.broadcast %42 : vector<16x1xf32> to vector<16x32xf32>
      %44 = arith.mulf %39, %43 : vector<16x32xf32>
      %c0_19 = arith.constant 0 : index
      %c0_20 = arith.constant 0 : index
      %45 = vector.load %arg3[%c0_19, %c0_20] : memref<1x32xbf16, #tpu.memory_space<vmem>>, vector<1x32xbf16>
      %46 = arith.extf %45 : vector<1x32xbf16> to vector<1x32xf32>
      %47 = vector.broadcast %46 : vector<1x32xf32> to vector<16x32xf32>
      %48 = arith.mulf %44, %47 : vector<16x32xf32>
      %c0_21 = arith.constant 0 : index
      %c0_22 = arith.constant 0 : index
      %49 = vector.load %arg4[%c0_21, %c0_22] : memref<1x32xbf16, #tpu.memory_space<vmem>>, vector<1x32xbf16>
      %50 = arith.extf %49 : vector<1x32xbf16> to vector<1x32xf32>
      %51 = vector.broadcast %50 : vector<1x32xf32> to vector<16x32xf32>
      %52 = arith.addf %48, %51 : vector<16x32xf32>
      %53 = arith.truncf %52 : vector<16x32xf32> to vector<16x32xbf16>
      %c0_23 = arith.constant 0 : index
      %c0_24 = arith.constant 0 : index
      %54 = vector.load %arg8[%c0_23, %c0_24] : memref<16x32xbf16, #tpu.memory_space<vmem>>, vector<16x32xbf16>
      tpu.vector_store %arg8[%c0_23, %c0_24], %53 {strides = array<i32>} : memref<16x32xbf16, #tpu.memory_space<vmem>>, vector<16x32xbf16>,
    } else {
    }
    %c0 = arith.constant 0 : index
    %c0_1 = arith.constant 0 : index
    %3 = vector.load %arg8[%c0, %c0_1] : memref<16x32xbf16, #tpu.memory_space<vmem>>, vector<16x32xbf16>
    %c0_2 = arith.constant 0 : index
    %c0_3 = arith.constant 0 : index
    %4 = vector.load %arg5[%c0_2, %c0_3] : memref<32x128xbf16, #tpu.memory_space<vmem>>, vector<32x128xbf16>
    %cst = arith.constant dense<0.000000e+00> : vector<16x128xf32>
    %5 = tpu.matmul %3, %4, %cst {dimension_numbers = #tpu.dot_dimension_numbers<[1], [0], [0], [1], [0, 0, 1, 1], [], []>} : vector<16x32xbf16>, vector<32x128xbf16>, vector<16x128xf32> -> vector<16x128xf32>
    %c0_4 = arith.constant 0 : index
    %c0_5 = arith.constant 0 : index
    %6 = vector.load %arg6[%c0_4, %c0_5] : memref<1x128xbf16, #tpu.memory_space<vmem>>, vector<1x128xbf16>
    %7 = arith.extf %6 : vector<1x128xbf16> to vector<1x128xf32>
    %8 = vector.broadcast %7 : vector<1x128xf32> to vector<16x128xf32>
    %9 = arith.addf %5, %8 : vector<16x128xf32>
    %10 = arith.mulf %9, %9 : vector<16x128xf32>
    %11 = arith.mulf %9, %10 : vector<16x128xf32>
    %cst_6 = arith.constant 4.471500e-02 : f32
    %12 = vector.broadcast %cst_6 : f32 to vector<16x128xf32>
    %13 = arith.mulf %12, %11 : vector<16x128xf32>
    %14 = arith.addf %9, %13 : vector<16x128xf32>
    %cst_7 = arith.constant 0.797884583 : f32
    %15 = vector.broadcast %cst_7 : f32 to vector<16x128xf32>
    %16 = arith.mulf %15, %14 : vector<16x128xf32>
    %17 = math.tanh %16 : vector<16x128xf32>
    %cst_8 = arith.constant 1.000000e+00 : f32
    %18 = vector.broadcast %cst_8 : f32 to vector<16x128xf32>
    %19 = arith.addf %18, %17 : vector<16x128xf32>
    %cst_9 = arith.constant 5.000000e-01 : f32
    %20 = vector.broadcast %cst_9 : f32 to vector<16x128xf32>
    %21 = arith.mulf %20, %19 : vector<16x128xf32>
    %22 = arith.mulf %9, %21 : vector<16x128xf32>
    %23 = arith.truncf %22 : vector<16x128xf32> to vector<16x128xbf16>
    %c0_10 = arith.constant 0 : index
    %c0_11 = arith.constant 0 : index
    %24 = vector.load %arg7[%c0_10, %c0_11] : memref<16x128xbf16, #tpu.memory_space<vmem>>, vector<16x128xbf16>
    tpu.vector_store %arg7[%c0_10, %c0_11], %23 {strides = array<i32>} : memref<16x128xbf16, #tpu.memory_space<vmem>>, vector<16x128xbf16>,
    return
  }
  func.func @transform_0(%arg0: i32, %arg1: i32) -> (i32, i32) {
    %c0_i32 = arith.constant 0 : i32
    %c0_i32_0 = arith.constant 0 : i32
    return %arg0, %c0_i32 : i32, i32
  }
  func.func @transform_1(%arg0: i32, %arg1: i32) -> (i32, i32) {
    %c0_i32 = arith.constant 0 : i32
    %c0_i32_0 = arith.constant 0 : i32
    %c0_i32_1 = arith.constant 0 : i32
    return %c0_i32, %c0_i32_0 : i32, i32
  }
  func.func @transform_2(%arg0: i32, %arg1: i32) -> (i32, i32) {
    %c0_i32 = arith.constant 0 : i32
    %c0_i32_0 = arith.constant 0 : i32
    %c0_i32_1 = arith.constant 0 : i32
    return %c0_i32, %c0_i32_0 : i32, i32
  }
  func.func @transform_3(%arg0: i32, %arg1: i32) -> (i32, i32) {
    %c0_i32 = arith.constant 0 : i32
    %c0_i32_0 = arith.constant 0 : i32
    return %c0_i32, %arg1 : i32, i32
  }
  func.func @transform_4(%arg0: i32, %arg1: i32) -> (i32, i32) {
    %c0_i32 = arith.constant 0 : i32
    %c0_i32_0 = arith.constant 0 : i32
    return %c0_i32, %arg1 : i32, i32
  }
  func.func @transform_5(%arg0: i32, %arg1: i32) -> (i32, i32) {
    %c0_i32 = arith.constant 0 : i32
    return %arg0, %arg1 : i32, i32
  }
}

module attributes {stable_mosaic.version = 11 : i64} {
  func.func @_matmul_res_kernel(%arg0: i32, %arg1: i32, %arg2: i32, %arg3: memref<16x128xbf16, #tpu.memory_space<vmem>>, %arg4: memref<128x32xbf16, #tpu.memory_space<vmem>>, %arg5: memref<1x32xbf16, #tpu.memory_space<vmem>>, %arg6: memref<16x32xbf16, #tpu.memory_space<vmem>>, %arg7: memref<16x32xbf16, #tpu.memory_space<vmem>>, %arg8: memref<16x32xf32, #tpu.memory_space<vmem>>) attributes {dimension_semantics = [#tpu.dimension_semantics<parallel>, #tpu.dimension_semantics<parallel>, #tpu.dimension_semantics<arbitrary>], iteration_bounds = array<i64: 1, 1, 1>, scalar_prefetch = 0 : i64, scratch_operands = 1 : i64, tpu.core_type = #tpu.core_type<tc>, window_params = [{transform_indices = @transform_0, window_bounds = array<i64: 16, 128>}, {transform_indices = @transform_1, window_bounds = array<i64: 128, 32>}, {transform_indices = @transform_2, window_bounds = array<i64: 1, 32>}, {transform_indices = @transform_3, window_bounds = array<i64: 16, 32>}, {transform_indices = @transform_4, window_bounds = array<i64: 16, 32>}]} {
    %c0_i32 = arith.constant 0 : i32
    %0 = arith.cmpi eq, %arg2, %c0_i32 : i32
    %1 = arith.extui %0 : i1 to i32
    %c0_i32_0 = arith.constant 0 : i32
    %2 = arith.cmpi ne, %1, %c0_i32_0 : i32
    scf.if %2 {
      %cst_10 = arith.constant 0.000000e+00 : f32
      %12 = vector.broadcast %cst_10 : f32 to vector<16x32xf32>
      %c0_11 = arith.constant 0 : index
      %c0_12 = arith.constant 0 : index
      %13 = vector.load %arg8[%c0_11, %c0_12] : memref<16x32xf32, #tpu.memory_space<vmem>>, vector<16x32xf32>
      tpu.vector_store %arg8[%c0_11, %c0_12], %12 {strides = array<i32>} : memref<16x32xf32, #tpu.memory_space<vmem>>, vector<16x32xf32>,
    } else {
    }
    %c0 = arith.constant 0 : index
    %c0_1 = arith.constant 0 : index
    %3 = vector.load %arg8[%c0, %c0_1] : memref<16x32xf32, #tpu.memory_space<vmem>>, vector<16x32xf32>
    %c0_2 = arith.constant 0 : index
    %c0_3 = arith.constant 0 : index
    %4 = vector.load %arg3[%c0_2, %c0_3] : memref<16x128xbf16, #tpu.memory_space<vmem>>, vector<16x128xbf16>
    %c0_4 = arith.constant 0 : index
    %c0_5 = arith.constant 0 : index
    %5 = vector.load %arg4[%c0_4, %c0_5] : memref<128x32xbf16, #tpu.memory_space<vmem>>, vector<128x32xbf16>
    %cst = arith.constant dense<0.000000e+00> : vector<16x32xf32>
    %6 = tpu.matmul %4, %5, %cst {dimension_numbers = #tpu.dot_dimension_numbers<[1], [0], [0], [1], [0, 0, 1, 1], [], []>} : vector<16x128xbf16>, vector<128x32xbf16>, vector<16x32xf32> -> vector<16x32xf32>
    %7 = arith.addf %3, %6 : vector<16x32xf32>
    %c0_6 = arith.constant 0 : index
    %c0_7 = arith.constant 0 : index
    %8 = vector.load %arg8[%c0_6, %c0_7] : memref<16x32xf32, #tpu.memory_space<vmem>>, vector<16x32xf32>
    tpu.vector_store %arg8[%c0_6, %c0_7], %7 {strides = array<i32>} : memref<16x32xf32, #tpu.memory_space<vmem>>, vector<16x32xf32>,
    %c0_i32_8 = arith.constant 0 : i32
    %9 = arith.cmpi eq, %arg2, %c0_i32_8 : i32
    %10 = arith.extui %9 : i1 to i32
    %c0_i32_9 = arith.constant 0 : i32
    %11 = arith.cmpi ne, %10, %c0_i32_9 : i32
    scf.if %11 {
      %c0_10 = arith.constant 0 : index
      %c0_11 = arith.constant 0 : index
      %12 = vector.load %arg8[%c0_10, %c0_11] : memref<16x32xf32, #tpu.memory_space<vmem>>, vector<16x32xf32>
      %c0_12 = arith.constant 0 : index
      %c0_13 = arith.constant 0 : index
      %13 = vector.load %arg5[%c0_12, %c0_13] : memref<1x32xbf16, #tpu.memory_space<vmem>>, vector<1x32xbf16>
      %14 = arith.extf %13 : vector<1x32xbf16> to vector<1x32xf32>
      %15 = vector.broadcast %14 : vector<1x32xf32> to vector<16x32xf32>
      %16 = arith.addf %12, %15 : vector<16x32xf32>
      %c0_14 = arith.constant 0 : index
      %c0_15 = arith.constant 0 : index
      %17 = vector.load %arg6[%c0_14, %c0_15] : memref<16x32xbf16, #tpu.memory_space<vmem>>, vector<16x32xbf16>
      %18 = arith.extf %17 : vector<16x32xbf16> to vector<16x32xf32>
      %19 = arith.addf %16, %18 : vector<16x32xf32>
      %20 = arith.truncf %19 : vector<16x32xf32> to vector<16x32xbf16>
      %c0_16 = arith.constant 0 : index
      %c0_17 = arith.constant 0 : index
      %21 = vector.load %arg7[%c0_16, %c0_17] : memref<16x32xbf16, #tpu.memory_space<vmem>>, vector<16x32xbf16>
      tpu.vector_store %arg7[%c0_16, %c0_17], %20 {strides = array<i32>} : memref<16x32xbf16, #tpu.memory_space<vmem>>, vector<16x32xbf16>,
    } else {
    }
    return
  }
  func.func @transform_0(%arg0: i32, %arg1: i32, %arg2: i32) -> (i32, i32) {
    %c0_i32 = arith.constant 0 : i32
    return %arg0, %arg2 : i32, i32
  }
  func.func @transform_1(%arg0: i32, %arg1: i32, %arg2: i32) -> (i32, i32) {
    %c0_i32 = arith.constant 0 : i32
    return %arg2, %arg1 : i32, i32
  }
  func.func @transform_2(%arg0: i32, %arg1: i32, %arg2: i32) -> (i32, i32) {
    %c0_i32 = arith.constant 0 : i32
    %c0_i32_0 = arith.constant 0 : i32
    return %c0_i32, %arg1 : i32, i32
  }
  func.func @transform_3(%arg0: i32, %arg1: i32, %arg2: i32) -> (i32, i32) {
    %c0_i32 = arith.constant 0 : i32
    return %arg0, %arg1 : i32, i32
  }
  func.func @transform_4(%arg0: i32, %arg1: i32, %arg2: i32) -> (i32, i32) {
    %c0_i32 = arith.constant 0 : i32
    return %arg0, %arg1 : i32, i32
  }
}

module attributes {stable_mosaic.version = 11 : i64} {
  func.func @_head_kernel(%arg0: memref<2x8x32xbf16, #tpu.memory_space<vmem>>, %arg1: memref<1x32xbf16, #tpu.memory_space<vmem>>, %arg2: memref<1x32xbf16, #tpu.memory_space<vmem>>, %arg3: memref<32x128xbf16, #tpu.memory_space<vmem>>, %arg4: memref<1x128xbf16, #tpu.memory_space<vmem>>, %arg5: memref<2x128xf32, #tpu.memory_space<vmem>>) attributes {dimension_semantics = [], scalar_prefetch = 0 : i64, scratch_operands = 0 : i64, tpu.core_type = #tpu.core_type<tc>} {
    %c0 = arith.constant 0 : index
    %c0_0 = arith.constant 0 : index
    %c0_1 = arith.constant 0 : index
    %0 = vector.load %arg0[%c0, %c0_0, %c0_1] : memref<2x8x32xbf16, #tpu.memory_space<vmem>>, vector<2x8x32xbf16>
    %1 = arith.extf %0 : vector<2x8x32xbf16> to vector<2x8x32xf32>
    %cst = arith.constant dense<0.000000e+00> : vector<2x32xf32>
    %2 = vector.multi_reduction <add>, %1, %cst [1] : vector<2x8x32xf32> to vector<2x32xf32>
    %cst_2 = arith.constant 8.000000e+00 : f32
    %3 = vector.broadcast %cst_2 : f32 to vector<2x32xf32>
    %4 = arith.divf %2, %3 : vector<2x32xf32>
    %cst_3 = arith.constant dense<0.000000e+00> : vector<2xf32>
    %5 = vector.multi_reduction <add>, %4, %cst_3 [1] : vector<2x32xf32> to vector<2xf32>
    %6 = vector.shape_cast %5 : vector<2xf32> to vector<2x1xf32>
    %cst_4 = arith.constant 3.200000e+01 : f32
    %7 = vector.broadcast %cst_4 : f32 to vector<2x1xf32>
    %8 = arith.divf %6, %7 : vector<2x1xf32>
    %9 = vector.broadcast %8 : vector<2x1xf32> to vector<2x32xf32>
    %10 = arith.subf %4, %9 : vector<2x32xf32>
    %11 = arith.mulf %10, %10 : vector<2x32xf32>
    %cst_5 = arith.constant dense<0.000000e+00> : vector<2xf32>
    %12 = vector.multi_reduction <add>, %11, %cst_5 [1] : vector<2x32xf32> to vector<2xf32>
    %13 = vector.shape_cast %12 : vector<2xf32> to vector<2x1xf32>
    %cst_6 = arith.constant 3.200000e+01 : f32
    %14 = vector.broadcast %cst_6 : f32 to vector<2x1xf32>
    %15 = arith.divf %13, %14 : vector<2x1xf32>
    %16 = vector.broadcast %8 : vector<2x1xf32> to vector<2x32xf32>
    %17 = arith.subf %4, %16 : vector<2x32xf32>
    %cst_7 = arith.constant 9.99999996E-13 : f32
    %18 = vector.broadcast %cst_7 : f32 to vector<2x1xf32>
    %19 = arith.addf %15, %18 : vector<2x1xf32>
    %20 = math.rsqrt %19 : vector<2x1xf32>
    %21 = vector.broadcast %20 : vector<2x1xf32> to vector<2x32xf32>
    %22 = arith.mulf %17, %21 : vector<2x32xf32>
    %c0_8 = arith.constant 0 : index
    %c0_9 = arith.constant 0 : index
    %23 = vector.load %arg1[%c0_8, %c0_9] : memref<1x32xbf16, #tpu.memory_space<vmem>>, vector<1x32xbf16>
    %24 = arith.extf %23 : vector<1x32xbf16> to vector<1x32xf32>
    %25 = vector.broadcast %24 : vector<1x32xf32> to vector<2x32xf32>
    %26 = arith.mulf %22, %25 : vector<2x32xf32>
    %c0_10 = arith.constant 0 : index
    %c0_11 = arith.constant 0 : index
    %27 = vector.load %arg2[%c0_10, %c0_11] : memref<1x32xbf16, #tpu.memory_space<vmem>>, vector<1x32xbf16>
    %28 = arith.extf %27 : vector<1x32xbf16> to vector<1x32xf32>
    %29 = vector.broadcast %28 : vector<1x32xf32> to vector<2x32xf32>
    %30 = arith.addf %26, %29 : vector<2x32xf32>
    %31 = arith.truncf %30 : vector<2x32xf32> to vector<2x32xbf16>
    %c0_12 = arith.constant 0 : index
    %c0_13 = arith.constant 0 : index
    %32 = vector.load %arg3[%c0_12, %c0_13] : memref<32x128xbf16, #tpu.memory_space<vmem>>, vector<32x128xbf16>
    %cst_14 = arith.constant dense<0.000000e+00> : vector<2x128xf32>
    %33 = tpu.matmul %31, %32, %cst_14 {dimension_numbers = #tpu.dot_dimension_numbers<[1], [0], [0], [1], [0, 0, 1, 1], [], []>} : vector<2x32xbf16>, vector<32x128xbf16>, vector<2x128xf32> -> vector<2x128xf32>
    %c0_15 = arith.constant 0 : index
    %c0_16 = arith.constant 0 : index
    %34 = vector.load %arg4[%c0_15, %c0_16] : memref<1x128xbf16, #tpu.memory_space<vmem>>, vector<1x128xbf16>
    %35 = arith.extf %34 : vector<1x128xbf16> to vector<1x128xf32>
    %36 = vector.broadcast %35 : vector<1x128xf32> to vector<2x128xf32>
    %37 = arith.addf %33, %36 : vector<2x128xf32>
    %c0_17 = arith.constant 0 : index
    %c0_18 = arith.constant 0 : index
    %38 = vector.load %arg5[%c0_17, %c0_18] : memref<2x128xf32, #tpu.memory_space<vmem>>, vector<2x128xf32>
    tpu.vector_store %arg5[%c0_17, %c0_18], %37 {strides = array<i32>} : memref<2x128xf32, #tpu.memory_space<vmem>>, vector<2x128xf32>,
    return
  }
}

module attributes {stable_mosaic.version = 11 : i64} {
  func.func @_matmul_res_kernel(%arg0: i32, %arg1: i32, %arg2: i32, %arg3: memref<16x384xbf16, #tpu.memory_space<vmem>>, %arg4: memref<384x64xbf16, #tpu.memory_space<vmem>>, %arg5: memref<1x64xbf16, #tpu.memory_space<vmem>>, %arg6: memref<16x64xbf16, #tpu.memory_space<vmem>>, %arg7: memref<16x64xbf16, #tpu.memory_space<vmem>>, %arg8: memref<16x64xf32, #tpu.memory_space<vmem>>) attributes {dimension_semantics = [#tpu.dimension_semantics<parallel>, #tpu.dimension_semantics<parallel>, #tpu.dimension_semantics<arbitrary>], iteration_bounds = array<i64: 1, 1, 1>, scalar_prefetch = 0 : i64, scratch_operands = 1 : i64, tpu.core_type = #tpu.core_type<tc>, window_params = [{transform_indices = @transform_0, window_bounds = array<i64: 16, 384>}, {transform_indices = @transform_1, window_bounds = array<i64: 384, 64>}, {transform_indices = @transform_2, window_bounds = array<i64: 1, 64>}, {transform_indices = @transform_3, window_bounds = array<i64: 16, 64>}, {transform_indices = @transform_4, window_bounds = array<i64: 16, 64>}]} {
    %c0_i32 = arith.constant 0 : i32
    %0 = arith.cmpi eq, %arg2, %c0_i32 : i32
    %1 = arith.extui %0 : i1 to i32
    %c0_i32_0 = arith.constant 0 : i32
    %2 = arith.cmpi ne, %1, %c0_i32_0 : i32
    scf.if %2 {
      %cst_10 = arith.constant 0.000000e+00 : f32
      %12 = vector.broadcast %cst_10 : f32 to vector<16x64xf32>
      %c0_11 = arith.constant 0 : index
      %c0_12 = arith.constant 0 : index
      %13 = vector.load %arg8[%c0_11, %c0_12] : memref<16x64xf32, #tpu.memory_space<vmem>>, vector<16x64xf32>
      tpu.vector_store %arg8[%c0_11, %c0_12], %12 {strides = array<i32>} : memref<16x64xf32, #tpu.memory_space<vmem>>, vector<16x64xf32>,
    } else {
    }
    %c0 = arith.constant 0 : index
    %c0_1 = arith.constant 0 : index
    %3 = vector.load %arg8[%c0, %c0_1] : memref<16x64xf32, #tpu.memory_space<vmem>>, vector<16x64xf32>
    %c0_2 = arith.constant 0 : index
    %c0_3 = arith.constant 0 : index
    %4 = vector.load %arg3[%c0_2, %c0_3] : memref<16x384xbf16, #tpu.memory_space<vmem>>, vector<16x384xbf16>
    %c0_4 = arith.constant 0 : index
    %c0_5 = arith.constant 0 : index
    %5 = vector.load %arg4[%c0_4, %c0_5] : memref<384x64xbf16, #tpu.memory_space<vmem>>, vector<384x64xbf16>
    %cst = arith.constant dense<0.000000e+00> : vector<16x64xf32>
    %6 = tpu.matmul %4, %5, %cst {dimension_numbers = #tpu.dot_dimension_numbers<[1], [0], [0], [1], [0, 0, 1, 1], [], []>} : vector<16x384xbf16>, vector<384x64xbf16>, vector<16x64xf32> -> vector<16x64xf32>
    %7 = arith.addf %3, %6 : vector<16x64xf32>
    %c0_6 = arith.constant 0 : index
    %c0_7 = arith.constant 0 : index
    %8 = vector.load %arg8[%c0_6, %c0_7] : memref<16x64xf32, #tpu.memory_space<vmem>>, vector<16x64xf32>
    tpu.vector_store %arg8[%c0_6, %c0_7], %7 {strides = array<i32>} : memref<16x64xf32, #tpu.memory_space<vmem>>, vector<16x64xf32>,
    %c0_i32_8 = arith.constant 0 : i32
    %9 = arith.cmpi eq, %arg2, %c0_i32_8 : i32
    %10 = arith.extui %9 : i1 to i32
    %c0_i32_9 = arith.constant 0 : i32
    %11 = arith.cmpi ne, %10, %c0_i32_9 : i32
    scf.if %11 {
      %c0_10 = arith.constant 0 : index
      %c0_11 = arith.constant 0 : index
      %12 = vector.load %arg8[%c0_10, %c0_11] : memref<16x64xf32, #tpu.memory_space<vmem>>, vector<16x64xf32>
      %c0_12 = arith.constant 0 : index
      %c0_13 = arith.constant 0 : index
      %13 = vector.load %arg5[%c0_12, %c0_13] : memref<1x64xbf16, #tpu.memory_space<vmem>>, vector<1x64xbf16>
      %14 = arith.extf %13 : vector<1x64xbf16> to vector<1x64xf32>
      %15 = vector.broadcast %14 : vector<1x64xf32> to vector<16x64xf32>
      %16 = arith.addf %12, %15 : vector<16x64xf32>
      %c0_14 = arith.constant 0 : index
      %c0_15 = arith.constant 0 : index
      %17 = vector.load %arg6[%c0_14, %c0_15] : memref<16x64xbf16, #tpu.memory_space<vmem>>, vector<16x64xbf16>
      %18 = arith.extf %17 : vector<16x64xbf16> to vector<16x64xf32>
      %19 = arith.addf %16, %18 : vector<16x64xf32>
      %20 = arith.truncf %19 : vector<16x64xf32> to vector<16x64xbf16>
      %c0_16 = arith.constant 0 : index
      %c0_17 = arith.constant 0 : index
      %21 = vector.load %arg7[%c0_16, %c0_17] : memref<16x64xbf16, #tpu.memory_space<vmem>>, vector<16x64xbf16>
      tpu.vector_store %arg7[%c0_16, %c0_17], %20 {strides = array<i32>} : memref<16x64xbf16, #tpu.memory_space<vmem>>, vector<16x64xbf16>,
    } else {
    }
    return
  }
  func.func @transform_0(%arg0: i32, %arg1: i32, %arg2: i32) -> (i32, i32) {
    %c0_i32 = arith.constant 0 : i32
    return %arg0, %arg2 : i32, i32
  }
  func.func @transform_1(%arg0: i32, %arg1: i32, %arg2: i32) -> (i32, i32) {
    %c0_i32 = arith.constant 0 : i32
    return %arg2, %arg1 : i32, i32
  }
  func.func @transform_2(%arg0: i32, %arg1: i32, %arg2: i32) -> (i32, i32) {
    %c0_i32 = arith.constant 0 : i32
    %c0_i32_0 = arith.constant 0 : i32
    return %c0_i32, %arg1 : i32, i32
  }
  func.func @transform_3(%arg0: i32, %arg1: i32, %arg2: i32) -> (i32, i32) {
    %c0_i32 = arith.constant 0 : i32
    return %arg0, %arg1 : i32, i32
  }
  func.func @transform_4(%arg0: i32, %arg1: i32, %arg2: i32) -> (i32, i32) {
    %c0_i32 = arith.constant 0 : i32
    return %arg0, %arg1 : i32, i32
  }
}

module attributes {stable_mosaic.version = 11 : i64} {
  func.func @_ln_matmul_kernel(%arg0: i32, %arg1: i32, %arg2: memref<16x64xbf16, #tpu.memory_space<vmem>>, %arg3: memref<1x64xbf16, #tpu.memory_space<vmem>>, %arg4: memref<1x64xbf16, #tpu.memory_space<vmem>>, %arg5: memref<64x192xbf16, #tpu.memory_space<vmem>>, %arg6: memref<1x192xbf16, #tpu.memory_space<vmem>>, %arg7: memref<16x192xbf16, #tpu.memory_space<vmem>>, %arg8: memref<16x64xbf16, #tpu.memory_space<vmem>>) attributes {dimension_semantics = [#tpu.dimension_semantics<parallel>, #tpu.dimension_semantics<arbitrary>], iteration_bounds = array<i64: 1, 1>, scalar_prefetch = 0 : i64, scratch_operands = 1 : i64, tpu.core_type = #tpu.core_type<tc>, window_params = [{transform_indices = @transform_0, window_bounds = array<i64: 16, 64>}, {pipeline_mode = #tpu.pipeline_mode<synchronous>, transform_indices = @transform_1, window_bounds = array<i64: 1, 64>}, {pipeline_mode = #tpu.pipeline_mode<synchronous>, transform_indices = @transform_2, window_bounds = array<i64: 1, 64>}, {transform_indices = @transform_3, window_bounds = array<i64: 64, 192>}, {transform_indices = @transform_4, window_bounds = array<i64: 1, 192>}, {transform_indices = @transform_5, window_bounds = array<i64: 16, 192>}]} {
    %c0_i32 = arith.constant 0 : i32
    %0 = arith.cmpi eq, %arg1, %c0_i32 : i32
    %1 = arith.extui %0 : i1 to i32
    %c0_i32_0 = arith.constant 0 : i32
    %2 = arith.cmpi ne, %1, %c0_i32_0 : i32
    scf.if %2 {
      %c0_8 = arith.constant 0 : index
      %c0_9 = arith.constant 0 : index
      %12 = vector.load %arg2[%c0_8, %c0_9] : memref<16x64xbf16, #tpu.memory_space<vmem>>, vector<16x64xbf16>
      %13 = arith.extf %12 : vector<16x64xbf16> to vector<16x64xf32>
      %cst_10 = arith.constant dense<0.000000e+00> : vector<16xf32>
      %14 = vector.multi_reduction <add>, %13, %cst_10 [1] : vector<16x64xf32> to vector<16xf32>
      %15 = vector.shape_cast %14 : vector<16xf32> to vector<16x1xf32>
      %cst_11 = arith.constant 6.400000e+01 : f32
      %16 = vector.broadcast %cst_11 : f32 to vector<16x1xf32>
      %17 = arith.divf %15, %16 : vector<16x1xf32>
      %18 = vector.broadcast %17 : vector<16x1xf32> to vector<16x64xf32>
      %19 = arith.subf %13, %18 : vector<16x64xf32>
      %20 = arith.mulf %19, %19 : vector<16x64xf32>
      %cst_12 = arith.constant dense<0.000000e+00> : vector<16xf32>
      %21 = vector.multi_reduction <add>, %20, %cst_12 [1] : vector<16x64xf32> to vector<16xf32>
      %22 = vector.shape_cast %21 : vector<16xf32> to vector<16x1xf32>
      %cst_13 = arith.constant 6.400000e+01 : f32
      %23 = vector.broadcast %cst_13 : f32 to vector<16x1xf32>
      %24 = arith.divf %22, %23 : vector<16x1xf32>
      %25 = vector.broadcast %17 : vector<16x1xf32> to vector<16x64xf32>
      %26 = arith.subf %13, %25 : vector<16x64xf32>
      %cst_14 = arith.constant 9.99999996E-13 : f32
      %27 = vector.broadcast %cst_14 : f32 to vector<16x1xf32>
      %28 = arith.addf %24, %27 : vector<16x1xf32>
      %29 = math.rsqrt %28 : vector<16x1xf32>
      %30 = vector.broadcast %29 : vector<16x1xf32> to vector<16x64xf32>
      %31 = arith.mulf %26, %30 : vector<16x64xf32>
      %c0_15 = arith.constant 0 : index
      %c0_16 = arith.constant 0 : index
      %32 = vector.load %arg3[%c0_15, %c0_16] : memref<1x64xbf16, #tpu.memory_space<vmem>>, vector<1x64xbf16>
      %33 = arith.extf %32 : vector<1x64xbf16> to vector<1x64xf32>
      %34 = vector.broadcast %33 : vector<1x64xf32> to vector<16x64xf32>
      %35 = arith.mulf %31, %34 : vector<16x64xf32>
      %c0_17 = arith.constant 0 : index
      %c0_18 = arith.constant 0 : index
      %36 = vector.load %arg4[%c0_17, %c0_18] : memref<1x64xbf16, #tpu.memory_space<vmem>>, vector<1x64xbf16>
      %37 = arith.extf %36 : vector<1x64xbf16> to vector<1x64xf32>
      %38 = vector.broadcast %37 : vector<1x64xf32> to vector<16x64xf32>
      %39 = arith.addf %35, %38 : vector<16x64xf32>
      %40 = arith.truncf %39 : vector<16x64xf32> to vector<16x64xbf16>
      %c0_19 = arith.constant 0 : index
      %c0_20 = arith.constant 0 : index
      %41 = vector.load %arg8[%c0_19, %c0_20] : memref<16x64xbf16, #tpu.memory_space<vmem>>, vector<16x64xbf16>
      tpu.vector_store %arg8[%c0_19, %c0_20], %40 {strides = array<i32>} : memref<16x64xbf16, #tpu.memory_space<vmem>>, vector<16x64xbf16>,
    } else {
    }
    %c0 = arith.constant 0 : index
    %c0_1 = arith.constant 0 : index
    %3 = vector.load %arg8[%c0, %c0_1] : memref<16x64xbf16, #tpu.memory_space<vmem>>, vector<16x64xbf16>
    %c0_2 = arith.constant 0 : index
    %c0_3 = arith.constant 0 : index
    %4 = vector.load %arg5[%c0_2, %c0_3] : memref<64x192xbf16, #tpu.memory_space<vmem>>, vector<64x192xbf16>
    %cst = arith.constant dense<0.000000e+00> : vector<16x192xf32>
    %5 = tpu.matmul %3, %4, %cst {dimension_numbers = #tpu.dot_dimension_numbers<[1], [0], [0], [1], [0, 0, 1, 1], [], []>} : vector<16x64xbf16>, vector<64x192xbf16>, vector<16x192xf32> -> vector<16x192xf32>
    %c0_4 = arith.constant 0 : index
    %c0_5 = arith.constant 0 : index
    %6 = vector.load %arg6[%c0_4, %c0_5] : memref<1x192xbf16, #tpu.memory_space<vmem>>, vector<1x192xbf16>
    %7 = arith.extf %6 : vector<1x192xbf16> to vector<1x192xf32>
    %8 = vector.broadcast %7 : vector<1x192xf32> to vector<16x192xf32>
    %9 = arith.addf %5, %8 : vector<16x192xf32>
    %10 = arith.truncf %9 : vector<16x192xf32> to vector<16x192xbf16>
    %c0_6 = arith.constant 0 : index
    %c0_7 = arith.constant 0 : index
    %11 = vector.load %arg7[%c0_6, %c0_7] : memref<16x192xbf16, #tpu.memory_space<vmem>>, vector<16x192xbf16>
    tpu.vector_store %arg7[%c0_6, %c0_7], %10 {strides = array<i32>} : memref<16x192xbf16, #tpu.memory_space<vmem>>, vector<16x192xbf16>,
    return
  }
  func.func @transform_0(%arg0: i32, %arg1: i32) -> (i32, i32) {
    %c0_i32 = arith.constant 0 : i32
    %c0_i32_0 = arith.constant 0 : i32
    return %arg0, %c0_i32 : i32, i32
  }
  func.func @transform_1(%arg0: i32, %arg1: i32) -> (i32, i32) {
    %c0_i32 = arith.constant 0 : i32
    %c0_i32_0 = arith.constant 0 : i32
    %c0_i32_1 = arith.constant 0 : i32
    return %c0_i32, %c0_i32_0 : i32, i32
  }
  func.func @transform_2(%arg0: i32, %arg1: i32) -> (i32, i32) {
    %c0_i32 = arith.constant 0 : i32
    %c0_i32_0 = arith.constant 0 : i32
    %c0_i32_1 = arith.constant 0 : i32
    return %c0_i32, %c0_i32_0 : i32, i32
  }
  func.func @transform_3(%arg0: i32, %arg1: i32) -> (i32, i32) {
    %c0_i32 = arith.constant 0 : i32
    %c0_i32_0 = arith.constant 0 : i32
    return %c0_i32, %arg1 : i32, i32
  }
  func.func @transform_4(%arg0: i32, %arg1: i32) -> (i32, i32) {
    %c0_i32 = arith.constant 0 : i32
    %c0_i32_0 = arith.constant 0 : i32
    return %c0_i32, %arg1 : i32, i32
  }
  func.func @transform_5(%arg0: i32, %arg1: i32) -> (i32, i32) {
    %c0_i32 = arith.constant 0 : i32
    return %arg0, %arg1 : i32, i32
  }
}

module attributes {stable_mosaic.version = 11 : i64} {
  func.func @_attention_kernel(%arg0: i32, %arg1: i32, %arg2: memref<1x1x3x8x16xbf16, #tpu.memory_space<vmem>>, %arg3: memref<1x1x8x16xbf16, #tpu.memory_space<vmem>>, %arg4: memref<1x1x8x8xbf16, #tpu.memory_space<vmem>>) attributes {dimension_semantics = [#tpu.dimension_semantics<parallel>, #tpu.dimension_semantics<parallel>], iteration_bounds = array<i64: 2, 4>, scalar_prefetch = 0 : i64, scratch_operands = 0 : i64, tpu.core_type = #tpu.core_type<tc>, window_params = [{transform_indices = @transform_0, window_bounds = array<i64: 1, 1, 3, 8, 16>}, {transform_indices = @transform_1, window_bounds = array<i64: 1, 1, 8, 16>}, {transform_indices = @transform_2, window_bounds = array<i64: 1, 1, 8, 8>}]} {
    %c0 = arith.constant 0 : index
    %c0_0 = arith.constant 0 : index
    %c0_1 = arith.constant 0 : index
    %c0_2 = arith.constant 0 : index
    %c0_3 = arith.constant 0 : index
    %0 = vector.load %arg2[%c0, %c0_0, %c0_1, %c0_2, %c0_3] : memref<1x1x3x8x16xbf16, #tpu.memory_space<vmem>>, vector<1x1x1x8x16xbf16>
    %1 = vector.shape_cast %0 : vector<1x1x1x8x16xbf16> to vector<8x16xbf16>
    %c0_4 = arith.constant 0 : index
    %c0_5 = arith.constant 0 : index
    %c1 = arith.constant 1 : index
    %c0_6 = arith.constant 0 : index
    %c0_7 = arith.constant 0 : index
    %2 = vector.load %arg2[%c0_4, %c0_5, %c1, %c0_6, %c0_7] : memref<1x1x3x8x16xbf16, #tpu.memory_space<vmem>>, vector<1x1x1x8x16xbf16>
    %3 = vector.shape_cast %2 : vector<1x1x1x8x16xbf16> to vector<8x16xbf16>
    %c0_8 = arith.constant 0 : index
    %c0_9 = arith.constant 0 : index
    %c2 = arith.constant 2 : index
    %c0_10 = arith.constant 0 : index
    %c0_11 = arith.constant 0 : index
    %4 = vector.load %arg2[%c0_8, %c0_9, %c2, %c0_10, %c0_11] : memref<1x1x3x8x16xbf16, #tpu.memory_space<vmem>>, vector<1x1x1x8x16xbf16>
    %5 = vector.shape_cast %4 : vector<1x1x1x8x16xbf16> to vector<8x16xbf16>
    %cst = arith.constant dense<0.000000e+00> : vector<8x8xf32>
    %6 = tpu.matmul %1, %3, %cst {dimension_numbers = #tpu.dot_dimension_numbers<[1], [1], [0], [0], [0, 0, 1, 0], [], []>} : vector<8x16xbf16>, vector<8x16xbf16>, vector<8x8xf32> -> vector<8x8xf32>
    %cst_12 = arith.constant 2.500000e-01 : f32
    %7 = vector.broadcast %cst_12 : f32 to vector<8x8xf32>
    %8 = arith.mulf %6, %7 : vector<8x8xf32>
    %cst_13 = arith.constant dense<0xFF800000> : vector<8xf32>
    %9 = vector.multi_reduction <maximumf>, %8, %cst_13 [1] : vector<8x8xf32> to vector<8xf32>
    %10 = vector.shape_cast %9 : vector<8xf32> to vector<8x1xf32>
    %11 = vector.broadcast %10 : vector<8x1xf32> to vector<8x8xf32>
    %12 = arith.subf %8, %11 : vector<8x8xf32>
    %13 = math.exp %12 : vector<8x8xf32>
    %cst_14 = arith.constant dense<0.000000e+00> : vector<8xf32>
    %14 = vector.multi_reduction <add>, %13, %cst_14 [1] : vector<8x8xf32> to vector<8xf32>
    %15 = vector.shape_cast %14 : vector<8xf32> to vector<8x1xf32>
    %16 = vector.broadcast %15 : vector<8x1xf32> to vector<8x8xf32>
    %17 = arith.divf %13, %16 : vector<8x8xf32>
    %18 = arith.truncf %17 : vector<8x8xf32> to vector<8x8xbf16>
    %c0_15 = arith.constant 0 : index
    %c0_16 = arith.constant 0 : index
    %c0_17 = arith.constant 0 : index
    %c0_18 = arith.constant 0 : index
    %19 = vector.load %arg4[%c0_15, %c0_16, %c0_17, %c0_18] : memref<1x1x8x8xbf16, #tpu.memory_space<vmem>>, vector<1x1x8x8xbf16>
    %20 = vector.shape_cast %19 : vector<1x1x8x8xbf16> to vector<8x8xbf16>
    %21 = vector.shape_cast %18 : vector<8x8xbf16> to vector<1x1x8x8xbf16>
    tpu.vector_store %arg4[%c0_15, %c0_16, %c0_17, %c0_18], %21 {strides = array<i32>} : memref<1x1x8x8xbf16, #tpu.memory_space<vmem>>, vector<1x1x8x8xbf16>,
    %cst_19 = arith.constant dense<0.000000e+00> : vector<8x16xf32>
    %22 = tpu.matmul %18, %5, %cst_19 {dimension_numbers = #tpu.dot_dimension_numbers<[1], [0], [0], [1], [0, 0, 1, 1], [], []>} : vector<8x8xbf16>, vector<8x16xbf16>, vector<8x16xf32> -> vector<8x16xf32>
    %23 = arith.truncf %22 : vector<8x16xf32> to vector<8x16xbf16>
    %c0_20 = arith.constant 0 : index
    %c0_21 = arith.constant 0 : index
    %c0_22 = arith.constant 0 : index
    %c0_23 = arith.constant 0 : index
    %24 = vector.load %arg3[%c0_20, %c0_21, %c0_22, %c0_23] : memref<1x1x8x16xbf16, #tpu.memory_space<vmem>>, vector<1x1x8x16xbf16>
    %25 = vector.shape_cast %24 : vector<1x1x8x16xbf16> to vector<8x16xbf16>
    %26 = vector.shape_cast %23 : vector<8x16xbf16> to vector<1x1x8x16xbf16>
    tpu.vector_store %arg3[%c0_20, %c0_21, %c0_22, %c0_23], %26 {strides = array<i32>} : memref<1x1x8x16xbf16, #tpu.memory_space<vmem>>, vector<1x1x8x16xbf16>,
    return
  }
  func.func @transform_0(%arg0: i32, %arg1: i32) -> (i32, i32, i32, i32, i32) {
    %c0_i32 = arith.constant 0 : i32
    %c0_i32_0 = arith.constant 0 : i32
    %c0_i32_1 = arith.constant 0 : i32
    %c0_i32_2 = arith.constant 0 : i32
    return %arg0, %arg1, %c0_i32, %c0_i32_0, %c0_i32_1 : i32, i32, i32, i32, i32
  }
  func.func @transform_1(%arg0: i32, %arg1: i32) -> (i32, i32, i32, i32) {
    %c0_i32 = arith.constant 0 : i32
    %c0_i32_0 = arith.constant 0 : i32
    %c0_i32_1 = arith.constant 0 : i32
    return %arg0, %arg1, %c0_i32, %c0_i32_0 : i32, i32, i32, i32
  }
  func.func @transform_2(%arg0: i32, %arg1: i32) -> (i32, i32, i32, i32) {
    %c0_i32 = arith.constant 0 : i32
    %c0_i32_0 = arith.constant 0 : i32
    %c0_i32_1 = arith.constant 0 : i32
    return %arg0, %arg1, %c0_i32, %c0_i32_0 : i32, i32, i32, i32
  }
}

module attributes {stable_mosaic.version = 11 : i64} {
  func.func @_matmul_res_kernel(%arg0: i32, %arg1: i32, %arg2: i32, %arg3: memref<16x64xbf16, #tpu.memory_space<vmem>>, %arg4: memref<64x64xbf16, #tpu.memory_space<vmem>>, %arg5: memref<1x64xbf16, #tpu.memory_space<vmem>>, %arg6: memref<16x64xbf16, #tpu.memory_space<vmem>>, %arg7: memref<16x64xbf16, #tpu.memory_space<vmem>>, %arg8: memref<16x64xf32, #tpu.memory_space<vmem>>) attributes {dimension_semantics = [#tpu.dimension_semantics<parallel>, #tpu.dimension_semantics<parallel>, #tpu.dimension_semantics<arbitrary>], iteration_bounds = array<i64: 1, 1, 1>, scalar_prefetch = 0 : i64, scratch_operands = 1 : i64, tpu.core_type = #tpu.core_type<tc>, window_params = [{transform_indices = @transform_0, window_bounds = array<i64: 16, 64>}, {transform_indices = @transform_1, window_bounds = array<i64: 64, 64>}, {transform_indices = @transform_2, window_bounds = array<i64: 1, 64>}, {transform_indices = @transform_3, window_bounds = array<i64: 16, 64>}, {transform_indices = @transform_4, window_bounds = array<i64: 16, 64>}]} {
    %c0_i32 = arith.constant 0 : i32
    %0 = arith.cmpi eq, %arg2, %c0_i32 : i32
    %1 = arith.extui %0 : i1 to i32
    %c0_i32_0 = arith.constant 0 : i32
    %2 = arith.cmpi ne, %1, %c0_i32_0 : i32
    scf.if %2 {
      %cst_10 = arith.constant 0.000000e+00 : f32
      %12 = vector.broadcast %cst_10 : f32 to vector<16x64xf32>
      %c0_11 = arith.constant 0 : index
      %c0_12 = arith.constant 0 : index
      %13 = vector.load %arg8[%c0_11, %c0_12] : memref<16x64xf32, #tpu.memory_space<vmem>>, vector<16x64xf32>
      tpu.vector_store %arg8[%c0_11, %c0_12], %12 {strides = array<i32>} : memref<16x64xf32, #tpu.memory_space<vmem>>, vector<16x64xf32>,
    } else {
    }
    %c0 = arith.constant 0 : index
    %c0_1 = arith.constant 0 : index
    %3 = vector.load %arg8[%c0, %c0_1] : memref<16x64xf32, #tpu.memory_space<vmem>>, vector<16x64xf32>
    %c0_2 = arith.constant 0 : index
    %c0_3 = arith.constant 0 : index
    %4 = vector.load %arg3[%c0_2, %c0_3] : memref<16x64xbf16, #tpu.memory_space<vmem>>, vector<16x64xbf16>
    %c0_4 = arith.constant 0 : index
    %c0_5 = arith.constant 0 : index
    %5 = vector.load %arg4[%c0_4, %c0_5] : memref<64x64xbf16, #tpu.memory_space<vmem>>, vector<64x64xbf16>
    %cst = arith.constant dense<0.000000e+00> : vector<16x64xf32>
    %6 = tpu.matmul %4, %5, %cst {dimension_numbers = #tpu.dot_dimension_numbers<[1], [0], [0], [1], [0, 0, 1, 1], [], []>} : vector<16x64xbf16>, vector<64x64xbf16>, vector<16x64xf32> -> vector<16x64xf32>
    %7 = arith.addf %3, %6 : vector<16x64xf32>
    %c0_6 = arith.constant 0 : index
    %c0_7 = arith.constant 0 : index
    %8 = vector.load %arg8[%c0_6, %c0_7] : memref<16x64xf32, #tpu.memory_space<vmem>>, vector<16x64xf32>
    tpu.vector_store %arg8[%c0_6, %c0_7], %7 {strides = array<i32>} : memref<16x64xf32, #tpu.memory_space<vmem>>, vector<16x64xf32>,
    %c0_i32_8 = arith.constant 0 : i32
    %9 = arith.cmpi eq, %arg2, %c0_i32_8 : i32
    %10 = arith.extui %9 : i1 to i32
    %c0_i32_9 = arith.constant 0 : i32
    %11 = arith.cmpi ne, %10, %c0_i32_9 : i32
    scf.if %11 {
      %c0_10 = arith.constant 0 : index
      %c0_11 = arith.constant 0 : index
      %12 = vector.load %arg8[%c0_10, %c0_11] : memref<16x64xf32, #tpu.memory_space<vmem>>, vector<16x64xf32>
      %c0_12 = arith.constant 0 : index
      %c0_13 = arith.constant 0 : index
      %13 = vector.load %arg5[%c0_12, %c0_13] : memref<1x64xbf16, #tpu.memory_space<vmem>>, vector<1x64xbf16>
      %14 = arith.extf %13 : vector<1x64xbf16> to vector<1x64xf32>
      %15 = vector.broadcast %14 : vector<1x64xf32> to vector<16x64xf32>
      %16 = arith.addf %12, %15 : vector<16x64xf32>
      %c0_14 = arith.constant 0 : index
      %c0_15 = arith.constant 0 : index
      %17 = vector.load %arg6[%c0_14, %c0_15] : memref<16x64xbf16, #tpu.memory_space<vmem>>, vector<16x64xbf16>
      %18 = arith.extf %17 : vector<16x64xbf16> to vector<16x64xf32>
      %19 = arith.addf %16, %18 : vector<16x64xf32>
      %20 = arith.truncf %19 : vector<16x64xf32> to vector<16x64xbf16>
      %c0_16 = arith.constant 0 : index
      %c0_17 = arith.constant 0 : index
      %21 = vector.load %arg7[%c0_16, %c0_17] : memref<16x64xbf16, #tpu.memory_space<vmem>>, vector<16x64xbf16>
      tpu.vector_store %arg7[%c0_16, %c0_17], %20 {strides = array<i32>} : memref<16x64xbf16, #tpu.memory_space<vmem>>, vector<16x64xbf16>,
    } else {
    }
    return
  }
  func.func @transform_0(%arg0: i32, %arg1: i32, %arg2: i32) -> (i32, i32) {
    %c0_i32 = arith.constant 0 : i32
    return %arg0, %arg2 : i32, i32
  }
  func.func @transform_1(%arg0: i32, %arg1: i32, %arg2: i32) -> (i32, i32) {
    %c0_i32 = arith.constant 0 : i32
    return %arg2, %arg1 : i32, i32
  }
  func.func @transform_2(%arg0: i32, %arg1: i32, %arg2: i32) -> (i32, i32) {
    %c0_i32 = arith.constant 0 : i32
    %c0_i32_0 = arith.constant 0 : i32
    return %c0_i32, %arg1 : i32, i32
  }
  func.func @transform_3(%arg0: i32, %arg1: i32, %arg2: i32) -> (i32, i32) {
    %c0_i32 = arith.constant 0 : i32
    return %arg0, %arg1 : i32, i32
  }
  func.func @transform_4(%arg0: i32, %arg1: i32, %arg2: i32) -> (i32, i32) {
    %c0_i32 = arith.constant 0 : i32
    return %arg0, %arg1 : i32, i32
  }
}

module attributes {stable_mosaic.version = 11 : i64} {
  func.func @_matmul_res_kernel(%arg0: i32, %arg1: i32, %arg2: i32, %arg3: memref<16x256xbf16, #tpu.memory_space<vmem>>, %arg4: memref<256x64xbf16, #tpu.memory_space<vmem>>, %arg5: memref<1x64xbf16, #tpu.memory_space<vmem>>, %arg6: memref<16x64xbf16, #tpu.memory_space<vmem>>, %arg7: memref<16x64xbf16, #tpu.memory_space<vmem>>, %arg8: memref<16x64xf32, #tpu.memory_space<vmem>>) attributes {dimension_semantics = [#tpu.dimension_semantics<parallel>, #tpu.dimension_semantics<parallel>, #tpu.dimension_semantics<arbitrary>], iteration_bounds = array<i64: 1, 1, 1>, scalar_prefetch = 0 : i64, scratch_operands = 1 : i64, tpu.core_type = #tpu.core_type<tc>, window_params = [{transform_indices = @transform_0, window_bounds = array<i64: 16, 256>}, {transform_indices = @transform_1, window_bounds = array<i64: 256, 64>}, {transform_indices = @transform_2, window_bounds = array<i64: 1, 64>}, {transform_indices = @transform_3, window_bounds = array<i64: 16, 64>}, {transform_indices = @transform_4, window_bounds = array<i64: 16, 64>}]} {
    %c0_i32 = arith.constant 0 : i32
    %0 = arith.cmpi eq, %arg2, %c0_i32 : i32
    %1 = arith.extui %0 : i1 to i32
    %c0_i32_0 = arith.constant 0 : i32
    %2 = arith.cmpi ne, %1, %c0_i32_0 : i32
    scf.if %2 {
      %cst_10 = arith.constant 0.000000e+00 : f32
      %12 = vector.broadcast %cst_10 : f32 to vector<16x64xf32>
      %c0_11 = arith.constant 0 : index
      %c0_12 = arith.constant 0 : index
      %13 = vector.load %arg8[%c0_11, %c0_12] : memref<16x64xf32, #tpu.memory_space<vmem>>, vector<16x64xf32>
      tpu.vector_store %arg8[%c0_11, %c0_12], %12 {strides = array<i32>} : memref<16x64xf32, #tpu.memory_space<vmem>>, vector<16x64xf32>,
    } else {
    }
    %c0 = arith.constant 0 : index
    %c0_1 = arith.constant 0 : index
    %3 = vector.load %arg8[%c0, %c0_1] : memref<16x64xf32, #tpu.memory_space<vmem>>, vector<16x64xf32>
    %c0_2 = arith.constant 0 : index
    %c0_3 = arith.constant 0 : index
    %4 = vector.load %arg3[%c0_2, %c0_3] : memref<16x256xbf16, #tpu.memory_space<vmem>>, vector<16x256xbf16>
    %c0_4 = arith.constant 0 : index
    %c0_5 = arith.constant 0 : index
    %5 = vector.load %arg4[%c0_4, %c0_5] : memref<256x64xbf16, #tpu.memory_space<vmem>>, vector<256x64xbf16>
    %cst = arith.constant dense<0.000000e+00> : vector<16x64xf32>
    %6 = tpu.matmul %4, %5, %cst {dimension_numbers = #tpu.dot_dimension_numbers<[1], [0], [0], [1], [0, 0, 1, 1], [], []>} : vector<16x256xbf16>, vector<256x64xbf16>, vector<16x64xf32> -> vector<16x64xf32>
    %7 = arith.addf %3, %6 : vector<16x64xf32>
    %c0_6 = arith.constant 0 : index
    %c0_7 = arith.constant 0 : index
    %8 = vector.load %arg8[%c0_6, %c0_7] : memref<16x64xf32, #tpu.memory_space<vmem>>, vector<16x64xf32>
    tpu.vector_store %arg8[%c0_6, %c0_7], %7 {strides = array<i32>} : memref<16x64xf32, #tpu.memory_space<vmem>>, vector<16x64xf32>,
    %c0_i32_8 = arith.constant 0 : i32
    %9 = arith.cmpi eq, %arg2, %c0_i32_8 : i32
    %10 = arith.extui %9 : i1 to i32
    %c0_i32_9 = arith.constant 0 : i32
    %11 = arith.cmpi ne, %10, %c0_i32_9 : i32
    scf.if %11 {
      %c0_10 = arith.constant 0 : index
      %c0_11 = arith.constant 0 : index
      %12 = vector.load %arg8[%c0_10, %c0_11] : memref<16x64xf32, #tpu.memory_space<vmem>>, vector<16x64xf32>
      %c0_12 = arith.constant 0 : index
      %c0_13 = arith.constant 0 : index
      %13 = vector.load %arg5[%c0_12, %c0_13] : memref<1x64xbf16, #tpu.memory_space<vmem>>, vector<1x64xbf16>
      %14 = arith.extf %13 : vector<1x64xbf16> to vector<1x64xf32>
      %15 = vector.broadcast %14 : vector<1x64xf32> to vector<16x64xf32>
      %16 = arith.addf %12, %15 : vector<16x64xf32>
      %c0_14 = arith.constant 0 : index
      %c0_15 = arith.constant 0 : index
      %17 = vector.load %arg6[%c0_14, %c0_15] : memref<16x64xbf16, #tpu.memory_space<vmem>>, vector<16x64xbf16>
      %18 = arith.extf %17 : vector<16x64xbf16> to vector<16x64xf32>
      %19 = arith.addf %16, %18 : vector<16x64xf32>
      %20 = arith.truncf %19 : vector<16x64xf32> to vector<16x64xbf16>
      %c0_16 = arith.constant 0 : index
      %c0_17 = arith.constant 0 : index
      %21 = vector.load %arg7[%c0_16, %c0_17] : memref<16x64xbf16, #tpu.memory_space<vmem>>, vector<16x64xbf16>
      tpu.vector_store %arg7[%c0_16, %c0_17], %20 {strides = array<i32>} : memref<16x64xbf16, #tpu.memory_space<vmem>>, vector<16x64xbf16>,
    } else {
    }
    return
  }
  func.func @transform_0(%arg0: i32, %arg1: i32, %arg2: i32) -> (i32, i32) {
    %c0_i32 = arith.constant 0 : i32
    return %arg0, %arg2 : i32, i32
  }
  func.func @transform_1(%arg0: i32, %arg1: i32, %arg2: i32) -> (i32, i32) {
    %c0_i32 = arith.constant 0 : i32
    return %arg2, %arg1 : i32, i32
  }
  func.func @transform_2(%arg0: i32, %arg1: i32, %arg2: i32) -> (i32, i32) {
    %c0_i32 = arith.constant 0 : i32
    %c0_i32_0 = arith.constant 0 : i32
    return %c0_i32, %arg1 : i32, i32
  }
  func.func @transform_3(%arg0: i32, %arg1: i32, %arg2: i32) -> (i32, i32) {
    %c0_i32 = arith.constant 0 : i32
    return %arg0, %arg1 : i32, i32
  }
  func.func @transform_4(%arg0: i32, %arg1: i32, %arg2: i32) -> (i32, i32) {
    %c0_i32 = arith.constant 0 : i32
    return %arg0, %arg1 : i32, i32
  }
}

module attributes {stable_mosaic.version = 11 : i64} {
  func.func @_ln_matmul_kernel(%arg0: i32, %arg1: i32, %arg2: memref<16x64xbf16, #tpu.memory_space<vmem>>, %arg3: memref<1x64xbf16, #tpu.memory_space<vmem>>, %arg4: memref<1x64xbf16, #tpu.memory_space<vmem>>, %arg5: memref<64x256xbf16, #tpu.memory_space<vmem>>, %arg6: memref<1x256xbf16, #tpu.memory_space<vmem>>, %arg7: memref<16x256xbf16, #tpu.memory_space<vmem>>, %arg8: memref<16x64xbf16, #tpu.memory_space<vmem>>) attributes {dimension_semantics = [#tpu.dimension_semantics<parallel>, #tpu.dimension_semantics<arbitrary>], iteration_bounds = array<i64: 1, 1>, scalar_prefetch = 0 : i64, scratch_operands = 1 : i64, tpu.core_type = #tpu.core_type<tc>, window_params = [{transform_indices = @transform_0, window_bounds = array<i64: 16, 64>}, {pipeline_mode = #tpu.pipeline_mode<synchronous>, transform_indices = @transform_1, window_bounds = array<i64: 1, 64>}, {pipeline_mode = #tpu.pipeline_mode<synchronous>, transform_indices = @transform_2, window_bounds = array<i64: 1, 64>}, {transform_indices = @transform_3, window_bounds = array<i64: 64, 256>}, {transform_indices = @transform_4, window_bounds = array<i64: 1, 256>}, {transform_indices = @transform_5, window_bounds = array<i64: 16, 256>}]} {
    %c0_i32 = arith.constant 0 : i32
    %0 = arith.cmpi eq, %arg1, %c0_i32 : i32
    %1 = arith.extui %0 : i1 to i32
    %c0_i32_0 = arith.constant 0 : i32
    %2 = arith.cmpi ne, %1, %c0_i32_0 : i32
    scf.if %2 {
      %c0_12 = arith.constant 0 : index
      %c0_13 = arith.constant 0 : index
      %25 = vector.load %arg2[%c0_12, %c0_13] : memref<16x64xbf16, #tpu.memory_space<vmem>>, vector<16x64xbf16>
      %26 = arith.extf %25 : vector<16x64xbf16> to vector<16x64xf32>
      %cst_14 = arith.constant dense<0.000000e+00> : vector<16xf32>
      %27 = vector.multi_reduction <add>, %26, %cst_14 [1] : vector<16x64xf32> to vector<16xf32>
      %28 = vector.shape_cast %27 : vector<16xf32> to vector<16x1xf32>
      %cst_15 = arith.constant 6.400000e+01 : f32
      %29 = vector.broadcast %cst_15 : f32 to vector<16x1xf32>
      %30 = arith.divf %28, %29 : vector<16x1xf32>
      %31 = vector.broadcast %30 : vector<16x1xf32> to vector<16x64xf32>
      %32 = arith.subf %26, %31 : vector<16x64xf32>
      %33 = arith.mulf %32, %32 : vector<16x64xf32>
      %cst_16 = arith.constant dense<0.000000e+00> : vector<16xf32>
      %34 = vector.multi_reduction <add>, %33, %cst_16 [1] : vector<16x64xf32> to vector<16xf32>
      %35 = vector.shape_cast %34 : vector<16xf32> to vector<16x1xf32>
      %cst_17 = arith.constant 6.400000e+01 : f32
      %36 = vector.broadcast %cst_17 : f32 to vector<16x1xf32>
      %37 = arith.divf %35, %36 : vector<16x1xf32>
      %38 = vector.broadcast %30 : vector<16x1xf32> to vector<16x64xf32>
      %39 = arith.subf %26, %38 : vector<16x64xf32>
      %cst_18 = arith.constant 9.99999996E-13 : f32
      %40 = vector.broadcast %cst_18 : f32 to vector<16x1xf32>
      %41 = arith.addf %37, %40 : vector<16x1xf32>
      %42 = math.rsqrt %41 : vector<16x1xf32>
      %43 = vector.broadcast %42 : vector<16x1xf32> to vector<16x64xf32>
      %44 = arith.mulf %39, %43 : vector<16x64xf32>
      %c0_19 = arith.constant 0 : index
      %c0_20 = arith.constant 0 : index
      %45 = vector.load %arg3[%c0_19, %c0_20] : memref<1x64xbf16, #tpu.memory_space<vmem>>, vector<1x64xbf16>
      %46 = arith.extf %45 : vector<1x64xbf16> to vector<1x64xf32>
      %47 = vector.broadcast %46 : vector<1x64xf32> to vector<16x64xf32>
      %48 = arith.mulf %44, %47 : vector<16x64xf32>
      %c0_21 = arith.constant 0 : index
      %c0_22 = arith.constant 0 : index
      %49 = vector.load %arg4[%c0_21, %c0_22] : memref<1x64xbf16, #tpu.memory_space<vmem>>, vector<1x64xbf16>
      %50 = arith.extf %49 : vector<1x64xbf16> to vector<1x64xf32>
      %51 = vector.broadcast %50 : vector<1x64xf32> to vector<16x64xf32>
      %52 = arith.addf %48, %51 : vector<16x64xf32>
      %53 = arith.truncf %52 : vector<16x64xf32> to vector<16x64xbf16>
      %c0_23 = arith.constant 0 : index
      %c0_24 = arith.constant 0 : index
      %54 = vector.load %arg8[%c0_23, %c0_24] : memref<16x64xbf16, #tpu.memory_space<vmem>>, vector<16x64xbf16>
      tpu.vector_store %arg8[%c0_23, %c0_24], %53 {strides = array<i32>} : memref<16x64xbf16, #tpu.memory_space<vmem>>, vector<16x64xbf16>,
    } else {
    }
    %c0 = arith.constant 0 : index
    %c0_1 = arith.constant 0 : index
    %3 = vector.load %arg8[%c0, %c0_1] : memref<16x64xbf16, #tpu.memory_space<vmem>>, vector<16x64xbf16>
    %c0_2 = arith.constant 0 : index
    %c0_3 = arith.constant 0 : index
    %4 = vector.load %arg5[%c0_2, %c0_3] : memref<64x256xbf16, #tpu.memory_space<vmem>>, vector<64x256xbf16>
    %cst = arith.constant dense<0.000000e+00> : vector<16x256xf32>
    %5 = tpu.matmul %3, %4, %cst {dimension_numbers = #tpu.dot_dimension_numbers<[1], [0], [0], [1], [0, 0, 1, 1], [], []>} : vector<16x64xbf16>, vector<64x256xbf16>, vector<16x256xf32> -> vector<16x256xf32>
    %c0_4 = arith.constant 0 : index
    %c0_5 = arith.constant 0 : index
    %6 = vector.load %arg6[%c0_4, %c0_5] : memref<1x256xbf16, #tpu.memory_space<vmem>>, vector<1x256xbf16>
    %7 = arith.extf %6 : vector<1x256xbf16> to vector<1x256xf32>
    %8 = vector.broadcast %7 : vector<1x256xf32> to vector<16x256xf32>
    %9 = arith.addf %5, %8 : vector<16x256xf32>
    %10 = arith.mulf %9, %9 : vector<16x256xf32>
    %11 = arith.mulf %9, %10 : vector<16x256xf32>
    %cst_6 = arith.constant 4.471500e-02 : f32
    %12 = vector.broadcast %cst_6 : f32 to vector<16x256xf32>
    %13 = arith.mulf %12, %11 : vector<16x256xf32>
    %14 = arith.addf %9, %13 : vector<16x256xf32>
    %cst_7 = arith.constant 0.797884583 : f32
    %15 = vector.broadcast %cst_7 : f32 to vector<16x256xf32>
    %16 = arith.mulf %15, %14 : vector<16x256xf32>
    %17 = math.tanh %16 : vector<16x256xf32>
    %cst_8 = arith.constant 1.000000e+00 : f32
    %18 = vector.broadcast %cst_8 : f32 to vector<16x256xf32>
    %19 = arith.addf %18, %17 : vector<16x256xf32>
    %cst_9 = arith.constant 5.000000e-01 : f32
    %20 = vector.broadcast %cst_9 : f32 to vector<16x256xf32>
    %21 = arith.mulf %20, %19 : vector<16x256xf32>
    %22 = arith.mulf %9, %21 : vector<16x256xf32>
    %23 = arith.truncf %22 : vector<16x256xf32> to vector<16x256xbf16>
    %c0_10 = arith.constant 0 : index
    %c0_11 = arith.constant 0 : index
    %24 = vector.load %arg7[%c0_10, %c0_11] : memref<16x256xbf16, #tpu.memory_space<vmem>>, vector<16x256xbf16>
    tpu.vector_store %arg7[%c0_10, %c0_11], %23 {strides = array<i32>} : memref<16x256xbf16, #tpu.memory_space<vmem>>, vector<16x256xbf16>,
    return
  }
  func.func @transform_0(%arg0: i32, %arg1: i32) -> (i32, i32) {
    %c0_i32 = arith.constant 0 : i32
    %c0_i32_0 = arith.constant 0 : i32
    return %arg0, %c0_i32 : i32, i32
  }
  func.func @transform_1(%arg0: i32, %arg1: i32) -> (i32, i32) {
    %c0_i32 = arith.constant 0 : i32
    %c0_i32_0 = arith.constant 0 : i32
    %c0_i32_1 = arith.constant 0 : i32
    return %c0_i32, %c0_i32_0 : i32, i32
  }
  func.func @transform_2(%arg0: i32, %arg1: i32) -> (i32, i32) {
    %c0_i32 = arith.constant 0 : i32
    %c0_i32_0 = arith.constant 0 : i32
    %c0_i32_1 = arith.constant 0 : i32
    return %c0_i32, %c0_i32_0 : i32, i32
  }
  func.func @transform_3(%arg0: i32, %arg1: i32) -> (i32, i32) {
    %c0_i32 = arith.constant 0 : i32
    %c0_i32_0 = arith.constant 0 : i32
    return %c0_i32, %arg1 : i32, i32
  }
  func.func @transform_4(%arg0: i32, %arg1: i32) -> (i32, i32) {
    %c0_i32 = arith.constant 0 : i32
    %c0_i32_0 = arith.constant 0 : i32
    return %c0_i32, %arg1 : i32, i32
  }
  func.func @transform_5(%arg0: i32, %arg1: i32) -> (i32, i32) {
    %c0_i32 = arith.constant 0 : i32
    return %arg0, %arg1 : i32, i32
  }
}

module attributes {stable_mosaic.version = 11 : i64} {
  func.func @_head_kernel(%arg0: memref<2x8x64xbf16, #tpu.memory_space<vmem>>, %arg1: memref<1x64xbf16, #tpu.memory_space<vmem>>, %arg2: memref<1x64xbf16, #tpu.memory_space<vmem>>, %arg3: memref<64x128xbf16, #tpu.memory_space<vmem>>, %arg4: memref<1x128xbf16, #tpu.memory_space<vmem>>, %arg5: memref<2x128xf32, #tpu.memory_space<vmem>>) attributes {dimension_semantics = [], scalar_prefetch = 0 : i64, scratch_operands = 0 : i64, tpu.core_type = #tpu.core_type<tc>} {
    %c0 = arith.constant 0 : index
    %c0_0 = arith.constant 0 : index
    %c0_1 = arith.constant 0 : index
    %0 = vector.load %arg0[%c0, %c0_0, %c0_1] : memref<2x8x64xbf16, #tpu.memory_space<vmem>>, vector<2x8x64xbf16>
    %1 = arith.extf %0 : vector<2x8x64xbf16> to vector<2x8x64xf32>
    %cst = arith.constant dense<0.000000e+00> : vector<2x64xf32>
    %2 = vector.multi_reduction <add>, %1, %cst [1] : vector<2x8x64xf32> to vector<2x64xf32>
    %cst_2 = arith.constant 8.000000e+00 : f32
    %3 = vector.broadcast %cst_2 : f32 to vector<2x64xf32>
    %4 = arith.divf %2, %3 : vector<2x64xf32>
    %cst_3 = arith.constant dense<0.000000e+00> : vector<2xf32>
    %5 = vector.multi_reduction <add>, %4, %cst_3 [1] : vector<2x64xf32> to vector<2xf32>
    %6 = vector.shape_cast %5 : vector<2xf32> to vector<2x1xf32>
    %cst_4 = arith.constant 6.400000e+01 : f32
    %7 = vector.broadcast %cst_4 : f32 to vector<2x1xf32>
    %8 = arith.divf %6, %7 : vector<2x1xf32>
    %9 = vector.broadcast %8 : vector<2x1xf32> to vector<2x64xf32>
    %10 = arith.subf %4, %9 : vector<2x64xf32>
    %11 = arith.mulf %10, %10 : vector<2x64xf32>
    %cst_5 = arith.constant dense<0.000000e+00> : vector<2xf32>
    %12 = vector.multi_reduction <add>, %11, %cst_5 [1] : vector<2x64xf32> to vector<2xf32>
    %13 = vector.shape_cast %12 : vector<2xf32> to vector<2x1xf32>
    %cst_6 = arith.constant 6.400000e+01 : f32
    %14 = vector.broadcast %cst_6 : f32 to vector<2x1xf32>
    %15 = arith.divf %13, %14 : vector<2x1xf32>
    %16 = vector.broadcast %8 : vector<2x1xf32> to vector<2x64xf32>
    %17 = arith.subf %4, %16 : vector<2x64xf32>
    %cst_7 = arith.constant 9.99999996E-13 : f32
    %18 = vector.broadcast %cst_7 : f32 to vector<2x1xf32>
    %19 = arith.addf %15, %18 : vector<2x1xf32>
    %20 = math.rsqrt %19 : vector<2x1xf32>
    %21 = vector.broadcast %20 : vector<2x1xf32> to vector<2x64xf32>
    %22 = arith.mulf %17, %21 : vector<2x64xf32>
    %c0_8 = arith.constant 0 : index
    %c0_9 = arith.constant 0 : index
    %23 = vector.load %arg1[%c0_8, %c0_9] : memref<1x64xbf16, #tpu.memory_space<vmem>>, vector<1x64xbf16>
    %24 = arith.extf %23 : vector<1x64xbf16> to vector<1x64xf32>
    %25 = vector.broadcast %24 : vector<1x64xf32> to vector<2x64xf32>
    %26 = arith.mulf %22, %25 : vector<2x64xf32>
    %c0_10 = arith.constant 0 : index
    %c0_11 = arith.constant 0 : index
    %27 = vector.load %arg2[%c0_10, %c0_11] : memref<1x64xbf16, #tpu.memory_space<vmem>>, vector<1x64xbf16>
    %28 = arith.extf %27 : vector<1x64xbf16> to vector<1x64xf32>
    %29 = vector.broadcast %28 : vector<1x64xf32> to vector<2x64xf32>
    %30 = arith.addf %26, %29 : vector<2x64xf32>
    %31 = arith.truncf %30 : vector<2x64xf32> to vector<2x64xbf16>
    %c0_12 = arith.constant 0 : index
    %c0_13 = arith.constant 0 : index
    %32 = vector.load %arg3[%c0_12, %c0_13] : memref<64x128xbf16, #tpu.memory_space<vmem>>, vector<64x128xbf16>
    %cst_14 = arith.constant dense<0.000000e+00> : vector<2x128xf32>
    %33 = tpu.matmul %31, %32, %cst_14 {dimension_numbers = #tpu.dot_dimension_numbers<[1], [0], [0], [1], [0, 0, 1, 1], [], []>} : vector<2x64xbf16>, vector<64x128xbf16>, vector<2x128xf32> -> vector<2x128xf32>
    %c0_15 = arith.constant 0 : index
    %c0_16 = arith.constant 0 : index
    %34 = vector.load %arg4[%c0_15, %c0_16] : memref<1x128xbf16, #tpu.memory_space<vmem>>, vector<1x128xbf16>
    %35 = arith.extf %34 : vector<1x128xbf16> to vector<1x128xf32>
    %36 = vector.broadcast %35 : vector<1x128xf32> to vector<2x128xf32>
    %37 = arith.addf %33, %36 : vector<2x128xf32>
    %c0_17 = arith.constant 0 : index
    %c0_18 = arith.constant 0 : index
    %38 = vector.load %arg5[%c0_17, %c0_18] : memref<2x128xf32, #tpu.memory_space<vmem>>, vector<2x128xf32>
    tpu.vector_store %arg5[%c0_17, %c0_18], %37 {strides = array<i32>} : memref<2x128xf32, #tpu.memory_space<vmem>>, vector<2x128xf32>,
    return
  }
}

</mosaic_0001>

<llo_original>
// kernel: tri_model_forward.37
$region0: #{tri_model_forward.37}
  #allocation0 [shape = 'u32[]', space=smem, size = 0x4, offset = 0x4, fixed_abs, tag = 'smem constant byte address 0x4 - core index']
  #allocation1 [shape = 'u32[72,128]{1,0:T(1,128)}', space=vmem, size = 0x9000, scoped, tag = 'internal scratch']
  #allocation2 [shape = 'bf16[16,32]{1,0:T(8,128)(2,1)}', space=vmem, size = 0x1000, scoped, tag = 'scratch operand']
  %s0 = inlined_call_operand.vmem [shape: bf16[16,32], index: 0, kind: input, shape index: {}]
  %s1 = inlined_call_operand.vmem [shape: bf16[1,32], index: 1, kind: input, shape index: {}]
  %s2 = inlined_call_operand.vmem [shape: bf16[1,32], index: 2, kind: input, shape index: {}]
  %s3 = inlined_call_operand.vmem [shape: bf16[32,96], index: 3, kind: input, shape index: {}]
  %s4 = inlined_call_operand.vmem [shape: bf16[1,96], index: 4, kind: input, shape index: {}]
  %s5 = inlined_call_operand.vmem [shape: bf16[16,96], index: 5, kind: output, shape index: {}]
  %s6 = sld [smem:[#allocation0]]
  $region34: #{tri_model_forward.37} parent=0
    _
  %s8 = ssub.s32 1, %s6
  %s9 = scalar_select 0, %s8, %s6
  // Predicated region
  $region2: #{tri_model_forward.37} parent=0 // pred_check
    _
  $region3: #{tri_model_forward.37} parent=0 // pred_check_branch
    %11 = sbr.rel (0) target = $region5
  $region4: #{tri_model_forward.37} parent=0 // pred_region
    _
  $region5: #{tri_model_forward.37} parent=0 // pred_fallthru
    _
  // Predicated region
  $region6: #{tri_model_forward.37} parent=0 // pred_check
    _
  $region7: #{tri_model_forward.37} parent=0 // pred_check_branch
    %13 = sbr.rel (0) target = $region9
  $region8: #{tri_model_forward.37} parent=0 // pred_region
    _
  $region9: #{tri_model_forward.37} parent=0 // pred_fallthru
    _
  // Predicated region
  $region10: #{tri_model_forward.37} parent=0 // pred_check
    _
  $region11: #{tri_model_forward.37} parent=0 // pred_check_branch
    %15 = sbr.rel (0) target = $region13
  $region12: #{tri_model_forward.37} parent=0 // pred_region
    _
  $region13: #{tri_model_forward.37} parent=0 // pred_fallthru
    _
  // Predicated region
  $region14: #{tri_model_forward.37} parent=0 // pred_check
    _
  $region15: #{tri_model_forward.37} parent=0 // pred_check_branch
    %17 = sbr.rel (0) target = $region17
  $region16: #{tri_model_forward.37} parent=0 // pred_region
    _
  $region17: #{tri_model_forward.37} parent=0 // pred_fallthru
    _
  // Predicated region
  $region18: #{tri_model_forward.37} parent=0 // pred_check
    _
  $region19: #{tri_model_forward.37} parent=0 // pred_check_branch
    %19 = sbr.rel (0) target = $region21
  $region20: #{tri_model_forward.37} parent=0 // pred_region
    _
  $region21: #{tri_model_forward.37} parent=0 // pred_fallthru
    _
  %p21 = scmp.eq.s32.totalorder 0, 0
  // Predicated region
  $region22: #{tri_model_forward.37} parent=0 // pred_check
    %p22 = pneg %p21
  $region23: #{tri_model_forward.37} parent=0 // pred_check_branch
    %24 = sbr.rel (%p22) target = $region25
  $region24: #{tri_model_forward.37} parent=0 // pred_region
    %v25 = vld [vmem:[%s0] sm:$0xf]
    %v26 = vld [vmem:[%s0 + $0x4] sm:$0xf]
    %v27 = vunpack.c.l.bf16 %v25
    %v28 = vunpack.c.l.bf16 %v26
    %vm29 = vcmask 261120
    %v30 = vsel %vm29, %v27, 0.0
    %31 = vadd.xlane.f32.xlu0 %v30
    %v32 = vpop.xlane.xlu0 %31
    %v33 = vsel %vm29, %v28, 0.0
    %34 = vadd.xlane.f32.xlu0 %v33
    %v35 = vpop.xlane.xlu0 %34
    %v36 = vrcp.pop 32.0
    %v37 = vmul.f32 32.0, %v36
    %v38 = vsub.f32 1.0, %v37
    %v39 = vmul.f32 %v36, %v38
    %v40 = vadd.f32 %v36, %v39
    %vm41 = vweird.f32 %v36
    %v42 = vsel %vm41, %v36, %v40
    %v43 = vmul.f32 %v32, %v42
    %v44 = vmul.f32 %v35, %v42
    %v45 = vsub.f32 %v27, %v43
    %v46 = vsub.f32 %v28, %v44
    %v47 = vmul.f32 %v45, %v45
    %v48 = vmul.f32 %v46, %v46
    %v49 = vsel %vm29, %v47, 0.0
    %50 = vadd.xlane.f32.xlu0 %v49
    %v51 = vpop.xlane.xlu0 %50
    %v52 = vsel %vm29, %v48, 0.0
    %53 = vadd.xlane.f32.xlu0 %v52
    %v54 = vpop.xlane.xlu0 %53
    %v55 = vmul.f32 %v51, %v42
    %v56 = vmul.f32 %v54, %v42
    %v57 = vadd.f32 %v55, 1e-12
    %v58 = vadd.f32 %v56, 1e-12
    %v59 = vrsqrt.pop %v57
    %v60 = vmul.f32 %v59, %v57
    %v61 = vmul.f32 %v60, %v59
    %v62 = vmul.f32 0.5, %v61
    %v63 = vsub.f32 1.5, %v62
    %v64 = vmul.f32 %v59, %v63
    %vm65 = vweird.f32 %v57
    %vm66 = vweird.f32 %v59
    %vm67 = vmor %vm65, %vm66
    %v68 = vsel %vm67, %v59, %v64
    %v69 = vrsqrt.pop %v58
    %v70 = vmul.f32 %v69, %v58
    %v71 = vmul.f32 %v70, %v69
    %v72 = vmul.f32 0.5, %v71
    %v73 = vsub.f32 1.5, %v72
    %v74 = vmul.f32 %v69, %v73
    %vm75 = vweird.f32 %v58
    %vm76 = vweird.f32 %v69
    %vm77 = vmor %vm75, %vm76
    %v78 = vsel %vm77, %v69, %v74
    %v79 = vmul.f32 %v45, %v68
    %v80 = vmul.f32 %v46, %v78
    %v81 = vld [vmem:[%s1] sm:$0x1]
    %v82 = vunpack.c.l.bf16 %v81
    %v83 = vperm.slane %v82, 0
    %v84 = vmul.f32 %v79, %v83
    %v85 = vmul.f32 %v80, %v83
    %v86 = vld [vmem:[%s2] sm:$0x1]
    %v87 = vunpack.c.l.bf16 %v86
    %v88 = vperm.slane %v87, 0
    %v89 = vadd.f32 %v84, %v88
    %v90 = vadd.f32 %v85, %v88
    %v91 = vpack.c.bf16 %v89, %v89
    %v92 = vpack.c.bf16 %v90, %v90
    %vm93 = vcmask 257024
    %94 = vst.msk [vmem:[#allocation2] sm:$0xf] %vm93, %v91
    %95 = vst.msk [vmem:[#allocation2 + $0x4] sm:$0xf] %vm93, %v92
  $region25: #{tri_model_forward.37} parent=0 // pred_fallthru
    _
  %v96 = vld [vmem:[#allocation2] sm:$0xf]
  %v97 = vld [vmem:[#allocation2 + $0x4] sm:$0xf]
  %v98 = vld [vmem:[%s3] sm:$0xf]
  %v99 = vld [vmem:[%s3 + $0x4] sm:$0xf]
  %v100 = vld [vmem:[%s3 + $0x8] sm:$0xf]
  %v101 = vld [vmem:[%s3 + $0xc] sm:$0xf]
  %v102 = vld [vmem:[%s4] sm:$0x1]
  %v103 = vunpack.c.l.bf16 %v102
  %v104 = vperm.slane %v103, 0
  %v107 = vunpack.c.l.b16 %v96
  %v108 = vunpack.c.l.b16 %v97
  %v109 = vpack.c.b16 %v108, %v107
  %v114 = vunpack.c.l.b16 %v98
  %v115 = vunpack.c.l.b16 %v99
  %v116 = vunpack.c.l.b16 %v100
  %v117 = vunpack.c.l.b16 %v101
  %v118 = vpack.c.b16 %v115, %v114
  %v119 = vpack.c.b16 %v117, %v116
  %vm122 = vcmask 261120
  %v124 = vsel %vm122, %v109, 0
  %126 = vmatpush.bf16.msra.mxu0 0
  %127 = vmatpush.bf16.msra.mxu0 0
  %128 = vmatpush.bf16.msra.mxu0 0
  %129 = vmatpush.bf16.msra.mxu0 0
  %130 = vmatpush.bf16.msra.mxu0 0
  %131 = vmatpush.bf16.msra.mxu0 0
  %132 = vmatpush.bf16.msra.mxu0 %v119
  %133 = vmatpush.bf16.msra.mxu0 %v118
  %134 = vmatmul.bf16.gmra.mxu0 %v124
  %v135 = vpop.f32.mrf.mxu0
  %v136 = vadd.f32 %v104, %v135
  %v137 = vpop.f32.mrf.mxu0
  %v138 = vadd.f32 %v104, %v137
  %139 = vdwg.mxu0
  %v140 = vpack.c.bf16 %v136, %v136
  %v141 = vpack.c.bf16 %v138, %v138
  %vm142 = vcmask 781312
  %143 = vst.msk [vmem:[%s5] sm:$0xf] %vm142, %v140
  %144 = vst.msk [vmem:[%s5 + $0x4] sm:$0xf] %vm142, %v141
  // Predicated region
  $region26: #{tri_model_forward.37} parent=0 // pred_check
    _
  $region27: #{tri_model_forward.37} parent=0 // pred_check_branch
    %146 = sbr.rel (0) target = $region29
  $region28: #{tri_model_forward.37} parent=0 // pred_region
    _
  $region29: #{tri_model_forward.37} parent=0 // pred_fallthru
    _
  // Predicated region
  $region30: #{tri_model_forward.37} parent=0 // pred_check
    _
  $region31: #{tri_model_forward.37} parent=0 // pred_check_branch
    %148 = sbr.rel (0) target = $region33
  $region32: #{tri_model_forward.37} parent=0 // pred_region
    _
  $region33: #{tri_model_forward.37} parent=0 // pred_fallthru
    _

// kernel: tri_model_forward.36
$region0: #{tri_model_forward.36}
  #allocation0 [shape = 'u32[]', space=smem, size = 0x4, offset = 0x4, fixed_abs, tag = 'smem constant byte address 0x4 - core index']
  #allocation1 [shape = 'u32[72,128]{1,0:T(1,128)}', space=vmem, size = 0x9000, scoped, tag = 'internal scratch']
  #allocation2 [shape = 'f32[16,32]{1,0:T(8,128)}', space=vmem, size = 0x2000, scoped, tag = 'scratch operand']
  %s0 = inlined_call_operand.vmem [shape: bf16[16,384], index: 0, kind: input, shape index: {}]
  %s1 = inlined_call_operand.vmem [shape: bf16[384,32], index: 1, kind: input, shape index: {}]
  %s2 = inlined_call_operand.vmem [shape: bf16[1,32], index: 2, kind: input, shape index: {}]
  %s3 = inlined_call_operand.vmem [shape: bf16[16,32], index: 3, kind: input, shape index: {}]
  %s4 = inlined_call_operand.vmem [shape: bf16[16,32], index: 4, kind: output, shape index: {}]
  %s5 = sld [smem:[#allocation0]]
  $region34: #{tri_model_forward.36} parent=0
    _
  %s7 = ssub.s32 1, %s5
  %s8 = scalar_select 0, %s7, %s5
  // Predicated region
  $region2: #{tri_model_forward.36} parent=0 // pred_check
    _
  $region3: #{tri_model_forward.36} parent=0 // pred_check_branch
    %10 = sbr.rel (0) target = $region5
  $region4: #{tri_model_forward.36} parent=0 // pred_region
    _
  $region5: #{tri_model_forward.36} parent=0 // pred_fallthru
    _
  // Predicated region
  $region6: #{tri_model_forward.36} parent=0 // pred_check
    _
  $region7: #{tri_model_forward.36} parent=0 // pred_check_branch
    %12 = sbr.rel (0) target = $region9
  $region8: #{tri_model_forward.36} parent=0 // pred_region
    _
  $region9: #{tri_model_forward.36} parent=0 // pred_fallthru
    _
  // Predicated region
  $region10: #{tri_model_forward.36} parent=0 // pred_check
    _
  $region11: #{tri_model_forward.36} parent=0 // pred_check_branch
    %14 = sbr.rel (0) target = $region13
  $region12: #{tri_model_forward.36} parent=0 // pred_region
    _
  $region13: #{tri_model_forward.36} parent=0 // pred_fallthru
    _
  // Predicated region
  $region14: #{tri_model_forward.36} parent=0 // pred_check
    _
  $region15: #{tri_model_forward.36} parent=0 // pred_check_branch
    %16 = sbr.rel (0) target = $region17
  $region16: #{tri_model_forward.36} parent=0 // pred_region
    _
  $region17: #{tri_model_forward.36} parent=0 // pred_fallthru
    _
  %p17 = scmp.eq.s32.totalorder 0, 0
  // Predicated region
  $region18: #{tri_model_forward.36} parent=0 // pred_check
    %p18 = pneg %p17
  $region19: #{tri_model_forward.36} parent=0 // pred_check_branch
    %20 = sbr.rel (%p18) target = $region21
  $region20: #{tri_model_forward.36} parent=0 // pred_region
    %vm21 = vcmask 261120
    %22 = vst.msk [vmem:[#allocation2] sm:$0xff] %vm21, 0.0
    %23 = vst.msk [vmem:[#allocation2 + $0x8] sm:$0xff] %vm21, 0.0
  $region21: #{tri_model_forward.36} parent=0 // pred_fallthru
    _
  %v24 = vld [vmem:[#allocation2] sm:$0xff]
  %v25 = vld [vmem:[#allocation2 + $0x8] sm:$0xff]
  %v26 = vld [vmem:[%s0] sm:$0xff]
  %v27 = vld [vmem:[%s0 + $0x8] sm:$0xf]
  %v28 = vld [vmem:[%s0 + $0xc] sm:$0xff]
  %v29 = vld [vmem:[%s0 + $0x14] sm:$0xf]
  %v30 = vld [vmem:[%s1] sm:$0xf]
  %v31 = vld [vmem:[%s1 + $0x4] sm:$0xf]
  %v32 = vld [vmem:[%s1 + $0x8] sm:$0xf]
  %v33 = vld [vmem:[%s1 + $0xc] sm:$0xf]
  %v34 = vld [vmem:[%s1 + $0x10] sm:$0xf]
  %v35 = vld [vmem:[%s1 + $0x14] sm:$0xf]
  %v36 = vld [vmem:[%s1 + $0x18] sm:$0xf]
  %v37 = vld [vmem:[%s1 + $0x1c] sm:$0xf]
  %v38 = vld [vmem:[%s1 + $0x20] sm:$0xf]
  %v39 = vld [vmem:[%s1 + $0x24] sm:$0xf]
  %v40 = vld [vmem:[%s1 + $0x28] sm:$0xf]
  %v41 = vld [vmem:[%s1 + $0x2c] sm:$0xf]
  %v42 = vld [vmem:[%s1 + $0x30] sm:$0xf]
  %v43 = vld [vmem:[%s1 + $0x34] sm:$0xf]
  %v44 = vld [vmem:[%s1 + $0x38] sm:$0xf]
  %v45 = vld [vmem:[%s1 + $0x3c] sm:$0xf]
  %v46 = vld [vmem:[%s1 + $0x40] sm:$0xf]
  %v47 = vld [vmem:[%s1 + $0x44] sm:$0xf]
  %v48 = vld [vmem:[%s1 + $0x48] sm:$0xf]
  %v49 = vld [vmem:[%s1 + $0x4c] sm:$0xf]
  %v50 = vld [vmem:[%s1 + $0x50] sm:$0xf]
  %v51 = vld [vmem:[%s1 + $0x54] sm:$0xf]
  %v52 = vld [vmem:[%s1 + $0x58] sm:$0xf]
  %v53 = vld [vmem:[%s1 + $0x5c] sm:$0xf]
  %v54 = vld [vmem:[%s1 + $0x60] sm:$0xf]
  %v55 = vld [vmem:[%s1 + $0x64] sm:$0xf]
  %v56 = vld [vmem:[%s1 + $0x68] sm:$0xf]
  %v57 = vld [vmem:[%s1 + $0x6c] sm:$0xf]
  %v58 = vld [vmem:[%s1 + $0x70] sm:$0xf]
  %v59 = vld [vmem:[%s1 + $0x74] sm:$0xf]
  %v60 = vld [vmem:[%s1 + $0x78] sm:$0xf]
  %v61 = vld [vmem:[%s1 + $0x7c] sm:$0xf]
  %v62 = vld [vmem:[%s1 + $0x80] sm:$0xf]
  %v63 = vld [vmem:[%s1 + $0x84] sm:$0xf]
  %v64 = vld [vmem:[%s1 + $0x88] sm:$0xf]
  %v65 = vld [vmem:[%s1 + $0x8c] sm:$0xf]
  %v66 = vld [vmem:[%s1 + $0x90] sm:$0xf]
  %v67 = vld [vmem:[%s1 + $0x94] sm:$0xf]
  %v68 = vld [vmem:[%s1 + $0x98] sm:$0xf]
  %v69 = vld [vmem:[%s1 + $0x9c] sm:$0xf]
  %v70 = vld [vmem:[%s1 + $0xa0] sm:$0xf]
  %v71 = vld [vmem:[%s1 + $0xa4] sm:$0xf]
  %v72 = vld [vmem:[%s1 + $0xa8] sm:$0xf]
  %v73 = vld [vmem:[%s1 + $0xac] sm:$0xf]
  %v74 = vld [vmem:[%s1 + $0xb0] sm:$0xf]
  %v75 = vld [vmem:[%s1 + $0xb4] sm:$0xf]
  %v76 = vld [vmem:[%s1 + $0xb8] sm:$0xf]
  %v77 = vld [vmem:[%s1 + $0xbc] sm:$0xf]
  %v82 = vunpack.c.l.b16 %v26
  %v83 = vunpack.c.h.b16 %v26
  %v84 = vunpack.c.l.b16 %v27
  %v85 = vunpack.c.l.b16 %v28
  %v86 = vunpack.c.h.b16 %v28
  %v87 = vunpack.c.l.b16 %v29
  %v88 = vpack.c.b16 %v85, %v82
  %v89 = vpack.c.b16 %v86, %v83
  %v90 = vpack.c.b16 %v87, %v84
  %v142 = vunpack.c.l.b16 %v30
  %v143 = vunpack.c.l.b16 %v31
  %v144 = vunpack.c.l.b16 %v32
  %v145 = vunpack.c.l.b16 %v33
  %v146 = vunpack.c.l.b16 %v34
  %v147 = vunpack.c.l.b16 %v35
  %v148 = vunpack.c.l.b16 %v36
  %v149 = vunpack.c.l.b16 %v37
  %v150 = vunpack.c.l.b16 %v38
  %v151 = vunpack.c.l.b16 %v39
  %v152 = vunpack.c.l.b16 %v40
  %v153 = vunpack.c.l.b16 %v41
  %v154 = vunpack.c.l.b16 %v42
  %v155 = vunpack.c.l.b16 %v43
  %v156 = vunpack.c.l.b16 %v44
  %v157 = vunpack.c.l.b16 %v45
  %v158 = vunpack.c.l.b16 %v46
  %v159 = vunpack.c.l.b16 %v47
  %v160 = vunpack.c.l.b16 %v48
  %v161 = vunpack.c.l.b16 %v49
  %v162 = vunpack.c.l.b16 %v50
  %v163 = vunpack.c.l.b16 %v51
  %v164 = vunpack.c.l.b16 %v52
  %v165 = vunpack.c.l.b16 %v53
  %v166 = vunpack.c.l.b16 %v54
  %v167 = vunpack.c.l.b16 %v55
  %v168 = vunpack.c.l.b16 %v56
  %v169 = vunpack.c.l.b16 %v57
  %v170 = vunpack.c.l.b16 %v58
  %v171 = vunpack.c.l.b16 %v59
  %v172 = vunpack.c.l.b16 %v60
  %v173 = vunpack.c.l.b16 %v61
  %v174 = vunpack.c.l.b16 %v62
  %v175 = vunpack.c.l.b16 %v63
  %v176 = vunpack.c.l.b16 %v64
  %v177 = vunpack.c.l.b16 %v65
  %v178 = vunpack.c.l.b16 %v66
  %v179 = vunpack.c.l.b16 %v67
  %v180 = vunpack.c.l.b16 %v68
  %v181 = vunpack.c.l.b16 %v69
  %v182 = vunpack.c.l.b16 %v70
  %v183 = vunpack.c.l.b16 %v71
  %v184 = vunpack.c.l.b16 %v72
  %v185 = vunpack.c.l.b16 %v73
  %v186 = vunpack.c.l.b16 %v74
  %v187 = vunpack.c.l.b16 %v75
  %v188 = vunpack.c.l.b16 %v76
  %v189 = vunpack.c.l.b16 %v77
  %v190 = vpack.c.b16 %v143, %v142
  %v191 = vpack.c.b16 %v145, %v144
  %v192 = vpack.c.b16 %v147, %v146
  %v193 = vpack.c.b16 %v149, %v148
  %v194 = vpack.c.b16 %v151, %v150
  %v195 = vpack.c.b16 %v153, %v152
  %v196 = vpack.c.b16 %v155, %v154
  %v197 = vpack.c.b16 %v157, %v156
  %v198 = vpack.c.b16 %v159, %v158
  %v199 = vpack.c.b16 %v161, %v160
  %v200 = vpack.c.b16 %v163, %v162
  %v201 = vpack.c.b16 %v165, %v164
  %v202 = vpack.c.b16 %v167, %v166
  %v203 = vpack.c.b16 %v169, %v168
  %v204 = vpack.c.b16 %v171, %v170
  %v205 = vpack.c.b16 %v173, %v172
  %v206 = vpack.c.b16 %v175, %v174
  %v207 = vpack.c.b16 %v177, %v176
  %v208 = vpack.c.b16 %v179, %v178
  %v209 = vpack.c.b16 %v181, %v180
  %v210 = vpack.c.b16 %v183, %v182
  %v211 = vpack.c.b16 %v185, %v184
  %v212 = vpack.c.b16 %v187, %v186
  %v213 = vpack.c.b16 %v189, %v188
  %238 = vmatpush.bf16.msra.mxu0 %v197
  %239 = vmatpush.bf16.msra.mxu0 %v196
  %240 = vmatpush.bf16.msra.mxu0 %v195
  %241 = vmatpush.bf16.msra.mxu0 %v194
  %242 = vmatpush.bf16.msra.mxu0 %v193
  %243 = vmatpush.bf16.msra.mxu0 %v192
  %244 = vmatpush.bf16.msra.mxu0 %v191
  %245 = vmatpush.bf16.msra.mxu0 %v190
  %246 = vmatmul.bf16.gmra.mxu0 %v88
  %v247 = vpop.f32.mrf.mxu0
  %v248 = vadd.f32 0.0, %v247
  %v249 = vpop.f32.mrf.mxu0
  %v250 = vadd.f32 0.0, %v249
  %251 = vdwg.mxu0
  %252 = vmatpush.bf16.msra.mxu0 %v205
  %253 = vmatpush.bf16.msra.mxu0 %v204
  %254 = vmatpush.bf16.msra.mxu0 %v203
  %255 = vmatpush.bf16.msra.mxu0 %v202
  %256 = vmatpush.bf16.msra.mxu0 %v201
  %257 = vmatpush.bf16.msra.mxu0 %v200
  %258 = vmatpush.bf16.msra.mxu0 %v199
  %259 = vmatpush.bf16.msra.mxu0 %v198
  %260 = vmatmul.bf16.gmra.mxu0 %v89
  %v261 = vpop.f32.mrf.mxu0
  %v262 = vadd.f32 %v248, %v261
  %v263 = vpop.f32.mrf.mxu0
  %v264 = vadd.f32 %v250, %v263
  %265 = vdwg.mxu0
  %266 = vmatpush.bf16.msra.mxu0 %v213
  %267 = vmatpush.bf16.msra.mxu0 %v212
  %268 = vmatpush.bf16.msra.mxu0 %v211
  %269 = vmatpush.bf16.msra.mxu0 %v210
  %270 = vmatpush.bf16.msra.mxu0 %v209
  %271 = vmatpush.bf16.msra.mxu0 %v208
  %272 = vmatpush.bf16.msra.mxu0 %v207
  %273 = vmatpush.bf16.msra.mxu0 %v206
  %274 = vmatmul.bf16.gmra.mxu0 %v90
  %v275 = vpop.f32.mrf.mxu0
  %v276 = vadd.f32 %v262, %v275
  %v277 = vpop.f32.mrf.mxu0
  %v278 = vadd.f32 %v264, %v277
  %279 = vdwg.mxu0
  %v280 = vadd.f32 %v24, %v276
  %v281 = vadd.f32 %v25, %v278
  %vm282 = vcmask 261120
  %283 = vst.msk [vmem:[#allocation2] sm:$0xff] %vm282, %v280
  %284 = vst.msk [vmem:[#allocation2 + $0x8] sm:$0xff] %vm282, %v281
  // Predicated region
  $region22: #{tri_model_forward.36} parent=0 // pred_check
    %p285 = pneg %p17
  $region23: #{tri_model_forward.36} parent=0 // pred_check_branch
    %287 = sbr.rel (%p285) target = $region25
  $region24: #{tri_model_forward.36} parent=0 // pred_region
    %v288 = vld [vmem:[#allocation2] sm:$0xff]
    %v289 = vld [vmem:[#allocation2 + $0x8] sm:$0xff]
    %v290 = vld [vmem:[%s2] sm:$0x1]
    %v291 = vunpack.c.l.bf16 %v290
    %v292 = vperm.slane %v291, 0
    %v293 = vadd.f32 %v288, %v292
    %v294 = vadd.f32 %v289, %v292
    %v295 = vld [vmem:[%s3] sm:$0xf]
    %v296 = vld [vmem:[%s3 + $0x4] sm:$0xf]
    %v297 = vunpack.c.l.bf16 %v295
    %v298 = vunpack.c.l.bf16 %v296
    %v299 = vadd.f32 %v293, %v297
    %v300 = vadd.f32 %v294, %v298
    %v301 = vpack.c.bf16 %v299, %v299
    %v302 = vpack.c.bf16 %v300, %v300
    %vm303 = vcmask 257024
    %304 = vst.msk [vmem:[%s4] sm:$0xf] %vm303, %v301
    %305 = vst.msk [vmem:[%s4 + $0x4] sm:$0xf] %vm303, %v302
  $region25: #{tri_model_forward.36} parent=0 // pred_fallthru
    _
  // Predicated region
  $region26: #{tri_model_forward.36} parent=0 // pred_check
    _
  $region27: #{tri_model_forward.36} parent=0 // pred_check_branch
    %307 = sbr.rel (0) target = $region29
  $region28: #{tri_model_forward.36} parent=0 // pred_region
    _
  $region29: #{tri_model_forward.36} parent=0 // pred_fallthru
    _
  // Predicated region
  $region30: #{tri_model_forward.36} parent=0 // pred_check
    _
  $region31: #{tri_model_forward.36} parent=0 // pred_check_branch
    %309 = sbr.rel (0) target = $region33
  $region32: #{tri_model_forward.36} parent=0 // pred_region
    _
  $region33: #{tri_model_forward.36} parent=0 // pred_fallthru
    _

// kernel: tri_model_forward.38
$region0: #{tri_model_forward.38}
  #allocation0 [shape = 'u32[]', space=smem, size = 0x4, offset = 0x4, fixed_abs, tag = 'smem constant byte address 0x4 - core index']
  #allocation1 [shape = 'u32[72,128]{1,0:T(1,128)}', space=vmem, size = 0x9000, scoped, tag = 'internal scratch']
  %s0 = inlined_call_operand.vmem [shape: bf16[2,2,3,8,16], index: 0, kind: input, shape index: {}]
  %s1 = inlined_call_operand.vmem [shape: bf16[2,2,8,16], index: 1, kind: output, shape index: {0}]
  %s2 = inlined_call_operand.hbm [shape: bf16[2,2,8,8], index: 2, kind: output, shape index: {1}]
  %3 = xla_tuple %s1, %s2
  %s4 = sld [smem:[#allocation0]]
  $region45: #{tri_model_forward.38} parent=0
    _
  %s6 = ssub.s32 1, %s4
  %s7 = scalar_select 0, %s6, %s4
  $region1: #{tri_model_forward.38} parent=0
    #allocation2 [shape = 'u8[4096]{0}', space=vmem, size = 0x1000, scoped, tag = 'output window, operand 1']
    #allocation3 [shape = 's32[2]{0}', space=sflag, size = 0x8, scoped, tag = 'scoped memory for tri_model_forward.38']
    %8 = vsyncpa [#allocation3], 0
    %s9 = scalar_lea.sflag [#allocation3], 1
    %10 = vsyncpa %s9, 0
    loop: start=0, step=1, limit=6
    $region2: #{tri_model_forward.38} parent=1 // loop_pre_header
      _
    $region3: #{tri_model_forward.38} parent=1 // loop_header
      %s12 = sphi 0, %s16
      %p13 = scmp.ge.s32.totalorder %s12, 6
      %s19 = sphi 0, %s31
      %s20 = sphi 0, %s27
      %s21 = sphi 0, %s19
      %s22 = sphi 0, %s20
      %s23 = sphi 0, %s21
      %s24 = sphi 0, %s22
      %s36 = sphi 0, %s38
      %s39 = sphi 0, %s36
      %s40 = sphi 0, %s39
      %s56 = sphi 0, %s40
      %s64 = sphi 0, %s66
      %s67 = sphi 0, %s64
      %s68 = sphi 0, %s67
      %s84 = sphi 0, %s68
      %s92 = sphi 0, %s94
      %s95 = sphi 0, %s92
      %s96 = sphi 0, %s95
      %s112 = sphi 0, %s96
    $region4: #{tri_model_forward.38} parent=1 // loop_header_branch
      %15 = sbr.rel (%p13) target = $region8
    $region5: #{tri_model_forward.38} parent=1 // loop_body
      %s17 = ssub.s32 %s12, 1
      %s18 = ssub.s32 %s12, 2
      %s25 = sadd.s32 1, %s20
      %p26 = scmp.ge.s32.totalorder %s25, 2
      %s27 = scalar_select %p26, 0, %s25
      %s28 = sadd.s32 1, %s19
      %s29 = scalar_select %p26, %s28, %s19
      %p30 = scmp.ge.s32.totalorder %s29, 2
      %s31 = scalar_select %p30, 0, %s29
      %s32 = ssub.s32 %s19, %s31
      %s33 = ssub.s32 %s20, %s27
      %s34 = sor.u32 %s32, %s33
      %p35 = scmp.eq.s32.totalorder %s34, 0
      %s37 = sadd.s32 %s36, 1
      %s38 = scalar_select %p35, %s36, %s37
      %p41 = pneg %p35
      %p42 = scmp.eq.s32.totalorder %s12, 3
      %p43 = por %p41, %p42
      %p44 = scmp.ne.s32.totalorder %s36, %s39
      %p45 = scmp.eq.s32.totalorder %s12, 0
      %p46 = por %p44, %p45
      %p47 = scmp.ne.s32.totalorder %s36, %s39
      %p48 = scmp.eq.s32.totalorder %s17, 3
      %p49 = por %p47, %p48
      %p50 = scmp.ne.s32.totalorder %s39, %s40
      %p51 = scmp.eq.s32.totalorder %s17, 0
      %p52 = por %p50, %p51
      %p53 = scmp.ne.s32.totalorder %s39, %s40
      %p54 = scmp.eq.s32.totalorder %s18, 3
      %p55 = por %p53, %p54
      %p57 = scmp.ne.s32.totalorder %s40, %s56
      %p58 = scmp.eq.s32.totalorder %s18, 0
      %p59 = por %p57, %p58
      %s60 = ssub.s32 %s19, %s31
      %s61 = ssub.s32 %s20, %s27
      %s62 = sor.u32 %s60, %s61
      %p63 = scmp.eq.s32.totalorder %s62, 0
      %s65 = sadd.s32 %s64, 1
      %s66 = scalar_select %p63, %s64, %s65
      %p69 = pneg %p63
      %p70 = scmp.eq.s32.totalorder %s12, 3
      %p71 = por %p69, %p70
      %p72 = scmp.ne.s32.totalorder %s64, %s67
      %p73 = scmp.eq.s32.totalorder %s12, 0
      %p74 = por %p72, %p73
      %p75 = scmp.ne.s32.totalorder %s64, %s67
      %p76 = scmp.eq.s32.totalorder %s17, 3
      %p77 = por %p75, %p76
      %p78 = scmp.ne.s32.totalorder %s67, %s68
      %p79 = scmp.eq.s32.totalorder %s17, 0
      %p80 = por %p78, %p79
      %p81 = scmp.ne.s32.totalorder %s67, %s68
      %p82 = scmp.eq.s32.totalorder %s18, 3
      %p83 = por %p81, %p82
      %p85 = scmp.ne.s32.totalorder %s68, %s84
      %p86 = scmp.eq.s32.totalorder %s18, 0
      %p87 = por %p85, %p86
      %s88 = ssub.s32 %s19, %s31
      %s89 = ssub.s32 %s20, %s27
      %s90 = sor.u32 %s88, %s89
      %p91 = scmp.eq.s32.totalorder %s90, 0
      %s93 = sadd.s32 %s92, 1
      %s94 = scalar_select %p91, %s92, %s93
      %p97 = pneg %p91
      %p98 = scmp.eq.s32.totalorder %s12, 3
      %p99 = por %p97, %p98
      %p100 = scmp.ne.s32.totalorder %s92, %s95
      %p101 = scmp.eq.s32.totalorder %s12, 0
      %p102 = por %p100, %p101
      %p103 = scmp.ne.s32.totalorder %s92, %s95
      %p104 = scmp.eq.s32.totalorder %s17, 3
      %p105 = por %p103, %p104
      %p106 = scmp.ne.s32.totalorder %s95, %s96
      %p107 = scmp.eq.s32.totalorder %s17, 0
      %p108 = por %p106, %p107
      %p109 = scmp.ne.s32.totalorder %s95, %s96
      %p110 = scmp.eq.s32.totalorder %s18, 3
      %p111 = por %p109, %p110
      %p113 = scmp.ne.s32.totalorder %s96, %s112
      %p114 = scmp.eq.s32.totalorder %s18, 0
      %p115 = por %p113, %p114
      %p116 = scmp.le.s32.totalorder 1, %s12
      %p117 = scmp.lt.s32.totalorder %s12, 5
      %p118 = pnand %p116, %p117
      %p119 = pneg %p118
      // Predicated region
      $region9: #{tri_model_forward.38} parent=5 // pred_check
        _
      $region10: #{tri_model_forward.38} parent=5 // pred_check_branch
        %121 = sbr.rel (%p118) target = $region12
      $region11: #{tri_model_forward.38} parent=5 // pred_region
        %s122 = ssub.s32 %s12, 1
      $region12: #{tri_model_forward.38} parent=5 // pred_fallthru
        _
      %p123 = scmp.lt.s32.totalorder %s12, 4
      // Predicated region
      $region13: #{tri_model_forward.38} parent=5 // pred_check
        %p124 = pneg %p123
      $region14: #{tri_model_forward.38} parent=5 // pred_check_branch
        %126 = sbr.rel (%p124) target = $region16
      $region15: #{tri_model_forward.38} parent=5 // pred_region
        // Predicated region
        $region17: #{tri_model_forward.38} parent=15 // pred_check
          %p127 = pneg %p46
        $region18: #{tri_model_forward.38} parent=15 // pred_check_branch
          %129 = sbr.rel (%p127) target = $region20
        $region19: #{tri_model_forward.38} parent=15 // pred_region
          %p130 = scmp.lt.s32.totalorder %s19, 1
          %s131 = scalar_select %p130, %s19, 1
          %p132 = scmp.lt.s32.totalorder %s20, 1
          %s133 = scalar_select %p132, %s20, 1
          %s134 = smul.addr %s133, 3
          %s135 = smul.addr %s131, 6
          %s136 = sadd.s32 %s134, %s135
          %s137 = smul.addr %s136, 4
          %s138 = scalar_lea.vmem %s0, %s137
        $region20: #{tri_model_forward.38} parent=15 // pred_fallthru
          _
      $region16: #{tri_model_forward.38} parent=5 // pred_fallthru
        _
      %p139 = scmp.le.s32.totalorder 1, %s12
      %p140 = scmp.lt.s32.totalorder %s12, 5
      %p141 = pnand %p139, %p140
      %p142 = pneg %p141
      // Predicated region
      $region21: #{tri_model_forward.38} parent=5 // pred_check
        _
      $region22: #{tri_model_forward.38} parent=5 // pred_check_branch
        %144 = sbr.rel (%p141) target = $region24
      $region23: #{tri_model_forward.38} parent=5 // pred_region
        %s145 = ssub.s32 %s12, 1
        %p146 = scmp.lt.s32.totalorder %s21, 1
        %s147 = scalar_select %p146, %s21, 1
        %p148 = scmp.lt.s32.totalorder %s22, 1
        %s149 = scalar_select %p148, %s22, 1
        %s150 = smul.addr %s149, 3
        %s151 = smul.addr %s147, 6
        %s152 = sadd.s32 %s150, %s151
        %s153 = smul.addr %s152, 4
        %s154 = scalar_lea.vmem %s0, %s153
        %p155 = pneg %p52
        %p156 = pneg %p49
        %p157 = pneg %p80
        %p158 = pneg %p77
        %p159 = scmp.lt.s32.totalorder %s21, 1
        %s160 = scalar_select %p159, %s21, 1
        %p161 = scmp.lt.s32.totalorder %s22, 1
        %s162 = scalar_select %p161, %s22, 1
        %s163 = smul.addr %s160, 2
        %s164 = sadd.s32 %s162, %s163
        %s165 = smul.addr %s164, 4
        %s166 = scalar_lea.vmem %s1, %s165
        %p167 = pneg %p108
        %p168 = pneg %p105
        %s169 = sand.u32 %s95, 1
        %s170 = scalar_lea.sflag [#allocation3], %s169
        %s171 = sand.u32 %s95, 1
        %s172 = smul.addr %s171, 4
        %s173 = scalar_lea.vmem [#allocation2], %s172
        %p174 = scmp.lt.s32.totalorder %s21, 1
        %s175 = scalar_select %p174, %s21, 1
        %p176 = scmp.lt.s32.totalorder %s22, 1
        %s177 = scalar_select %p176, %s22, 1
        %s178 = smul.addr %s177, 3
        %s179 = smul.addr %s175, 6
        %s180 = sadd.s32 %s178, %s179
        %s181 = smul.addr %s180, 4
        %s182 = scalar_lea.vmem %s0, %s181
        %p183 = scmp.lt.s32.totalorder %s21, 1
        %s184 = scalar_select %p183, %s21, 1
        %p185 = scmp.lt.s32.totalorder %s22, 1
        %s186 = scalar_select %p185, %s22, 1
        %s187 = smul.addr %s184, 2
        %s188 = sadd.s32 %s186, %s187
        %s189 = smul.addr %s188, 4
        %s190 = scalar_lea.vmem %s1, %s189
        %v192 = vld [vmem:[%s182] sm:$0xf]
        %s193 = scalar_lea.vmem %s182, 4
        %v194 = vld [vmem:[%s193] sm:$0xf]
        %s195 = scalar_lea.vmem %s182, 8
        %v196 = vld [vmem:[%s195] sm:$0xf]
        %vm197 = vcmask 130048
        %v199 = vsel %vm197, %v192, 0
        %v202 = vsel %vm197, %v194, 0
        %204 = vmatpush.bf16.xpose.msra.mxu0 0
        %205 = vmatpush.bf16.xpose.msra.mxu0 0
        %206 = vmatpush.bf16.xpose.msra.mxu0 0
        %207 = vmatpush.bf16.xpose.msra.mxu0 0
        %208 = vmatpush.bf16.xpose.msra.mxu0 0
        %209 = vmatpush.bf16.xpose.msra.mxu0 0
        %210 = vmatpush.bf16.xpose.msra.mxu0 0
        %211 = vmatpush.bf16.xpose.msra.mxu0 %v202
        %212 = vmatmul.bf16.gmra.mxu0 %v199
        %v213 = vpop.f32.mrf.mxu0
        %v214 = vadd.f32 0.0, %v213
        %v215 = vpop.f32.mrf.mxu0
        %216 = vdwg.mxu0
        %v217 = vmul.f32 %v214, 0.25
        %vm218 = vcmask 64512
        %v219 = vsel %vm218, %v217, -inf
        %220 = vmax.xlane.f32.xlu0 %v219
        %v221 = vpop.xlane.xlu0 %220
        %v222 = vsub.f32 %v217, %v221
        %v223 = vmul.f32 %v222, 1.442695
        %v224 = vpow.pop %v223
        %v225 = vsel %vm218, %v224, 0.0
        %226 = vadd.xlane.f32.xlu0 %v225
        %v227 = vpop.xlane.xlu0 %226
        %v228 = vrcp.pop %v227
        %v229 = vmul.f32 %v227, %v228
        %v230 = vsub.f32 1.0, %v229
        %v231 = vmul.f32 %v228, %v230
        %v232 = vadd.f32 %v228, %v231
        %vm233 = vweird.f32 %v227
        %vm234 = vweird.f32 %v228
        %vm235 = vmor %vm233, %vm234
        %v236 = vsel %vm235, %v228, %v232
        %v237 = vand.u32 2147483647, %v227
        %vm238 = vcmp.eq.f32.partialorder %v237, 8.507059e+37
        %v239 = vand.u32 %v227, 2147483648
        %v240 = vor.u32 1.1754944e-38, %v239
        %v241 = vsel %vm238, %v240, %v236
        %v242 = vmul.f32 %v224, %v241
        %v243 = vpack.c.bf16 %v242, %v242
        %vm244 = vcmask 60416
        %245 = vst.msk [vmem:[%s173] sm:$0xf] %vm244, %v243
        %v247 = vsel %vm218, %v243, 0
        %vm249 = vcmask 1043456
        %v251 = vsel %vm249, %v196, 0
        %253 = vmatpush.bf16.msra.mxu0 0
        %254 = vmatpush.bf16.msra.mxu0 0
        %255 = vmatpush.bf16.msra.mxu0 0
        %256 = vmatpush.bf16.msra.mxu0 0
        %257 = vmatpush.bf16.msra.mxu0 0
        %258 = vmatpush.bf16.msra.mxu0 0
        %259 = vmatpush.bf16.msra.mxu0 0
        %260 = vmatpush.bf16.msra.mxu0 %v251
        %261 = vmatmul.bf16.gmra.mxu0 %v247
        %v262 = vpop.f32.mrf.mxu0
        %v263 = vadd.f32 0.0, %v262
        %v264 = vpop.f32.mrf.mxu0
        %265 = vdwg.mxu0
        %v266 = vpack.c.bf16 %v263, %v263
        %vm267 = vcmask 125952
        %268 = vst.msk [vmem:[%s190] sm:$0xf] %vm267, %v266
        %p269 = scmp.lt.s32.totalorder %s21, 1
        %s270 = scalar_select %p269, %s21, 1
        %p271 = scmp.lt.s32.totalorder %s22, 1
        %s272 = scalar_select %p271, %s22, 1
        %s273 = smul.addr %s270, 2
        %s274 = sadd.s32 %s272, %s273
        %s275 = smul.addr %s274, 4
        %s276 = scalar_lea.vmem %s1, %s275
        %s277 = sand.u32 %s95, 1
        %s278 = scalar_lea.sflag [#allocation3], %s277
        %s279 = sand.u32 %s95, 1
        %s280 = smul.addr %s279, 4
        %s281 = scalar_lea.vmem [#allocation2], %s280
        // Predicated region
        $region25: #{tri_model_forward.38} parent=23 // pred_check
          %p282 = pneg %p77
        $region26: #{tri_model_forward.38} parent=23 // pred_check_branch
          %284 = sbr.rel (%p282) target = $region28
        $region27: #{tri_model_forward.38} parent=23 // pred_region
          _
        $region28: #{tri_model_forward.38} parent=23 // pred_fallthru
          _
        // Predicated region
        $region29: #{tri_model_forward.38} parent=23 // pred_check
          %p285 = pneg %p105
        $region30: #{tri_model_forward.38} parent=23 // pred_check_branch
          %287 = sbr.rel (%p285) target = $region32
        $region31: #{tri_model_forward.38} parent=23 // pred_region
          %289 = vsyncadd %s278, 0
          %s290 = smul.addr %s21, 2
          %s291 = sadd.s32 %s22, %s290
          %s292 = smul.addr %s291, 4
          %s293 = scalar_lea.hbm %s2, %s292
          %s295 = sshll.u32 %s281, 4
          %s296 = int_to_ptr.vmem [resolvable:$true] %s295
          %s297 = sshll.u32 %s293, 4
          %s298 = int_to_ptr.hbm [resolvable:$true] %s297
          %300 = dma.vmem_to_hbm [thread:$0]  %s296, 64, %s298, %s278
        $region32: #{tri_model_forward.38} parent=23 // pred_fallthru
          _
      $region24: #{tri_model_forward.38} parent=5 // pred_fallthru
        _
      %p301 = scmp.le.s32.totalorder 2, %s12
      // Predicated region
      $region33: #{tri_model_forward.38} parent=5 // pred_check
        %p302 = pneg %p301
      $region34: #{tri_model_forward.38} parent=5 // pred_check_branch
        %304 = sbr.rel (%p302) target = $region36
      $region35: #{tri_model_forward.38} parent=5 // pred_region
        %s305 = ssub.s32 %s12, 2
        // Predicated region
        $region37: #{tri_model_forward.38} parent=35 // pred_check
          %p306 = pneg %p83
        $region38: #{tri_model_forward.38} parent=35 // pred_check_branch
          %308 = sbr.rel (%p306) target = $region40
        $region39: #{tri_model_forward.38} parent=35 // pred_region
          %p309 = scmp.lt.s32.totalorder %s23, 1
          %s310 = scalar_select %p309, %s23, 1
          %p311 = scmp.lt.s32.totalorder %s24, 1
          %s312 = scalar_select %p311, %s24, 1
          %s313 = smul.addr %s310, 2
          %s314 = sadd.s32 %s312, %s313
          %s315 = smul.addr %s314, 4
          %s316 = scalar_lea.vmem %s1, %s315
        $region40: #{tri_model_forward.38} parent=35 // pred_fallthru
          _
        // Predicated region
        $region41: #{tri_model_forward.38} parent=35 // pred_check
          %p317 = pneg %p111
        $region42: #{tri_model_forward.38} parent=35 // pred_check_branch
          %319 = sbr.rel (%p317) target = $region44
        $region43: #{tri_model_forward.38} parent=35 // pred_region
          %s320 = sand.u32 %s96, 1
          %s321 = scalar_lea.sflag [#allocation3], %s320
          %s322 = sand.u32 %s96, 1
          %s323 = smul.addr %s322, 4
          %s324 = scalar_lea.vmem [#allocation2], %s323
          %326 = dma.done %s321, 64
        $region44: #{tri_model_forward.38} parent=35 // pred_fallthru
          _
      $region36: #{tri_model_forward.38} parent=5 // pred_fallthru
        _
    $region6: #{tri_model_forward.38} parent=1 // loop_footer
      %s16 = sadd.s32 1, %s12
    $region7: #{tri_model_forward.38} parent=1 // loop_footer_branch
      %11 = sbr.rel target = $region3
    $region8: #{tri_model_forward.38} parent=1 // loop_exit
      _
    %327 = vsyncpa [#allocation3], 1
    %s328 = scalar_lea.sflag [#allocation3], 1
    %329 = vsyncpa %s328, 1

// kernel: tri_model_forward.39
$region0: #{tri_model_forward.39}
  #allocation0 [shape = 'u32[]', space=smem, size = 0x4, offset = 0x4, fixed_abs, tag = 'smem constant byte address 0x4 - core index']
  #allocation1 [shape = 'u32[72,128]{1,0:T(1,128)}', space=vmem, size = 0x9000, scoped, tag = 'internal scratch']
  #allocation2 [shape = 'f32[16,32]{1,0:T(8,128)}', space=vmem, size = 0x2000, scoped, tag = 'scratch operand']
  %s0 = inlined_call_operand.vmem [shape: bf16[16,32], index: 0, kind: input, shape index: {}]
  %s1 = inlined_call_operand.vmem [shape: bf16[32,32], index: 1, kind: input, shape index: {}]
  %s2 = inlined_call_operand.vmem [shape: bf16[1,32], index: 2, kind: input, shape index: {}]
  %s3 = inlined_call_operand.vmem [shape: bf16[16,32], index: 3, kind: input, shape index: {}]
  %s4 = inlined_call_operand.vmem [shape: bf16[16,32], index: 4, kind: output, shape index: {}]
  %s5 = sld [smem:[#allocation0]]
  $region34: #{tri_model_forward.39} parent=0
    _
  %s7 = ssub.s32 1, %s5
  %s8 = scalar_select 0, %s7, %s5
  // Predicated region
  $region2: #{tri_model_forward.39} parent=0 // pred_check
    _
  $region3: #{tri_model_forward.39} parent=0 // pred_check_branch
    %10 = sbr.rel (0) target = $region5
  $region4: #{tri_model_forward.39} parent=0 // pred_region
    _
  $region5: #{tri_model_forward.39} parent=0 // pred_fallthru
    _
  // Predicated region
  $region6: #{tri_model_forward.39} parent=0 // pred_check
    _
  $region7: #{tri_model_forward.39} parent=0 // pred_check_branch
    %12 = sbr.rel (0) target = $region9
  $region8: #{tri_model_forward.39} parent=0 // pred_region
    _
  $region9: #{tri_model_forward.39} parent=0 // pred_fallthru
    _
  // Predicated region
  $region10: #{tri_model_forward.39} parent=0 // pred_check
    _
  $region11: #{tri_model_forward.39} parent=0 // pred_check_branch
    %14 = sbr.rel (0) target = $region13
  $region12: #{tri_model_forward.39} parent=0 // pred_region
    _
  $region13: #{tri_model_forward.39} parent=0 // pred_fallthru
    _
  // Predicated region
  $region14: #{tri_model_forward.39} parent=0 // pred_check
    _
  $region15: #{tri_model_forward.39} parent=0 // pred_check_branch
    %16 = sbr.rel (0) target = $region17
  $region16: #{tri_model_forward.39} parent=0 // pred_region
    _
  $region17: #{tri_model_forward.39} parent=0 // pred_fallthru
    _
  %p18 = scmp.eq.s32.totalorder 0, 0
  // Predicated region
  $region18: #{tri_model_forward.39} parent=0 // pred_check
    %p19 = pneg %p18
  $region19: #{tri_model_forward.39} parent=0 // pred_check_branch
    %21 = sbr.rel (%p19) target = $region21
  $region20: #{tri_model_forward.39} parent=0 // pred_region
    %vm22 = vcmask 261120
    %23 = vst.msk [vmem:[#allocation2] sm:$0xff] %vm22, 0.0
    %24 = vst.msk [vmem:[#allocation2 + $0x8] sm:$0xff] %vm22, 0.0
  $region21: #{tri_model_forward.39} parent=0 // pred_fallthru
    _
  %v25 = vld [vmem:[#allocation2] sm:$0xff]
  %v26 = vld [vmem:[#allocation2 + $0x8] sm:$0xff]
  %v27 = vld [vmem:[%s0] sm:$0xf]
  %v28 = vld [vmem:[%s0 + $0x4] sm:$0xf]
  %v29 = vld [vmem:[%s1] sm:$0xf]
  %v30 = vld [vmem:[%s1 + $0x4] sm:$0xf]
  %v31 = vld [vmem:[%s1 + $0x8] sm:$0xf]
  %v32 = vld [vmem:[%s1 + $0xc] sm:$0xf]
  %v35 = vunpack.c.l.b16 %v27
  %v36 = vunpack.c.l.b16 %v28
  %v37 = vpack.c.b16 %v36, %v35
  %v42 = vunpack.c.l.b16 %v29
  %v43 = vunpack.c.l.b16 %v30
  %v44 = vunpack.c.l.b16 %v31
  %v45 = vunpack.c.l.b16 %v32
  %v46 = vpack.c.b16 %v43, %v42
  %v47 = vpack.c.b16 %v45, %v44
  %vm50 = vcmask 261120
  %v52 = vsel %vm50, %v37, 0
  %54 = vmatpush.bf16.msra.mxu0 0
  %55 = vmatpush.bf16.msra.mxu0 0
  %56 = vmatpush.bf16.msra.mxu0 0
  %57 = vmatpush.bf16.msra.mxu0 0
  %58 = vmatpush.bf16.msra.mxu0 0
  %59 = vmatpush.bf16.msra.mxu0 0
  %60 = vmatpush.bf16.msra.mxu0 %v47
  %61 = vmatpush.bf16.msra.mxu0 %v46
  %62 = vmatmul.bf16.gmra.mxu0 %v52
  %v63 = vpop.f32.mrf.mxu0
  %v64 = vadd.f32 0.0, %v63
  %v65 = vpop.f32.mrf.mxu0
  %v66 = vadd.f32 0.0, %v65
  %67 = vdwg.mxu0
  %v68 = vadd.f32 %v25, %v64
  %v69 = vadd.f32 %v26, %v66
  %70 = vst.msk [vmem:[#allocation2] sm:$0xff] %vm50, %v68
  %71 = vst.msk [vmem:[#allocation2 + $0x8] sm:$0xff] %vm50, %v69
  // Predicated region
  $region22: #{tri_model_forward.39} parent=0 // pred_check
    %p72 = pneg %p18
  $region23: #{tri_model_forward.39} parent=0 // pred_check_branch
    %74 = sbr.rel (%p72) target = $region25
  $region24: #{tri_model_forward.39} parent=0 // pred_region
    %v75 = vld [vmem:[#allocation2] sm:$0xff]
    %v76 = vld [vmem:[#allocation2 + $0x8] sm:$0xff]
    %v77 = vld [vmem:[%s2] sm:$0x1]
    %v78 = vunpack.c.l.bf16 %v77
    %v79 = vperm.slane %v78, 0
    %v80 = vadd.f32 %v75, %v79
    %v81 = vadd.f32 %v76, %v79
    %v82 = vld [vmem:[%s3] sm:$0xf]
    %v83 = vld [vmem:[%s3 + $0x4] sm:$0xf]
    %v84 = vunpack.c.l.bf16 %v82
    %v85 = vunpack.c.l.bf16 %v83
    %v86 = vadd.f32 %v80, %v84
    %v87 = vadd.f32 %v81, %v85
    %v88 = vpack.c.bf16 %v86, %v86
    %v89 = vpack.c.bf16 %v87, %v87
    %vm90 = vcmask 257024
    %91 = vst.msk [vmem:[%s4] sm:$0xf] %vm90, %v88
    %92 = vst.msk [vmem:[%s4 + $0x4] sm:$0xf] %vm90, %v89
  $region25: #{tri_model_forward.39} parent=0 // pred_fallthru
    _
  // Predicated region
  $region26: #{tri_model_forward.39} parent=0 // pred_check
    _
  $region27: #{tri_model_forward.39} parent=0 // pred_check_branch
    %94 = sbr.rel (0) target = $region29
  $region28: #{tri_model_forward.39} parent=0 // pred_region
    _
  $region29: #{tri_model_forward.39} parent=0 // pred_fallthru
    _
  // Predicated region
  $region30: #{tri_model_forward.39} parent=0 // pred_check
    _
  $region31: #{tri_model_forward.39} parent=0 // pred_check_branch
    %96 = sbr.rel (0) target = $region33
  $region32: #{tri_model_forward.39} parent=0 // pred_region
    _
  $region33: #{tri_model_forward.39} parent=0 // pred_fallthru
    _

// kernel: tri_model_forward.41
$region0: #{tri_model_forward.41}
  #allocation0 [shape = 'u32[]', space=smem, size = 0x4, offset = 0x4, fixed_abs, tag = 'smem constant byte address 0x4 - core index']
  #allocation1 [shape = 'u32[72,128]{1,0:T(1,128)}', space=vmem, size = 0x9000, scoped, tag = 'internal scratch']
  #allocation2 [shape = 'f32[16,32]{1,0:T(8,128)}', space=vmem, size = 0x2000, scoped, tag = 'scratch operand']
  %s0 = inlined_call_operand.vmem [shape: bf16[16,128], index: 0, kind: input, shape index: {}]
  %s1 = inlined_call_operand.vmem [shape: bf16[128,32], index: 1, kind: input, shape index: {}]
  %s2 = inlined_call_operand.vmem [shape: bf16[1,32], index: 2, kind: input, shape index: {}]
  %s3 = inlined_call_operand.vmem [shape: bf16[16,32], index: 3, kind: input, shape index: {}]
  %s4 = inlined_call_operand.vmem [shape: bf16[16,32], index: 4, kind: output, shape index: {}]
  %s5 = sld [smem:[#allocation0]]
  $region34: #{tri_model_forward.41} parent=0
    _
  %s7 = ssub.s32 1, %s5
  %s8 = scalar_select 0, %s7, %s5
  // Predicated region
  $region2: #{tri_model_forward.41} parent=0 // pred_check
    _
  $region3: #{tri_model_forward.41} parent=0 // pred_check_branch
    %10 = sbr.rel (0) target = $region5
  $region4: #{tri_model_forward.41} parent=0 // pred_region
    _
  $region5: #{tri_model_forward.41} parent=0 // pred_fallthru
    _
  // Predicated region
  $region6: #{tri_model_forward.41} parent=0 // pred_check
    _
  $region7: #{tri_model_forward.41} parent=0 // pred_check_branch
    %12 = sbr.rel (0) target = $region9
  $region8: #{tri_model_forward.41} parent=0 // pred_region
    _
  $region9: #{tri_model_forward.41} parent=0 // pred_fallthru
    _
  // Predicated region
  $region10: #{tri_model_forward.41} parent=0 // pred_check
    _
  $region11: #{tri_model_forward.41} parent=0 // pred_check_branch
    %14 = sbr.rel (0) target = $region13
  $region12: #{tri_model_forward.41} parent=0 // pred_region
    _
  $region13: #{tri_model_forward.41} parent=0 // pred_fallthru
    _
  // Predicated region
  $region14: #{tri_model_forward.41} parent=0 // pred_check
    _
  $region15: #{tri_model_forward.41} parent=0 // pred_check_branch
    %16 = sbr.rel (0) target = $region17
  $region16: #{tri_model_forward.41} parent=0 // pred_region
    _
  $region17: #{tri_model_forward.41} parent=0 // pred_fallthru
    _
  %p17 = scmp.eq.s32.totalorder 0, 0
  // Predicated region
  $region18: #{tri_model_forward.41} parent=0 // pred_check
    %p18 = pneg %p17
  $region19: #{tri_model_forward.41} parent=0 // pred_check_branch
    %20 = sbr.rel (%p18) target = $region21
  $region20: #{tri_model_forward.41} parent=0 // pred_region
    %vm21 = vcmask 261120
    %22 = vst.msk [vmem:[#allocation2] sm:$0xff] %vm21, 0.0
    %23 = vst.msk [vmem:[#allocation2 + $0x8] sm:$0xff] %vm21, 0.0
  $region21: #{tri_model_forward.41} parent=0 // pred_fallthru
    _
  %v24 = vld [vmem:[#allocation2] sm:$0xff]
  %v25 = vld [vmem:[#allocation2 + $0x8] sm:$0xff]
  %v26 = vld [vmem:[%s0] sm:$0xf]
  %v27 = vld [vmem:[%s0 + $0x4] sm:$0xf]
  %v28 = vld [vmem:[%s1] sm:$0xf]
  %v29 = vld [vmem:[%s1 + $0x4] sm:$0xf]
  %v30 = vld [vmem:[%s1 + $0x8] sm:$0xf]
  %v31 = vld [vmem:[%s1 + $0xc] sm:$0xf]
  %v32 = vld [vmem:[%s1 + $0x10] sm:$0xf]
  %v33 = vld [vmem:[%s1 + $0x14] sm:$0xf]
  %v34 = vld [vmem:[%s1 + $0x18] sm:$0xf]
  %v35 = vld [vmem:[%s1 + $0x1c] sm:$0xf]
  %v36 = vld [vmem:[%s1 + $0x20] sm:$0xf]
  %v37 = vld [vmem:[%s1 + $0x24] sm:$0xf]
  %v38 = vld [vmem:[%s1 + $0x28] sm:$0xf]
  %v39 = vld [vmem:[%s1 + $0x2c] sm:$0xf]
  %v40 = vld [vmem:[%s1 + $0x30] sm:$0xf]
  %v41 = vld [vmem:[%s1 + $0x34] sm:$0xf]
  %v42 = vld [vmem:[%s1 + $0x38] sm:$0xf]
  %v43 = vld [vmem:[%s1 + $0x3c] sm:$0xf]
  %v46 = vunpack.c.l.b16 %v26
  %v47 = vunpack.c.l.b16 %v27
  %v48 = vpack.c.b16 %v47, %v46
  %v66 = vunpack.c.l.b16 %v28
  %v67 = vunpack.c.l.b16 %v29
  %v68 = vunpack.c.l.b16 %v30
  %v69 = vunpack.c.l.b16 %v31
  %v70 = vunpack.c.l.b16 %v32
  %v71 = vunpack.c.l.b16 %v33
  %v72 = vunpack.c.l.b16 %v34
  %v73 = vunpack.c.l.b16 %v35
  %v74 = vunpack.c.l.b16 %v36
  %v75 = vunpack.c.l.b16 %v37
  %v76 = vunpack.c.l.b16 %v38
  %v77 = vunpack.c.l.b16 %v39
  %v78 = vunpack.c.l.b16 %v40
  %v79 = vunpack.c.l.b16 %v41
  %v80 = vunpack.c.l.b16 %v42
  %v81 = vunpack.c.l.b16 %v43
  %v82 = vpack.c.b16 %v67, %v66
  %v83 = vpack.c.b16 %v69, %v68
  %v84 = vpack.c.b16 %v71, %v70
  %v85 = vpack.c.b16 %v73, %v72
  %v86 = vpack.c.b16 %v75, %v74
  %v87 = vpack.c.b16 %v77, %v76
  %v88 = vpack.c.b16 %v79, %v78
  %v89 = vpack.c.b16 %v81, %v80
  %98 = vmatpush.bf16.msra.mxu0 %v89
  %99 = vmatpush.bf16.msra.mxu0 %v88
  %100 = vmatpush.bf16.msra.mxu0 %v87
  %101 = vmatpush.bf16.msra.mxu0 %v86
  %102 = vmatpush.bf16.msra.mxu0 %v85
  %103 = vmatpush.bf16.msra.mxu0 %v84
  %104 = vmatpush.bf16.msra.mxu0 %v83
  %105 = vmatpush.bf16.msra.mxu0 %v82
  %106 = vmatmul.bf16.gmra.mxu0 %v48
  %v107 = vpop.f32.mrf.mxu0
  %v108 = vadd.f32 0.0, %v107
  %v109 = vpop.f32.mrf.mxu0
  %v110 = vadd.f32 0.0, %v109
  %111 = vdwg.mxu0
  %v112 = vadd.f32 %v24, %v108
  %v113 = vadd.f32 %v25, %v110
  %vm114 = vcmask 261120
  %115 = vst.msk [vmem:[#allocation2] sm:$0xff] %vm114, %v112
  %116 = vst.msk [vmem:[#allocation2 + $0x8] sm:$0xff] %vm114, %v113
  // Predicated region
  $region22: #{tri_model_forward.41} parent=0 // pred_check
    %p117 = pneg %p17
  $region23: #{tri_model_forward.41} parent=0 // pred_check_branch
    %119 = sbr.rel (%p117) target = $region25
  $region24: #{tri_model_forward.41} parent=0 // pred_region
    %v120 = vld [vmem:[#allocation2] sm:$0xff]
    %v121 = vld [vmem:[#allocation2 + $0x8] sm:$0xff]
    %v122 = vld [vmem:[%s2] sm:$0x1]
    %v123 = vunpack.c.l.bf16 %v122
    %v124 = vperm.slane %v123, 0
    %v125 = vadd.f32 %v120, %v124
    %v126 = vadd.f32 %v121, %v124
    %v127 = vld [vmem:[%s3] sm:$0xf]
    %v128 = vld [vmem:[%s3 + $0x4] sm:$0xf]
    %v129 = vunpack.c.l.bf16 %v127
    %v130 = vunpack.c.l.bf16 %v128
    %v131 = vadd.f32 %v125, %v129
    %v132 = vadd.f32 %v126, %v130
    %v133 = vpack.c.bf16 %v131, %v131
    %v134 = vpack.c.bf16 %v132, %v132
    %vm135 = vcmask 257024
    %136 = vst.msk [vmem:[%s4] sm:$0xf] %vm135, %v133
    %137 = vst.msk [vmem:[%s4 + $0x4] sm:$0xf] %vm135, %v134
  $region25: #{tri_model_forward.41} parent=0 // pred_fallthru
    _
  // Predicated region
  $region26: #{tri_model_forward.41} parent=0 // pred_check
    _
  $region27: #{tri_model_forward.41} parent=0 // pred_check_branch
    %139 = sbr.rel (0) target = $region29
  $region28: #{tri_model_forward.41} parent=0 // pred_region
    _
  $region29: #{tri_model_forward.41} parent=0 // pred_fallthru
    _
  // Predicated region
  $region30: #{tri_model_forward.41} parent=0 // pred_check
    _
  $region31: #{tri_model_forward.41} parent=0 // pred_check_branch
    %141 = sbr.rel (0) target = $region33
  $region32: #{tri_model_forward.41} parent=0 // pred_region
    _
  $region33: #{tri_model_forward.41} parent=0 // pred_fallthru
    _

// kernel: tri_model_forward.40
$region0: #{tri_model_forward.40}
  #allocation0 [shape = 'u32[]', space=smem, size = 0x4, offset = 0x4, fixed_abs, tag = 'smem constant byte address 0x4 - core index']
  #allocation1 [shape = 'u32[72,128]{1,0:T(1,128)}', space=vmem, size = 0x9000, scoped, tag = 'internal scratch']
  #allocation2 [shape = 'bf16[16,32]{1,0:T(8,128)(2,1)}', space=vmem, size = 0x1000, scoped, tag = 'scratch operand']
  %s0 = inlined_call_operand.vmem [shape: bf16[16,32], index: 0, kind: input, shape index: {}]
  %s1 = inlined_call_operand.vmem [shape: bf16[1,32], index: 1, kind: input, shape index: {}]
  %s2 = inlined_call_operand.vmem [shape: bf16[1,32], index: 2, kind: input, shape index: {}]
  %s3 = inlined_call_operand.vmem [shape: bf16[32,128], index: 3, kind: input, shape index: {}]
  %s4 = inlined_call_operand.vmem [shape: bf16[1,128], index: 4, kind: input, shape index: {}]
  %s5 = inlined_call_operand.vmem [shape: bf16[16,128], index: 5, kind: output, shape index: {}]
  %s6 = sld [smem:[#allocation0]]
  $region34: #{tri_model_forward.40} parent=0
    _
  %s8 = ssub.s32 1, %s6
  %s9 = scalar_select 0, %s8, %s6
  // Predicated region
  $region2: #{tri_model_forward.40} parent=0 // pred_check
    _
  $region3: #{tri_model_forward.40} parent=0 // pred_check_branch
    %11 = sbr.rel (0) target = $region5
  $region4: #{tri_model_forward.40} parent=0 // pred_region
    _
  $region5: #{tri_model_forward.40} parent=0 // pred_fallthru
    _
  // Predicated region
  $region6: #{tri_model_forward.40} parent=0 // pred_check
    _
  $region7: #{tri_model_forward.40} parent=0 // pred_check_branch
    %13 = sbr.rel (0) target = $region9
  $region8: #{tri_model_forward.40} parent=0 // pred_region
    _
  $region9: #{tri_model_forward.40} parent=0 // pred_fallthru
    _
  // Predicated region
  $region10: #{tri_model_forward.40} parent=0 // pred_check
    _
  $region11: #{tri_model_forward.40} parent=0 // pred_check_branch
    %15 = sbr.rel (0) target = $region13
  $region12: #{tri_model_forward.40} parent=0 // pred_region
    _
  $region13: #{tri_model_forward.40} parent=0 // pred_fallthru
    _
  // Predicated region
  $region14: #{tri_model_forward.40} parent=0 // pred_check
    _
  $region15: #{tri_model_forward.40} parent=0 // pred_check_branch
    %17 = sbr.rel (0) target = $region17
  $region16: #{tri_model_forward.40} parent=0 // pred_region
    _
  $region17: #{tri_model_forward.40} parent=0 // pred_fallthru
    _
  // Predicated region
  $region18: #{tri_model_forward.40} parent=0 // pred_check
    _
  $region19: #{tri_model_forward.40} parent=0 // pred_check_branch
    %19 = sbr.rel (0) target = $region21
  $region20: #{tri_model_forward.40} parent=0 // pred_region
    _
  $region21: #{tri_model_forward.40} parent=0 // pred_fallthru
    _
  %p21 = scmp.eq.s32.totalorder 0, 0
  // Predicated region
  $region22: #{tri_model_forward.40} parent=0 // pred_check
    %p22 = pneg %p21
  $region23: #{tri_model_forward.40} parent=0 // pred_check_branch
    %24 = sbr.rel (%p22) target = $region25
  $region24: #{tri_model_forward.40} parent=0 // pred_region
    %v25 = vld [vmem:[%s0] sm:$0xf]
    %v26 = vld [vmem:[%s0 + $0x4] sm:$0xf]
    %v27 = vunpack.c.l.bf16 %v25
    %v28 = vunpack.c.l.bf16 %v26
    %vm29 = vcmask 261120
    %v30 = vsel %vm29, %v27, 0.0
    %31 = vadd.xlane.f32.xlu0 %v30
    %v32 = vpop.xlane.xlu0 %31
    %v33 = vsel %vm29, %v28, 0.0
    %34 = vadd.xlane.f32.xlu0 %v33
    %v35 = vpop.xlane.xlu0 %34
    %v36 = vrcp.pop 32.0
    %v37 = vmul.f32 32.0, %v36
    %v38 = vsub.f32 1.0, %v37
    %v39 = vmul.f32 %v36, %v38
    %v40 = vadd.f32 %v36, %v39
    %vm41 = vweird.f32 %v36
    %v42 = vsel %vm41, %v36, %v40
    %v43 = vmul.f32 %v32, %v42
    %v44 = vmul.f32 %v35, %v42
    %v45 = vsub.f32 %v27, %v43
    %v46 = vsub.f32 %v28, %v44
    %v47 = vmul.f32 %v45, %v45
    %v48 = vmul.f32 %v46, %v46
    %v49 = vsel %vm29, %v47, 0.0
    %50 = vadd.xlane.f32.xlu0 %v49
    %v51 = vpop.xlane.xlu0 %50
    %v52 = vsel %vm29, %v48, 0.0
    %53 = vadd.xlane.f32.xlu0 %v52
    %v54 = vpop.xlane.xlu0 %53
    %v55 = vmul.f32 %v51, %v42
    %v56 = vmul.f32 %v54, %v42
    %v57 = vadd.f32 %v55, 1e-12
    %v58 = vadd.f32 %v56, 1e-12
    %v59 = vrsqrt.pop %v57
    %v60 = vmul.f32 %v59, %v57
    %v61 = vmul.f32 %v60, %v59
    %v62 = vmul.f32 0.5, %v61
    %v63 = vsub.f32 1.5, %v62
    %v64 = vmul.f32 %v59, %v63
    %vm65 = vweird.f32 %v57
    %vm66 = vweird.f32 %v59
    %vm67 = vmor %vm65, %vm66
    %v68 = vsel %vm67, %v59, %v64
    %v69 = vrsqrt.pop %v58
    %v70 = vmul.f32 %v69, %v58
    %v71 = vmul.f32 %v70, %v69
    %v72 = vmul.f32 0.5, %v71
    %v73 = vsub.f32 1.5, %v72
    %v74 = vmul.f32 %v69, %v73
    %vm75 = vweird.f32 %v58
    %vm76 = vweird.f32 %v69
    %vm77 = vmor %vm75, %vm76
    %v78 = vsel %vm77, %v69, %v74
    %v79 = vmul.f32 %v45, %v68
    %v80 = vmul.f32 %v46, %v78
    %v81 = vld [vmem:[%s1] sm:$0x1]
    %v82 = vunpack.c.l.bf16 %v81
    %v83 = vperm.slane %v82, 0
    %v84 = vmul.f32 %v79, %v83
    %v85 = vmul.f32 %v80, %v83
    %v86 = vld [vmem:[%s2] sm:$0x1]
    %v87 = vunpack.c.l.bf16 %v86
    %v88 = vperm.slane %v87, 0
    %v89 = vadd.f32 %v84, %v88
    %v90 = vadd.f32 %v85, %v88
    %v91 = vpack.c.bf16 %v89, %v89
    %v92 = vpack.c.bf16 %v90, %v90
    %vm93 = vcmask 257024
    %94 = vst.msk [vmem:[#allocation2] sm:$0xf] %vm93, %v91
    %95 = vst.msk [vmem:[#allocation2 + $0x4] sm:$0xf] %vm93, %v92
  $region25: #{tri_model_forward.40} parent=0 // pred_fallthru
    _
  %v96 = vld [vmem:[#allocation2] sm:$0xf]
  %v97 = vld [vmem:[#allocation2 + $0x4] sm:$0xf]
  %v98 = vld [vmem:[%s3] sm:$0xf]
  %v99 = vld [vmem:[%s3 + $0x4] sm:$0xf]
  %v100 = vld [vmem:[%s3 + $0x8] sm:$0xf]
  %v101 = vld [vmem:[%s3 + $0xc] sm:$0xf]
  %v102 = vld [vmem:[%s4] sm:$0x1]
  %v103 = vunpack.c.l.bf16 %v102
  %v104 = vperm.slane %v103, 0
  %v107 = vunpack.c.l.b16 %v96
  %v108 = vunpack.c.l.b16 %v97
  %v109 = vpack.c.b16 %v108, %v107
  %v114 = vunpack.c.l.b16 %v98
  %v115 = vunpack.c.l.b16 %v99
  %v116 = vunpack.c.l.b16 %v100
  %v117 = vunpack.c.l.b16 %v101
  %v118 = vpack.c.b16 %v115, %v114
  %v119 = vpack.c.b16 %v117, %v116
  %vm122 = vcmask 261120
  %v124 = vsel %vm122, %v109, 0
  %126 = vmatpush.bf16.msra.mxu0 0
  %127 = vmatpush.bf16.msra.mxu0 0
  %128 = vmatpush.bf16.msra.mxu0 0
  %129 = vmatpush.bf16.msra.mxu0 0
  %130 = vmatpush.bf16.msra.mxu0 0
  %131 = vmatpush.bf16.msra.mxu0 0
  %132 = vmatpush.bf16.msra.mxu0 %v119
  %133 = vmatpush.bf16.msra.mxu0 %v118
  %134 = vmatmul.bf16.gmra.mxu0 %v124
  %v135 = vpop.f32.mrf.mxu0
  %v136 = vadd.f32 %v104, %v135
  %v137 = vpop.f32.mrf.mxu0
  %v138 = vadd.f32 %v104, %v137
  %139 = vdwg.mxu0
  %v140 = vmul.f32 %v136, %v136
  %v141 = vmul.f32 %v138, %v138
  %v142 = vmul.f32 %v136, %v140
  %v143 = vmul.f32 %v138, %v141
  %v144 = vmul.f32 %v142, 0.044715
  %v145 = vmul.f32 %v143, 0.044715
  %v146 = vadd.f32 %v136, %v144
  %v147 = vadd.f32 %v138, %v145
  %v148 = vmul.f32 %v146, 0.7978846
  %v149 = vmul.f32 %v147, 0.7978846
  %v150 = vtanh.pop %v148
  %v151 = vtanh.pop %v149
  %v152 = vadd.f32 %v150, 1.0
  %v153 = vadd.f32 %v151, 1.0
  %v154 = vmul.f32 %v152, 0.5
  %v155 = vmul.f32 %v153, 0.5
  %v156 = vmul.f32 %v136, %v154
  %v157 = vmul.f32 %v138, %v155
  %v158 = vpack.c.bf16 %v156, %v156
  %v159 = vpack.c.bf16 %v157, %v157
  %160 = vst [vmem:[%s5] sm:$0xf] %v158
  %161 = vst [vmem:[%s5 + $0x4] sm:$0xf] %v159
  // Predicated region
  $region26: #{tri_model_forward.40} parent=0 // pred_check
    _
  $region27: #{tri_model_forward.40} parent=0 // pred_check_branch
    %163 = sbr.rel (0) target = $region29
  $region28: #{tri_model_forward.40} parent=0 // pred_region
    _
  $region29: #{tri_model_forward.40} parent=0 // pred_fallthru
    _
  // Predicated region
  $region30: #{tri_model_forward.40} parent=0 // pred_check
    _
  $region31: #{tri_model_forward.40} parent=0 // pred_check_branch
    %165 = sbr.rel (0) target = $region33
  $region32: #{tri_model_forward.40} parent=0 // pred_region
    _
  $region33: #{tri_model_forward.40} parent=0 // pred_fallthru
    _

// kernel: tri_model_forward.47
$region0: #{tri_model_forward.47}
  #allocation0 [shape = 'u32[]', space=smem, size = 0x4, offset = 0x4, fixed_abs, tag = 'smem constant byte address 0x4 - core index']
  #allocation1 [shape = 'u32[72,128]{1,0:T(1,128)}', space=vmem, size = 0x9000, scoped, tag = 'internal scratch']
  %s0 = inlined_call_operand.vmem [shape: bf16[2,8,32], index: 0, kind: input, shape index: {}]
  %s1 = inlined_call_operand.vmem [shape: bf16[1,32], index: 1, kind: input, shape index: {}]
  %s2 = inlined_call_operand.vmem [shape: bf16[1,32], index: 2, kind: input, shape index: {}]
  %s3 = inlined_call_operand.vmem [shape: bf16[32,128], index: 3, kind: input, shape index: {}]
  %s4 = inlined_call_operand.vmem [shape: bf16[1,128], index: 4, kind: input, shape index: {}]
  %s5 = inlined_call_operand.vmem [shape: f32[2,128], index: 5, kind: output, shape index: {}]
  %s6 = sld [smem:[#allocation0]]
  $region30: #{tri_model_forward.47} parent=0
    _
  %s8 = ssub.s32 1, %s6
  %s9 = scalar_select 0, %s8, %s6
  // Predicated region
  $region2: #{tri_model_forward.47} parent=0 // pred_check
    _
  $region3: #{tri_model_forward.47} parent=0 // pred_check_branch
    %11 = sbr.rel (0) target = $region5
  $region4: #{tri_model_forward.47} parent=0 // pred_region
    _
  $region5: #{tri_model_forward.47} parent=0 // pred_fallthru
    _
  // Predicated region
  $region6: #{tri_model_forward.47} parent=0 // pred_check
    _
  $region7: #{tri_model_forward.47} parent=0 // pred_check_branch
    %13 = sbr.rel (0) target = $region9
  $region8: #{tri_model_forward.47} parent=0 // pred_region
    _
  $region9: #{tri_model_forward.47} parent=0 // pred_fallthru
    _
  // Predicated region
  $region10: #{tri_model_forward.47} parent=0 // pred_check
    _
  $region11: #{tri_model_forward.47} parent=0 // pred_check_branch
    %15 = sbr.rel (0) target = $region13
  $region12: #{tri_model_forward.47} parent=0 // pred_region
    _
  $region13: #{tri_model_forward.47} parent=0 // pred_fallthru
    _
  // Predicated region
  $region14: #{tri_model_forward.47} parent=0 // pred_check
    _
  $region15: #{tri_model_forward.47} parent=0 // pred_check_branch
    %17 = sbr.rel (0) target = $region17
  $region16: #{tri_model_forward.47} parent=0 // pred_region
    _
  $region17: #{tri_model_forward.47} parent=0 // pred_fallthru
    _
  // Predicated region
  $region18: #{tri_model_forward.47} parent=0 // pred_check
    _
  $region19: #{tri_model_forward.47} parent=0 // pred_check_branch
    %19 = sbr.rel (0) target = $region21
  $region20: #{tri_model_forward.47} parent=0 // pred_region
    _
  $region21: #{tri_model_forward.47} parent=0 // pred_fallthru
    _
  %v21 = vld [vmem:[%s0] sm:$0xf]
  %v22 = vld [vmem:[%s0 + $0x4] sm:$0xf]
  %v23 = vunpack.c.l.bf16 %v21
  %v24 = vunpack.c.l.bf16 %v22
  %vm25 = vcmask 261120
  %v26 = vsel %vm25, %v23, 0.0
  %v27 = vrot.slane %v26, 4
  %v28 = vadd.f32 %v26, %v27
  %v29 = vrot.slane %v28, 2
  %v30 = vadd.f32 %v28, %v29
  %v31 = vrot.slane %v30, 1
  %v32 = vadd.f32 %v30, %v31
  %v33 = vsel %vm25, %v24, 0.0
  %v34 = vrot.slane %v33, 4
  %v35 = vadd.f32 %v33, %v34
  %v36 = vrot.slane %v35, 2
  %v37 = vadd.f32 %v35, %v36
  %v38 = vrot.slane %v37, 1
  %v39 = vadd.f32 %v37, %v38
  %v40 = vrcp.pop 8.0
  %v41 = vmul.f32 8.0, %v40
  %v42 = vsub.f32 1.0, %v41
  %v43 = vmul.f32 %v40, %v42
  %v44 = vadd.f32 %v40, %v43
  %vm45 = vweird.f32 %v40
  %v46 = vsel %vm45, %v40, %v44
  %v47 = vmul.f32 %v32, %v46
  %v48 = vmul.f32 %v39, %v46
  %vm51 = vcmask 1041409
  %v52 = vsel %vm51, %v48, %v47
  %vm54 = vcmask 254976
  %v55 = vsel %vm54, %v52, 0.0
  %56 = vadd.xlane.f32.xlu0 %v55
  %v57 = vpop.xlane.xlu0 %56
  %v58 = vrcp.pop 32.0
  %v59 = vmul.f32 32.0, %v58
  %v60 = vsub.f32 1.0, %v59
  %v61 = vmul.f32 %v58, %v60
  %v62 = vadd.f32 %v58, %v61
  %vm63 = vweird.f32 %v58
  %v64 = vsel %vm63, %v58, %v62
  %v65 = vmul.f32 %v57, %v64
  %v67 = vrot.slane %v65, 1
  %v70 = vsub.f32 %v47, %v65
  %v71 = vsub.f32 %v48, %v67
  %v72 = vmul.f32 %v70, %v70
  %v73 = vmul.f32 %v71, %v71
  %v76 = vrot.slane %v73, 7
  %v77 = vsel %vm51, %v76, %v72
  %v79 = vsel %vm54, %v77, 0.0
  %80 = vadd.xlane.f32.xlu0 %v79
  %v81 = vpop.xlane.xlu0 %80
  %v82 = vmul.f32 %v81, %v64
  %v83 = vadd.f32 %v82, 1e-12
  %v84 = vrsqrt.pop %v83
  %v85 = vmul.f32 %v84, %v83
  %v86 = vmul.f32 %v85, %v84
  %v87 = vmul.f32 0.5, %v86
  %v88 = vsub.f32 1.5, %v87
  %v89 = vmul.f32 %v84, %v88
  %vm90 = vweird.f32 %v83
  %vm91 = vweird.f32 %v84
  %vm92 = vmor %vm90, %vm91
  %v93 = vsel %vm92, %v84, %v89
  %v95 = vrot.slane %v93, 1
  %v98 = vmul.f32 %v70, %v93
  %v99 = vmul.f32 %v71, %v95
  %v100 = vld [vmem:[%s1] sm:$0x1]
  %v101 = vunpack.c.l.bf16 %v100
  %v102 = vperm.slane %v101, 0
  %v103 = vmul.f32 %v98, %v102
  %v104 = vmul.f32 %v99, %v102
  %v105 = vld [vmem:[%s2] sm:$0x1]
  %v106 = vunpack.c.l.bf16 %v105
  %v107 = vperm.slane %v106, 0
  %v108 = vadd.f32 %v103, %v107
  %v109 = vadd.f32 %v104, %v107
  %v110 = vpack.c.bf16 %v108, %v108
  %v111 = vpack.c.bf16 %v109, %v109
  %v112 = vld [vmem:[%s3] sm:$0xf]
  %v113 = vld [vmem:[%s3 + $0x4] sm:$0xf]
  %v114 = vld [vmem:[%s3 + $0x8] sm:$0xf]
  %v115 = vld [vmem:[%s3 + $0xc] sm:$0xf]
  %v116 = vld [vmem:[%s4] sm:$0x1]
  %v117 = vunpack.c.l.bf16 %v116
  %v118 = vperm.slane %v117, 0
  %v121 = vunpack.c.l.b16 %v110
  %v122 = vunpack.c.l.b16 %v111
  %v123 = vrot.slane %v122, 7
  %v124 = vsel %vm51, %v123, %v121
  %v125 = vpack.c.b16 %v124, %v124
  %v130 = vunpack.c.l.b16 %v112
  %v131 = vunpack.c.l.b16 %v113
  %v132 = vunpack.c.l.b16 %v114
  %v133 = vunpack.c.l.b16 %v115
  %v134 = vpack.c.b16 %v131, %v130
  %v135 = vpack.c.b16 %v133, %v132
  %v139 = vsel %vm25, %v125, 0
  %141 = vmatpush.bf16.msra.mxu0 0
  %142 = vmatpush.bf16.msra.mxu0 0
  %143 = vmatpush.bf16.msra.mxu0 0
  %144 = vmatpush.bf16.msra.mxu0 0
  %145 = vmatpush.bf16.msra.mxu0 0
  %146 = vmatpush.bf16.msra.mxu0 0
  %147 = vmatpush.bf16.msra.mxu0 %v135
  %148 = vmatpush.bf16.msra.mxu0 %v134
  %149 = vmatmul.bf16.gmra.mxu0 %v139
  %v150 = vpop.f32.mrf.mxu0
  %v151 = vadd.f32 %v118, %v150
  %v152 = vpop.f32.mrf.mxu0
  %153 = vdwg.mxu0
  %154 = vst [vmem:[%s5] sm:$0x3] %v151
  // Predicated region
  $region22: #{tri_model_forward.47} parent=0 // pred_check
    _
  $region23: #{tri_model_forward.47} parent=0 // pred_check_branch
    %156 = sbr.rel (0) target = $region25
  $region24: #{tri_model_forward.47} parent=0 // pred_region
    _
  $region25: #{tri_model_forward.47} parent=0 // pred_fallthru
    _
  // Predicated region
  $region26: #{tri_model_forward.47} parent=0 // pred_check
    _
  $region27: #{tri_model_forward.47} parent=0 // pred_check_branch
    %158 = sbr.rel (0) target = $region29
  $region28: #{tri_model_forward.47} parent=0 // pred_region
    _
  $region29: #{tri_model_forward.47} parent=0 // pred_fallthru
    _

// kernel: tri_model_forward.50
$region0: #{tri_model_forward.50}
  #allocation0 [shape = 'u32[]', space=smem, size = 0x4, offset = 0x4, fixed_abs, tag = 'smem constant byte address 0x4 - core index']
  #allocation1 [shape = 'u32[72,128]{1,0:T(1,128)}', space=vmem, size = 0x9000, scoped, tag = 'internal scratch']
  %s0 = inlined_call_operand.vmem [shape: bf16[2,4,3,8,16], index: 0, kind: input, shape index: {}]
  %s1 = inlined_call_operand.vmem [shape: bf16[2,4,8,16], index: 1, kind: output, shape index: {0}]
  %s2 = inlined_call_operand.hbm [shape: bf16[2,4,8,8], index: 2, kind: output, shape index: {1}]
  %3 = xla_tuple %s1, %s2
  %s4 = sld [smem:[#allocation0]]
  $region45: #{tri_model_forward.50} parent=0
    _
  %s6 = ssub.s32 1, %s4
  %s7 = scalar_select 0, %s6, %s4
  $region1: #{tri_model_forward.50} parent=0
    #allocation2 [shape = 'u8[4096]{0}', space=vmem, size = 0x1000, scoped, tag = 'output window, operand 1']
    #allocation3 [shape = 's32[2]{0}', space=sflag, size = 0x8, scoped, tag = 'scoped memory for tri_model_forward.50']
    %8 = vsyncpa [#allocation3], 0
    %s9 = scalar_lea.sflag [#allocation3], 1
    %10 = vsyncpa %s9, 0
    loop: start=0, step=1, limit=10
    $region2: #{tri_model_forward.50} parent=1 // loop_pre_header
      _
    $region3: #{tri_model_forward.50} parent=1 // loop_header
      %s12 = sphi 0, %s16
      %p13 = scmp.ge.s32.totalorder %s12, 10
      %s19 = sphi 0, %s31
      %s20 = sphi 0, %s27
      %s21 = sphi 0, %s19
      %s22 = sphi 0, %s20
      %s23 = sphi 0, %s21
      %s24 = sphi 0, %s22
      %s36 = sphi 0, %s38
      %s39 = sphi 0, %s36
      %s40 = sphi 0, %s39
      %s56 = sphi 0, %s40
      %s64 = sphi 0, %s66
      %s67 = sphi 0, %s64
      %s68 = sphi 0, %s67
      %s84 = sphi 0, %s68
      %s92 = sphi 0, %s94
      %s95 = sphi 0, %s92
      %s96 = sphi 0, %s95
      %s112 = sphi 0, %s96
    $region4: #{tri_model_forward.50} parent=1 // loop_header_branch
      %15 = sbr.rel (%p13) target = $region8
    $region5: #{tri_model_forward.50} parent=1 // loop_body
      %s17 = ssub.s32 %s12, 1
      %s18 = ssub.s32 %s12, 2
      %s25 = sadd.s32 1, %s20
      %p26 = scmp.ge.s32.totalorder %s25, 4
      %s27 = scalar_select %p26, 0, %s25
      %s28 = sadd.s32 1, %s19
      %s29 = scalar_select %p26, %s28, %s19
      %p30 = scmp.ge.s32.totalorder %s29, 2
      %s31 = scalar_select %p30, 0, %s29
      %s32 = ssub.s32 %s19, %s31
      %s33 = ssub.s32 %s20, %s27
      %s34 = sor.u32 %s32, %s33
      %p35 = scmp.eq.s32.totalorder %s34, 0
      %s37 = sadd.s32 %s36, 1
      %s38 = scalar_select %p35, %s36, %s37
      %p41 = pneg %p35
      %p42 = scmp.eq.s32.totalorder %s12, 7
      %p43 = por %p41, %p42
      %p44 = scmp.ne.s32.totalorder %s36, %s39
      %p45 = scmp.eq.s32.totalorder %s12, 0
      %p46 = por %p44, %p45
      %p47 = scmp.ne.s32.totalorder %s36, %s39
      %p48 = scmp.eq.s32.totalorder %s17, 7
      %p49 = por %p47, %p48
      %p50 = scmp.ne.s32.totalorder %s39, %s40
      %p51 = scmp.eq.s32.totalorder %s17, 0
      %p52 = por %p50, %p51
      %p53 = scmp.ne.s32.totalorder %s39, %s40
      %p54 = scmp.eq.s32.totalorder %s18, 7
      %p55 = por %p53, %p54
      %p57 = scmp.ne.s32.totalorder %s40, %s56
      %p58 = scmp.eq.s32.totalorder %s18, 0
      %p59 = por %p57, %p58
      %s60 = ssub.s32 %s19, %s31
      %s61 = ssub.s32 %s20, %s27
      %s62 = sor.u32 %s60, %s61
      %p63 = scmp.eq.s32.totalorder %s62, 0
      %s65 = sadd.s32 %s64, 1
      %s66 = scalar_select %p63, %s64, %s65
      %p69 = pneg %p63
      %p70 = scmp.eq.s32.totalorder %s12, 7
      %p71 = por %p69, %p70
      %p72 = scmp.ne.s32.totalorder %s64, %s67
      %p73 = scmp.eq.s32.totalorder %s12, 0
      %p74 = por %p72, %p73
      %p75 = scmp.ne.s32.totalorder %s64, %s67
      %p76 = scmp.eq.s32.totalorder %s17, 7
      %p77 = por %p75, %p76
      %p78 = scmp.ne.s32.totalorder %s67, %s68
      %p79 = scmp.eq.s32.totalorder %s17, 0
      %p80 = por %p78, %p79
      %p81 = scmp.ne.s32.totalorder %s67, %s68
      %p82 = scmp.eq.s32.totalorder %s18, 7
      %p83 = por %p81, %p82
      %p85 = scmp.ne.s32.totalorder %s68, %s84
      %p86 = scmp.eq.s32.totalorder %s18, 0
      %p87 = por %p85, %p86
      %s88 = ssub.s32 %s19, %s31
      %s89 = ssub.s32 %s20, %s27
      %s90 = sor.u32 %s88, %s89
      %p91 = scmp.eq.s32.totalorder %s90, 0
      %s93 = sadd.s32 %s92, 1
      %s94 = scalar_select %p91, %s92, %s93
      %p97 = pneg %p91
      %p98 = scmp.eq.s32.totalorder %s12, 7
      %p99 = por %p97, %p98
      %p100 = scmp.ne.s32.totalorder %s92, %s95
      %p101 = scmp.eq.s32.totalorder %s12, 0
      %p102 = por %p100, %p101
      %p103 = scmp.ne.s32.totalorder %s92, %s95
      %p104 = scmp.eq.s32.totalorder %s17, 7
      %p105 = por %p103, %p104
      %p106 = scmp.ne.s32.totalorder %s95, %s96
      %p107 = scmp.eq.s32.totalorder %s17, 0
      %p108 = por %p106, %p107
      %p109 = scmp.ne.s32.totalorder %s95, %s96
      %p110 = scmp.eq.s32.totalorder %s18, 7
      %p111 = por %p109, %p110
      %p113 = scmp.ne.s32.totalorder %s96, %s112
      %p114 = scmp.eq.s32.totalorder %s18, 0
      %p115 = por %p113, %p114
      %p116 = scmp.le.s32.totalorder 1, %s12
      %p117 = scmp.lt.s32.totalorder %s12, 9
      %p118 = pnand %p116, %p117
      %p119 = pneg %p118
      // Predicated region
      $region9: #{tri_model_forward.50} parent=5 // pred_check
        _
      $region10: #{tri_model_forward.50} parent=5 // pred_check_branch
        %121 = sbr.rel (%p118) target = $region12
      $region11: #{tri_model_forward.50} parent=5 // pred_region
        %s122 = ssub.s32 %s12, 1
      $region12: #{tri_model_forward.50} parent=5 // pred_fallthru
        _
      %p123 = scmp.lt.s32.totalorder %s12, 8
      // Predicated region
      $region13: #{tri_model_forward.50} parent=5 // pred_check
        %p124 = pneg %p123
      $region14: #{tri_model_forward.50} parent=5 // pred_check_branch
        %126 = sbr.rel (%p124) target = $region16
      $region15: #{tri_model_forward.50} parent=5 // pred_region
        // Predicated region
        $region17: #{tri_model_forward.50} parent=15 // pred_check
          %p127 = pneg %p46
        $region18: #{tri_model_forward.50} parent=15 // pred_check_branch
          %129 = sbr.rel (%p127) target = $region20
        $region19: #{tri_model_forward.50} parent=15 // pred_region
          %p130 = scmp.lt.s32.totalorder %s19, 1
          %s131 = scalar_select %p130, %s19, 1
          %p132 = scmp.lt.s32.totalorder %s20, 3
          %s133 = scalar_select %p132, %s20, 3
          %s134 = smul.addr %s133, 3
          %s135 = smul.addr %s131, 12
          %s136 = sadd.s32 %s134, %s135
          %s137 = smul.addr %s136, 4
          %s138 = scalar_lea.vmem %s0, %s137
        $region20: #{tri_model_forward.50} parent=15 // pred_fallthru
          _
      $region16: #{tri_model_forward.50} parent=5 // pred_fallthru
        _
      %p139 = scmp.le.s32.totalorder 1, %s12
      %p140 = scmp.lt.s32.totalorder %s12, 9
      %p141 = pnand %p139, %p140
      %p142 = pneg %p141
      // Predicated region
      $region21: #{tri_model_forward.50} parent=5 // pred_check
        _
      $region22: #{tri_model_forward.50} parent=5 // pred_check_branch
        %144 = sbr.rel (%p141) target = $region24
      $region23: #{tri_model_forward.50} parent=5 // pred_region
        %s145 = ssub.s32 %s12, 1
        %p146 = scmp.lt.s32.totalorder %s21, 1
        %s147 = scalar_select %p146, %s21, 1
        %p148 = scmp.lt.s32.totalorder %s22, 3
        %s149 = scalar_select %p148, %s22, 3
        %s150 = smul.addr %s149, 3
        %s151 = smul.addr %s147, 12
        %s152 = sadd.s32 %s150, %s151
        %s153 = smul.addr %s152, 4
        %s154 = scalar_lea.vmem %s0, %s153
        %p155 = pneg %p52
        %p156 = pneg %p49
        %p157 = pneg %p80
        %p158 = pneg %p77
        %p159 = scmp.lt.s32.totalorder %s21, 1
        %s160 = scalar_select %p159, %s21, 1
        %p161 = scmp.lt.s32.totalorder %s22, 3
        %s162 = scalar_select %p161, %s22, 3
        %s163 = smul.addr %s160, 4
        %s164 = sadd.s32 %s162, %s163
        %s165 = smul.addr %s164, 4
        %s166 = scalar_lea.vmem %s1, %s165
        %p167 = pneg %p108
        %p168 = pneg %p105
        %s169 = sand.u32 %s95, 1
        %s170 = scalar_lea.sflag [#allocation3], %s169
        %s171 = sand.u32 %s95, 1
        %s172 = smul.addr %s171, 4
        %s173 = scalar_lea.vmem [#allocation2], %s172
        %p174 = scmp.lt.s32.totalorder %s21, 1
        %s175 = scalar_select %p174, %s21, 1
        %p176 = scmp.lt.s32.totalorder %s22, 3
        %s177 = scalar_select %p176, %s22, 3
        %s178 = smul.addr %s177, 3
        %s179 = smul.addr %s175, 12
        %s180 = sadd.s32 %s178, %s179
        %s181 = smul.addr %s180, 4
        %s182 = scalar_lea.vmem %s0, %s181
        %p183 = scmp.lt.s32.totalorder %s21, 1
        %s184 = scalar_select %p183, %s21, 1
        %p185 = scmp.lt.s32.totalorder %s22, 3
        %s186 = scalar_select %p185, %s22, 3
        %s187 = smul.addr %s184, 4
        %s188 = sadd.s32 %s186, %s187
        %s189 = smul.addr %s188, 4
        %s190 = scalar_lea.vmem %s1, %s189
        %v192 = vld [vmem:[%s182] sm:$0xf]
        %s193 = scalar_lea.vmem %s182, 4
        %v194 = vld [vmem:[%s193] sm:$0xf]
        %s195 = scalar_lea.vmem %s182, 8
        %v196 = vld [vmem:[%s195] sm:$0xf]
        %vm197 = vcmask 130048
        %v199 = vsel %vm197, %v192, 0
        %v202 = vsel %vm197, %v194, 0
        %204 = vmatpush.bf16.xpose.msra.mxu0 0
        %205 = vmatpush.bf16.xpose.msra.mxu0 0
        %206 = vmatpush.bf16.xpose.msra.mxu0 0
        %207 = vmatpush.bf16.xpose.msra.mxu0 0
        %208 = vmatpush.bf16.xpose.msra.mxu0 0
        %209 = vmatpush.bf16.xpose.msra.mxu0 0
        %210 = vmatpush.bf16.xpose.msra.mxu0 0
        %211 = vmatpush.bf16.xpose.msra.mxu0 %v202
        %212 = vmatmul.bf16.gmra.mxu0 %v199
        %v213 = vpop.f32.mrf.mxu0
        %v214 = vadd.f32 0.0, %v213
        %v215 = vpop.f32.mrf.mxu0
        %216 = vdwg.mxu0
        %v217 = vmul.f32 %v214, 0.25
        %vm218 = vcmask 64512
        %v219 = vsel %vm218, %v217, -inf
        %220 = vmax.xlane.f32.xlu0 %v219
        %v221 = vpop.xlane.xlu0 %220
        %v222 = vsub.f32 %v217, %v221
        %v223 = vmul.f32 %v222, 1.442695
        %v224 = vpow.pop %v223
        %v225 = vsel %vm218, %v224, 0.0
        %226 = vadd.xlane.f32.xlu0 %v225
        %v227 = vpop.xlane.xlu0 %226
        %v228 = vrcp.pop %v227
        %v229 = vmul.f32 %v227, %v228
        %v230 = vsub.f32 1.0, %v229
        %v231 = vmul.f32 %v228, %v230
        %v232 = vadd.f32 %v228, %v231
        %vm233 = vweird.f32 %v227
        %vm234 = vweird.f32 %v228
        %vm235 = vmor %vm233, %vm234
        %v236 = vsel %vm235, %v228, %v232
        %v237 = vand.u32 2147483647, %v227
        %vm238 = vcmp.eq.f32.partialorder %v237, 8.507059e+37
        %v239 = vand.u32 %v227, 2147483648
        %v240 = vor.u32 1.1754944e-38, %v239
        %v241 = vsel %vm238, %v240, %v236
        %v242 = vmul.f32 %v224, %v241
        %v243 = vpack.c.bf16 %v242, %v242
        %vm244 = vcmask 60416
        %245 = vst.msk [vmem:[%s173] sm:$0xf] %vm244, %v243
        %v247 = vsel %vm218, %v243, 0
        %vm249 = vcmask 1043456
        %v251 = vsel %vm249, %v196, 0
        %253 = vmatpush.bf16.msra.mxu0 0
        %254 = vmatpush.bf16.msra.mxu0 0
        %255 = vmatpush.bf16.msra.mxu0 0
        %256 = vmatpush.bf16.msra.mxu0 0
        %257 = vmatpush.bf16.msra.mxu0 0
        %258 = vmatpush.bf16.msra.mxu0 0
        %259 = vmatpush.bf16.msra.mxu0 0
        %260 = vmatpush.bf16.msra.mxu0 %v251
        %261 = vmatmul.bf16.gmra.mxu0 %v247
        %v262 = vpop.f32.mrf.mxu0
        %v263 = vadd.f32 0.0, %v262
        %v264 = vpop.f32.mrf.mxu0
        %265 = vdwg.mxu0
        %v266 = vpack.c.bf16 %v263, %v263
        %vm267 = vcmask 125952
        %268 = vst.msk [vmem:[%s190] sm:$0xf] %vm267, %v266
        %p269 = scmp.lt.s32.totalorder %s21, 1
        %s270 = scalar_select %p269, %s21, 1
        %p271 = scmp.lt.s32.totalorder %s22, 3
        %s272 = scalar_select %p271, %s22, 3
        %s273 = smul.addr %s270, 4
        %s274 = sadd.s32 %s272, %s273
        %s275 = smul.addr %s274, 4
        %s276 = scalar_lea.vmem %s1, %s275
        %s277 = sand.u32 %s95, 1
        %s278 = scalar_lea.sflag [#allocation3], %s277
        %s279 = sand.u32 %s95, 1
        %s280 = smul.addr %s279, 4
        %s281 = scalar_lea.vmem [#allocation2], %s280
        // Predicated region
        $region25: #{tri_model_forward.50} parent=23 // pred_check
          %p282 = pneg %p77
        $region26: #{tri_model_forward.50} parent=23 // pred_check_branch
          %284 = sbr.rel (%p282) target = $region28
        $region27: #{tri_model_forward.50} parent=23 // pred_region
          _
        $region28: #{tri_model_forward.50} parent=23 // pred_fallthru
          _
        // Predicated region
        $region29: #{tri_model_forward.50} parent=23 // pred_check
          %p285 = pneg %p105
        $region30: #{tri_model_forward.50} parent=23 // pred_check_branch
          %287 = sbr.rel (%p285) target = $region32
        $region31: #{tri_model_forward.50} parent=23 // pred_region
          %289 = vsyncadd %s278, 0
          %s290 = smul.addr %s21, 4
          %s291 = sadd.s32 %s22, %s290
          %s292 = smul.addr %s291, 4
          %s293 = scalar_lea.hbm %s2, %s292
          %s295 = sshll.u32 %s281, 4
          %s296 = int_to_ptr.vmem [resolvable:$true] %s295
          %s297 = sshll.u32 %s293, 4
          %s298 = int_to_ptr.hbm [resolvable:$true] %s297
          %300 = dma.vmem_to_hbm [thread:$0]  %s296, 64, %s298, %s278
        $region32: #{tri_model_forward.50} parent=23 // pred_fallthru
          _
      $region24: #{tri_model_forward.50} parent=5 // pred_fallthru
        _
      %p301 = scmp.le.s32.totalorder 2, %s12
      // Predicated region
      $region33: #{tri_model_forward.50} parent=5 // pred_check
        %p302 = pneg %p301
      $region34: #{tri_model_forward.50} parent=5 // pred_check_branch
        %304 = sbr.rel (%p302) target = $region36
      $region35: #{tri_model_forward.50} parent=5 // pred_region
        %s305 = ssub.s32 %s12, 2
        // Predicated region
        $region37: #{tri_model_forward.50} parent=35 // pred_check
          %p306 = pneg %p83
        $region38: #{tri_model_forward.50} parent=35 // pred_check_branch
          %308 = sbr.rel (%p306) target = $region40
        $region39: #{tri_model_forward.50} parent=35 // pred_region
          %p309 = scmp.lt.s32.totalorder %s23, 1
          %s310 = scalar_select %p309, %s23, 1
          %p311 = scmp.lt.s32.totalorder %s24, 3
          %s312 = scalar_select %p311, %s24, 3
          %s313 = smul.addr %s310, 4
          %s314 = sadd.s32 %s312, %s313
          %s315 = smul.addr %s314, 4
          %s316 = scalar_lea.vmem %s1, %s315
        $region40: #{tri_model_forward.50} parent=35 // pred_fallthru
          _
        // Predicated region
        $region41: #{tri_model_forward.50} parent=35 // pred_check
          %p317 = pneg %p111
        $region42: #{tri_model_forward.50} parent=35 // pred_check_branch
          %319 = sbr.rel (%p317) target = $region44
        $region43: #{tri_model_forward.50} parent=35 // pred_region
          %s320 = sand.u32 %s96, 1
          %s321 = scalar_lea.sflag [#allocation3], %s320
          %s322 = sand.u32 %s96, 1
          %s323 = smul.addr %s322, 4
          %s324 = scalar_lea.vmem [#allocation2], %s323
          %326 = dma.done %s321, 64
        $region44: #{tri_model_forward.50} parent=35 // pred_fallthru
          _
      $region36: #{tri_model_forward.50} parent=5 // pred_fallthru
        _
    $region6: #{tri_model_forward.50} parent=1 // loop_footer
      %s16 = sadd.s32 1, %s12
    $region7: #{tri_model_forward.50} parent=1 // loop_footer_branch
      %11 = sbr.rel target = $region3
    $region8: #{tri_model_forward.50} parent=1 // loop_exit
      _
    %327 = vsyncpa [#allocation3], 1
    %s328 = scalar_lea.sflag [#allocation3], 1
    %329 = vsyncpa %s328, 1

// kernel: tri_model_forward.49
$region0: #{tri_model_forward.49}
  #allocation0 [shape = 'u32[]', space=smem, size = 0x4, offset = 0x4, fixed_abs, tag = 'smem constant byte address 0x4 - core index']
  #allocation1 [shape = 'u32[72,128]{1,0:T(1,128)}', space=vmem, size = 0x9000, scoped, tag = 'internal scratch']
  #allocation2 [shape = 'bf16[16,64]{1,0:T(8,128)(2,1)}', space=vmem, size = 0x1000, scoped, tag = 'scratch operand']
  %s0 = inlined_call_operand.vmem [shape: bf16[16,64], index: 0, kind: input, shape index: {}]
  %s1 = inlined_call_operand.vmem [shape: bf16[1,64], index: 1, kind: input, shape index: {}]
  %s2 = inlined_call_operand.vmem [shape: bf16[1,64], index: 2, kind: input, shape index: {}]
  %s3 = inlined_call_operand.vmem [shape: bf16[64,192], index: 3, kind: input, shape index: {}]
  %s4 = inlined_call_operand.vmem [shape: bf16[1,192], index: 4, kind: input, shape index: {}]
  %s5 = inlined_call_operand.vmem [shape: bf16[16,192], index: 5, kind: output, shape index: {}]
  %s6 = sld [smem:[#allocation0]]
  $region34: #{tri_model_forward.49} parent=0
    _
  %s8 = ssub.s32 1, %s6
  %s9 = scalar_select 0, %s8, %s6
  // Predicated region
  $region2: #{tri_model_forward.49} parent=0 // pred_check
    _
  $region3: #{tri_model_forward.49} parent=0 // pred_check_branch
    %11 = sbr.rel (0) target = $region5
  $region4: #{tri_model_forward.49} parent=0 // pred_region
    _
  $region5: #{tri_model_forward.49} parent=0 // pred_fallthru
    _
  // Predicated region
  $region6: #{tri_model_forward.49} parent=0 // pred_check
    _
  $region7: #{tri_model_forward.49} parent=0 // pred_check_branch
    %13 = sbr.rel (0) target = $region9
  $region8: #{tri_model_forward.49} parent=0 // pred_region
    _
  $region9: #{tri_model_forward.49} parent=0 // pred_fallthru
    _
  // Predicated region
  $region10: #{tri_model_forward.49} parent=0 // pred_check
    _
  $region11: #{tri_model_forward.49} parent=0 // pred_check_branch
    %15 = sbr.rel (0) target = $region13
  $region12: #{tri_model_forward.49} parent=0 // pred_region
    _
  $region13: #{tri_model_forward.49} parent=0 // pred_fallthru
    _
  // Predicated region
  $region14: #{tri_model_forward.49} parent=0 // pred_check
    _
  $region15: #{tri_model_forward.49} parent=0 // pred_check_branch
    %17 = sbr.rel (0) target = $region17
  $region16: #{tri_model_forward.49} parent=0 // pred_region
    _
  $region17: #{tri_model_forward.49} parent=0 // pred_fallthru
    _
  // Predicated region
  $region18: #{tri_model_forward.49} parent=0 // pred_check
    _
  $region19: #{tri_model_forward.49} parent=0 // pred_check_branch
    %19 = sbr.rel (0) target = $region21
  $region20: #{tri_model_forward.49} parent=0 // pred_region
    _
  $region21: #{tri_model_forward.49} parent=0 // pred_fallthru
    _
  %p21 = scmp.eq.s32.totalorder 0, 0
  // Predicated region
  $region22: #{tri_model_forward.49} parent=0 // pred_check
    %p22 = pneg %p21
  $region23: #{tri_model_forward.49} parent=0 // pred_check_branch
    %24 = sbr.rel (%p22) target = $region25
  $region24: #{tri_model_forward.49} parent=0 // pred_region
    %v25 = vld [vmem:[%s0] sm:$0xf]
    %v26 = vld [vmem:[%s0 + $0x4] sm:$0xf]
    %v27 = vunpack.c.l.bf16 %v25
    %v28 = vunpack.c.l.bf16 %v26
    %vm29 = vcmask 523264
    %v30 = vsel %vm29, %v27, 0.0
    %31 = vadd.xlane.f32.xlu0 %v30
    %v32 = vpop.xlane.xlu0 %31
    %v33 = vsel %vm29, %v28, 0.0
    %34 = vadd.xlane.f32.xlu0 %v33
    %v35 = vpop.xlane.xlu0 %34
    %v36 = vrcp.pop 64.0
    %v37 = vmul.f32 64.0, %v36
    %v38 = vsub.f32 1.0, %v37
    %v39 = vmul.f32 %v36, %v38
    %v40 = vadd.f32 %v36, %v39
    %vm41 = vweird.f32 %v36
    %v42 = vsel %vm41, %v36, %v40
    %v43 = vmul.f32 %v32, %v42
    %v44 = vmul.f32 %v35, %v42
    %v45 = vsub.f32 %v27, %v43
    %v46 = vsub.f32 %v28, %v44
    %v47 = vmul.f32 %v45, %v45
    %v48 = vmul.f32 %v46, %v46
    %v49 = vsel %vm29, %v47, 0.0
    %50 = vadd.xlane.f32.xlu0 %v49
    %v51 = vpop.xlane.xlu0 %50
    %v52 = vsel %vm29, %v48, 0.0
    %53 = vadd.xlane.f32.xlu0 %v52
    %v54 = vpop.xlane.xlu0 %53
    %v55 = vmul.f32 %v51, %v42
    %v56 = vmul.f32 %v54, %v42
    %v57 = vadd.f32 %v55, 1e-12
    %v58 = vadd.f32 %v56, 1e-12
    %v59 = vrsqrt.pop %v57
    %v60 = vmul.f32 %v59, %v57
    %v61 = vmul.f32 %v60, %v59
    %v62 = vmul.f32 0.5, %v61
    %v63 = vsub.f32 1.5, %v62
    %v64 = vmul.f32 %v59, %v63
    %vm65 = vweird.f32 %v57
    %vm66 = vweird.f32 %v59
    %vm67 = vmor %vm65, %vm66
    %v68 = vsel %vm67, %v59, %v64
    %v69 = vrsqrt.pop %v58
    %v70 = vmul.f32 %v69, %v58
    %v71 = vmul.f32 %v70, %v69
    %v72 = vmul.f32 0.5, %v71
    %v73 = vsub.f32 1.5, %v72
    %v74 = vmul.f32 %v69, %v73
    %vm75 = vweird.f32 %v58
    %vm76 = vweird.f32 %v69
    %vm77 = vmor %vm75, %vm76
    %v78 = vsel %vm77, %v69, %v74
    %v79 = vmul.f32 %v45, %v68
    %v80 = vmul.f32 %v46, %v78
    %v81 = vld [vmem:[%s1] sm:$0x1]
    %v82 = vunpack.c.l.bf16 %v81
    %v83 = vperm.slane %v82, 0
    %v84 = vmul.f32 %v79, %v83
    %v85 = vmul.f32 %v80, %v83
    %v86 = vld [vmem:[%s2] sm:$0x1]
    %v87 = vunpack.c.l.bf16 %v86
    %v88 = vperm.slane %v87, 0
    %v89 = vadd.f32 %v84, %v88
    %v90 = vadd.f32 %v85, %v88
    %v91 = vpack.c.bf16 %v89, %v89
    %v92 = vpack.c.bf16 %v90, %v90
    %vm93 = vcmask 519168
    %94 = vst.msk [vmem:[#allocation2] sm:$0xf] %vm93, %v91
    %95 = vst.msk [vmem:[#allocation2 + $0x4] sm:$0xf] %vm93, %v92
  $region25: #{tri_model_forward.49} parent=0 // pred_fallthru
    _
  %v96 = vld [vmem:[#allocation2] sm:$0xf]
  %v97 = vld [vmem:[#allocation2 + $0x4] sm:$0xf]
  %v98 = vld [vmem:[%s3] sm:$0xff]
  %v99 = vld [vmem:[%s3 + $0x8] sm:$0xff]
  %v100 = vld [vmem:[%s3 + $0x10] sm:$0xff]
  %v101 = vld [vmem:[%s3 + $0x18] sm:$0xff]
  %v102 = vld [vmem:[%s3 + $0x20] sm:$0xff]
  %v103 = vld [vmem:[%s3 + $0x28] sm:$0xff]
  %v104 = vld [vmem:[%s3 + $0x30] sm:$0xff]
  %v105 = vld [vmem:[%s3 + $0x38] sm:$0xff]
  %v106 = vld [vmem:[%s4] sm:$0x3]
  %v107 = vunpack.c.l.bf16 %v106
  %v109 = vperm.slane %v107, 0
  %v110 = vperm.slane %v107, 2
  %v113 = vperm.slane %v109, 0
  %v114 = vperm.slane %v110, 0
  %v117 = vunpack.c.l.b16 %v96
  %v118 = vunpack.c.l.b16 %v97
  %v119 = vpack.c.b16 %v118, %v117
  %v128 = vunpack.c.l.b16 %v98
  %v129 = vunpack.c.h.b16 %v98
  %v130 = vunpack.c.l.b16 %v99
  %v131 = vunpack.c.h.b16 %v99
  %v132 = vunpack.c.l.b16 %v100
  %v133 = vunpack.c.h.b16 %v100
  %v134 = vunpack.c.l.b16 %v101
  %v135 = vunpack.c.h.b16 %v101
  %v136 = vunpack.c.l.b16 %v102
  %v137 = vunpack.c.h.b16 %v102
  %v138 = vunpack.c.l.b16 %v103
  %v139 = vunpack.c.h.b16 %v103
  %v140 = vunpack.c.l.b16 %v104
  %v141 = vunpack.c.h.b16 %v104
  %v142 = vunpack.c.l.b16 %v105
  %v143 = vunpack.c.h.b16 %v105
  %v144 = vpack.c.b16 %v130, %v128
  %v145 = vpack.c.b16 %v131, %v129
  %v146 = vpack.c.b16 %v134, %v132
  %v147 = vpack.c.b16 %v135, %v133
  %v148 = vpack.c.b16 %v138, %v136
  %v149 = vpack.c.b16 %v139, %v137
  %v150 = vpack.c.b16 %v142, %v140
  %v151 = vpack.c.b16 %v143, %v141
  %vm160 = vcmask 523264
  %v162 = vsel %vm160, %v119, 0
  %164 = vmatpush.bf16.msra.mxu0 0
  %165 = vmatpush.bf16.msra.mxu0 0
  %166 = vmatpush.bf16.msra.mxu0 0
  %167 = vmatpush.bf16.msra.mxu0 0
  %168 = vmatpush.bf16.msra.mxu0 %v150
  %169 = vmatpush.bf16.msra.mxu0 %v148
  %170 = vmatpush.bf16.msra.mxu0 %v146
  %171 = vmatpush.bf16.msra.mxu0 %v144
  %172 = vmatmul.bf16.gmra.mxu0 %v162
  %v173 = vpop.f32.mrf.mxu0
  %v174 = vadd.f32 %v113, %v173
  %v175 = vpop.f32.mrf.mxu0
  %v176 = vadd.f32 %v113, %v175
  %177 = vdwg.mxu0
  %178 = vmatpush.bf16.msra.mxu0 0
  %179 = vmatpush.bf16.msra.mxu0 0
  %180 = vmatpush.bf16.msra.mxu0 0
  %181 = vmatpush.bf16.msra.mxu0 0
  %182 = vmatpush.bf16.msra.mxu0 %v151
  %183 = vmatpush.bf16.msra.mxu0 %v149
  %184 = vmatpush.bf16.msra.mxu0 %v147
  %185 = vmatpush.bf16.msra.mxu0 %v145
  %186 = vmatmul.bf16.gmra.mxu0 %v162
  %v187 = vpop.f32.mrf.mxu0
  %v188 = vadd.f32 %v114, %v187
  %v189 = vpop.f32.mrf.mxu0
  %v190 = vadd.f32 %v114, %v189
  %191 = vdwg.mxu0
  %v192 = vpack.c.bf16 %v188, %v174
  %v193 = vpack.c.bf16 %v190, %v176
  %vm194 = vcmask 1043456
  %vm195 = vcmask 523268
  %vm196 = vmor %vm195, %vm194
  %197 = vst.msk [vmem:[%s5] sm:$0xff] %vm196, %v192
  %198 = vst.msk [vmem:[%s5 + $0x8] sm:$0xff] %vm196, %v193
  // Predicated region
  $region26: #{tri_model_forward.49} parent=0 // pred_check
    _
  $region27: #{tri_model_forward.49} parent=0 // pred_check_branch
    %200 = sbr.rel (0) target = $region29
  $region28: #{tri_model_forward.49} parent=0 // pred_region
    _
  $region29: #{tri_model_forward.49} parent=0 // pred_fallthru
    _
  // Predicated region
  $region30: #{tri_model_forward.49} parent=0 // pred_check
    _
  $region31: #{tri_model_forward.49} parent=0 // pred_check_branch
    %202 = sbr.rel (0) target = $region33
  $region32: #{tri_model_forward.49} parent=0 // pred_region
    _
  $region33: #{tri_model_forward.49} parent=0 // pred_fallthru
    _

// kernel: tri_model_forward.48
$region0: #{tri_model_forward.48}
  #allocation0 [shape = 'u32[]', space=smem, size = 0x4, offset = 0x4, fixed_abs, tag = 'smem constant byte address 0x4 - core index']
  #allocation1 [shape = 'u32[72,128]{1,0:T(1,128)}', space=vmem, size = 0x9000, scoped, tag = 'internal scratch']
  #allocation2 [shape = 'f32[16,64]{1,0:T(8,128)}', space=vmem, size = 0x2000, scoped, tag = 'scratch operand']
  %s0 = inlined_call_operand.vmem [shape: bf16[16,384], index: 0, kind: input, shape index: {}]
  %s1 = inlined_call_operand.vmem [shape: bf16[384,64], index: 1, kind: input, shape index: {}]
  %s2 = inlined_call_operand.vmem [shape: bf16[1,64], index: 2, kind: input, shape index: {}]
  %s3 = inlined_call_operand.vmem [shape: bf16[16,64], index: 3, kind: input, shape index: {}]
  %s4 = inlined_call_operand.vmem [shape: bf16[16,64], index: 4, kind: output, shape index: {}]
  %s5 = sld [smem:[#allocation0]]
  $region34: #{tri_model_forward.48} parent=0
    _
  %s7 = ssub.s32 1, %s5
  %s8 = scalar_select 0, %s7, %s5
  // Predicated region
  $region2: #{tri_model_forward.48} parent=0 // pred_check
    _
  $region3: #{tri_model_forward.48} parent=0 // pred_check_branch
    %10 = sbr.rel (0) target = $region5
  $region4: #{tri_model_forward.48} parent=0 // pred_region
    _
  $region5: #{tri_model_forward.48} parent=0 // pred_fallthru
    _
  // Predicated region
  $region6: #{tri_model_forward.48} parent=0 // pred_check
    _
  $region7: #{tri_model_forward.48} parent=0 // pred_check_branch
    %12 = sbr.rel (0) target = $region9
  $region8: #{tri_model_forward.48} parent=0 // pred_region
    _
  $region9: #{tri_model_forward.48} parent=0 // pred_fallthru
    _
  // Predicated region
  $region10: #{tri_model_forward.48} parent=0 // pred_check
    _
  $region11: #{tri_model_forward.48} parent=0 // pred_check_branch
    %14 = sbr.rel (0) target = $region13
  $region12: #{tri_model_forward.48} parent=0 // pred_region
    _
  $region13: #{tri_model_forward.48} parent=0 // pred_fallthru
    _
  // Predicated region
  $region14: #{tri_model_forward.48} parent=0 // pred_check
    _
  $region15: #{tri_model_forward.48} parent=0 // pred_check_branch
    %16 = sbr.rel (0) target = $region17
  $region16: #{tri_model_forward.48} parent=0 // pred_region
    _
  $region17: #{tri_model_forward.48} parent=0 // pred_fallthru
    _
  %p17 = scmp.eq.s32.totalorder 0, 0
  // Predicated region
  $region18: #{tri_model_forward.48} parent=0 // pred_check
    %p18 = pneg %p17
  $region19: #{tri_model_forward.48} parent=0 // pred_check_branch
    %20 = sbr.rel (%p18) target = $region21
  $region20: #{tri_model_forward.48} parent=0 // pred_region
    %vm21 = vcmask 523264
    %22 = vst.msk [vmem:[#allocation2] sm:$0xff] %vm21, 0.0
    %23 = vst.msk [vmem:[#allocation2 + $0x8] sm:$0xff] %vm21, 0.0
  $region21: #{tri_model_forward.48} parent=0 // pred_fallthru
    _
  %v24 = vld [vmem:[#allocation2] sm:$0xff]
  %v25 = vld [vmem:[#allocation2 + $0x8] sm:$0xff]
  %v26 = vld [vmem:[%s0] sm:$0xff]
  %v27 = vld [vmem:[%s0 + $0x8] sm:$0xf]
  %v28 = vld [vmem:[%s0 + $0xc] sm:$0xff]
  %v29 = vld [vmem:[%s0 + $0x14] sm:$0xf]
  %v30 = vld [vmem:[%s1] sm:$0xf]
  %v31 = vld [vmem:[%s1 + $0x4] sm:$0xf]
  %v32 = vld [vmem:[%s1 + $0x8] sm:$0xf]
  %v33 = vld [vmem:[%s1 + $0xc] sm:$0xf]
  %v34 = vld [vmem:[%s1 + $0x10] sm:$0xf]
  %v35 = vld [vmem:[%s1 + $0x14] sm:$0xf]
  %v36 = vld [vmem:[%s1 + $0x18] sm:$0xf]
  %v37 = vld [vmem:[%s1 + $0x1c] sm:$0xf]
  %v38 = vld [vmem:[%s1 + $0x20] sm:$0xf]
  %v39 = vld [vmem:[%s1 + $0x24] sm:$0xf]
  %v40 = vld [vmem:[%s1 + $0x28] sm:$0xf]
  %v41 = vld [vmem:[%s1 + $0x2c] sm:$0xf]
  %v42 = vld [vmem:[%s1 + $0x30] sm:$0xf]
  %v43 = vld [vmem:[%s1 + $0x34] sm:$0xf]
  %v44 = vld [vmem:[%s1 + $0x38] sm:$0xf]
  %v45 = vld [vmem:[%s1 + $0x3c] sm:$0xf]
  %v46 = vld [vmem:[%s1 + $0x40] sm:$0xf]
  %v47 = vld [vmem:[%s1 + $0x44] sm:$0xf]
  %v48 = vld [vmem:[%s1 + $0x48] sm:$0xf]
  %v49 = vld [vmem:[%s1 + $0x4c] sm:$0xf]
  %v50 = vld [vmem:[%s1 + $0x50] sm:$0xf]
  %v51 = vld [vmem:[%s1 + $0x54] sm:$0xf]
  %v52 = vld [vmem:[%s1 + $0x58] sm:$0xf]
  %v53 = vld [vmem:[%s1 + $0x5c] sm:$0xf]
  %v54 = vld [vmem:[%s1 + $0x60] sm:$0xf]
  %v55 = vld [vmem:[%s1 + $0x64] sm:$0xf]
  %v56 = vld [vmem:[%s1 + $0x68] sm:$0xf]
  %v57 = vld [vmem:[%s1 + $0x6c] sm:$0xf]
  %v58 = vld [vmem:[%s1 + $0x70] sm:$0xf]
  %v59 = vld [vmem:[%s1 + $0x74] sm:$0xf]
  %v60 = vld [vmem:[%s1 + $0x78] sm:$0xf]
  %v61 = vld [vmem:[%s1 + $0x7c] sm:$0xf]
  %v62 = vld [vmem:[%s1 + $0x80] sm:$0xf]
  %v63 = vld [vmem:[%s1 + $0x84] sm:$0xf]
  %v64 = vld [vmem:[%s1 + $0x88] sm:$0xf]
  %v65 = vld [vmem:[%s1 + $0x8c] sm:$0xf]
  %v66 = vld [vmem:[%s1 + $0x90] sm:$0xf]
  %v67 = vld [vmem:[%s1 + $0x94] sm:$0xf]
  %v68 = vld [vmem:[%s1 + $0x98] sm:$0xf]
  %v69 = vld [vmem:[%s1 + $0x9c] sm:$0xf]
  %v70 = vld [vmem:[%s1 + $0xa0] sm:$0xf]
  %v71 = vld [vmem:[%s1 + $0xa4] sm:$0xf]
  %v72 = vld [vmem:[%s1 + $0xa8] sm:$0xf]
  %v73 = vld [vmem:[%s1 + $0xac] sm:$0xf]
  %v74 = vld [vmem:[%s1 + $0xb0] sm:$0xf]
  %v75 = vld [vmem:[%s1 + $0xb4] sm:$0xf]
  %v76 = vld [vmem:[%s1 + $0xb8] sm:$0xf]
  %v77 = vld [vmem:[%s1 + $0xbc] sm:$0xf]
  %v82 = vunpack.c.l.b16 %v26
  %v83 = vunpack.c.h.b16 %v26
  %v84 = vunpack.c.l.b16 %v27
  %v85 = vunpack.c.l.b16 %v28
  %v86 = vunpack.c.h.b16 %v28
  %v87 = vunpack.c.l.b16 %v29
  %v88 = vpack.c.b16 %v85, %v82
  %v89 = vpack.c.b16 %v86, %v83
  %v90 = vpack.c.b16 %v87, %v84
  %v142 = vunpack.c.l.b16 %v30
  %v143 = vunpack.c.l.b16 %v31
  %v144 = vunpack.c.l.b16 %v32
  %v145 = vunpack.c.l.b16 %v33
  %v146 = vunpack.c.l.b16 %v34
  %v147 = vunpack.c.l.b16 %v35
  %v148 = vunpack.c.l.b16 %v36
  %v149 = vunpack.c.l.b16 %v37
  %v150 = vunpack.c.l.b16 %v38
  %v151 = vunpack.c.l.b16 %v39
  %v152 = vunpack.c.l.b16 %v40
  %v153 = vunpack.c.l.b16 %v41
  %v154 = vunpack.c.l.b16 %v42
  %v155 = vunpack.c.l.b16 %v43
  %v156 = vunpack.c.l.b16 %v44
  %v157 = vunpack.c.l.b16 %v45
  %v158 = vunpack.c.l.b16 %v46
  %v159 = vunpack.c.l.b16 %v47
  %v160 = vunpack.c.l.b16 %v48
  %v161 = vunpack.c.l.b16 %v49
  %v162 = vunpack.c.l.b16 %v50
  %v163 = vunpack.c.l.b16 %v51
  %v164 = vunpack.c.l.b16 %v52
  %v165 = vunpack.c.l.b16 %v53
  %v166 = vunpack.c.l.b16 %v54
  %v167 = vunpack.c.l.b16 %v55
  %v168 = vunpack.c.l.b16 %v56
  %v169 = vunpack.c.l.b16 %v57
  %v170 = vunpack.c.l.b16 %v58
  %v171 = vunpack.c.l.b16 %v59
  %v172 = vunpack.c.l.b16 %v60
  %v173 = vunpack.c.l.b16 %v61
  %v174 = vunpack.c.l.b16 %v62
  %v175 = vunpack.c.l.b16 %v63
  %v176 = vunpack.c.l.b16 %v64
  %v177 = vunpack.c.l.b16 %v65
  %v178 = vunpack.c.l.b16 %v66
  %v179 = vunpack.c.l.b16 %v67
  %v180 = vunpack.c.l.b16 %v68
  %v181 = vunpack.c.l.b16 %v69
  %v182 = vunpack.c.l.b16 %v70
  %v183 = vunpack.c.l.b16 %v71
  %v184 = vunpack.c.l.b16 %v72
  %v185 = vunpack.c.l.b16 %v73
  %v186 = vunpack.c.l.b16 %v74
  %v187 = vunpack.c.l.b16 %v75
  %v188 = vunpack.c.l.b16 %v76
  %v189 = vunpack.c.l.b16 %v77
  %v190 = vpack.c.b16 %v143, %v142
  %v191 = vpack.c.b16 %v145, %v144
  %v192 = vpack.c.b16 %v147, %v146
  %v193 = vpack.c.b16 %v149, %v148
  %v194 = vpack.c.b16 %v151, %v150
  %v195 = vpack.c.b16 %v153, %v152
  %v196 = vpack.c.b16 %v155, %v154
  %v197 = vpack.c.b16 %v157, %v156
  %v198 = vpack.c.b16 %v159, %v158
  %v199 = vpack.c.b16 %v161, %v160
  %v200 = vpack.c.b16 %v163, %v162
  %v201 = vpack.c.b16 %v165, %v164
  %v202 = vpack.c.b16 %v167, %v166
  %v203 = vpack.c.b16 %v169, %v168
  %v204 = vpack.c.b16 %v171, %v170
  %v205 = vpack.c.b16 %v173, %v172
  %v206 = vpack.c.b16 %v175, %v174
  %v207 = vpack.c.b16 %v177, %v176
  %v208 = vpack.c.b16 %v179, %v178
  %v209 = vpack.c.b16 %v181, %v180
  %v210 = vpack.c.b16 %v183, %v182
  %v211 = vpack.c.b16 %v185, %v184
  %v212 = vpack.c.b16 %v187, %v186
  %v213 = vpack.c.b16 %v189, %v188
  %238 = vmatpush.bf16.msra.mxu0 %v197
  %239 = vmatpush.bf16.msra.mxu0 %v196
  %240 = vmatpush.bf16.msra.mxu0 %v195
  %241 = vmatpush.bf16.msra.mxu0 %v194
  %242 = vmatpush.bf16.msra.mxu0 %v193
  %243 = vmatpush.bf16.msra.mxu0 %v192
  %244 = vmatpush.bf16.msra.mxu0 %v191
  %245 = vmatpush.bf16.msra.mxu0 %v190
  %246 = vmatmul.bf16.gmra.mxu0 %v88
  %v247 = vpop.f32.mrf.mxu0
  %v248 = vadd.f32 0.0, %v247
  %v249 = vpop.f32.mrf.mxu0
  %v250 = vadd.f32 0.0, %v249
  %251 = vdwg.mxu0
  %252 = vmatpush.bf16.msra.mxu0 %v205
  %253 = vmatpush.bf16.msra.mxu0 %v204
  %254 = vmatpush.bf16.msra.mxu0 %v203
  %255 = vmatpush.bf16.msra.mxu0 %v202
  %256 = vmatpush.bf16.msra.mxu0 %v201
  %257 = vmatpush.bf16.msra.mxu0 %v200
  %258 = vmatpush.bf16.msra.mxu0 %v199
  %259 = vmatpush.bf16.msra.mxu0 %v198
  %260 = vmatmul.bf16.gmra.mxu0 %v89
  %v261 = vpop.f32.mrf.mxu0
  %v262 = vadd.f32 %v248, %v261
  %v263 = vpop.f32.mrf.mxu0
  %v264 = vadd.f32 %v250, %v263
  %265 = vdwg.mxu0
  %266 = vmatpush.bf16.msra.mxu0 %v213
  %267 = vmatpush.bf16.msra.mxu0 %v212
  %268 = vmatpush.bf16.msra.mxu0 %v211
  %269 = vmatpush.bf16.msra.mxu0 %v210
  %270 = vmatpush.bf16.msra.mxu0 %v209
  %271 = vmatpush.bf16.msra.mxu0 %v208
  %272 = vmatpush.bf16.msra.mxu0 %v207
  %273 = vmatpush.bf16.msra.mxu0 %v206
  %274 = vmatmul.bf16.gmra.mxu0 %v90
  %v275 = vpop.f32.mrf.mxu0
  %v276 = vadd.f32 %v262, %v275
  %v277 = vpop.f32.mrf.mxu0
  %v278 = vadd.f32 %v264, %v277
  %279 = vdwg.mxu0
  %v280 = vadd.f32 %v24, %v276
  %v281 = vadd.f32 %v25, %v278
  %vm282 = vcmask 523264
  %283 = vst.msk [vmem:[#allocation2] sm:$0xff] %vm282, %v280
  %284 = vst.msk [vmem:[#allocation2 + $0x8] sm:$0xff] %vm282, %v281
  // Predicated region
  $region22: #{tri_model_forward.48} parent=0 // pred_check
    %p285 = pneg %p17
  $region23: #{tri_model_forward.48} parent=0 // pred_check_branch
    %287 = sbr.rel (%p285) target = $region25
  $region24: #{tri_model_forward.48} parent=0 // pred_region
    %v288 = vld [vmem:[#allocation2] sm:$0xff]
    %v289 = vld [vmem:[#allocation2 + $0x8] sm:$0xff]
    %v290 = vld [vmem:[%s2] sm:$0x1]
    %v291 = vunpack.c.l.bf16 %v290
    %v292 = vperm.slane %v291, 0
    %v293 = vadd.f32 %v288, %v292
    %v294 = vadd.f32 %v289, %v292
    %v295 = vld [vmem:[%s3] sm:$0xf]
    %v296 = vld [vmem:[%s3 + $0x4] sm:$0xf]
    %v297 = vunpack.c.l.bf16 %v295
    %v298 = vunpack.c.l.bf16 %v296
    %v299 = vadd.f32 %v293, %v297
    %v300 = vadd.f32 %v294, %v298
    %v301 = vpack.c.bf16 %v299, %v299
    %v302 = vpack.c.bf16 %v300, %v300
    %vm303 = vcmask 519168
    %304 = vst.msk [vmem:[%s4] sm:$0xf] %vm303, %v301
    %305 = vst.msk [vmem:[%s4 + $0x4] sm:$0xf] %vm303, %v302
  $region25: #{tri_model_forward.48} parent=0 // pred_fallthru
    _
  // Predicated region
  $region26: #{tri_model_forward.48} parent=0 // pred_check
    _
  $region27: #{tri_model_forward.48} parent=0 // pred_check_branch
    %307 = sbr.rel (0) target = $region29
  $region28: #{tri_model_forward.48} parent=0 // pred_region
    _
  $region29: #{tri_model_forward.48} parent=0 // pred_fallthru
    _
  // Predicated region
  $region30: #{tri_model_forward.48} parent=0 // pred_check
    _
  $region31: #{tri_model_forward.48} parent=0 // pred_check_branch
    %309 = sbr.rel (0) target = $region33
  $region32: #{tri_model_forward.48} parent=0 // pred_region
    _
  $region33: #{tri_model_forward.48} parent=0 // pred_fallthru
    _

// kernel: tri_model_forward.51
$region0: #{tri_model_forward.51}
  #allocation0 [shape = 'u32[]', space=smem, size = 0x4, offset = 0x4, fixed_abs, tag = 'smem constant byte address 0x4 - core index']
  #allocation1 [shape = 'u32[72,128]{1,0:T(1,128)}', space=vmem, size = 0x9000, scoped, tag = 'internal scratch']
  #allocation2 [shape = 'f32[16,64]{1,0:T(8,128)}', space=vmem, size = 0x2000, scoped, tag = 'scratch operand']
  %s0 = inlined_call_operand.vmem [shape: bf16[16,64], index: 0, kind: input, shape index: {}]
  %s1 = inlined_call_operand.vmem [shape: bf16[64,64], index: 1, kind: input, shape index: {}]
  %s2 = inlined_call_operand.vmem [shape: bf16[1,64], index: 2, kind: input, shape index: {}]
  %s3 = inlined_call_operand.vmem [shape: bf16[16,64], index: 3, kind: input, shape index: {}]
  %s4 = inlined_call_operand.vmem [shape: bf16[16,64], index: 4, kind: output, shape index: {}]
  %s5 = sld [smem:[#allocation0]]
  $region34: #{tri_model_forward.51} parent=0
    _
  %s7 = ssub.s32 1, %s5
  %s8 = scalar_select 0, %s7, %s5
  // Predicated region
  $region2: #{tri_model_forward.51} parent=0 // pred_check
    _
  $region3: #{tri_model_forward.51} parent=0 // pred_check_branch
    %10 = sbr.rel (0) target = $region5
  $region4: #{tri_model_forward.51} parent=0 // pred_region
    _
  $region5: #{tri_model_forward.51} parent=0 // pred_fallthru
    _
  // Predicated region
  $region6: #{tri_model_forward.51} parent=0 // pred_check
    _
  $region7: #{tri_model_forward.51} parent=0 // pred_check_branch
    %12 = sbr.rel (0) target = $region9
  $region8: #{tri_model_forward.51} parent=0 // pred_region
    _
  $region9: #{tri_model_forward.51} parent=0 // pred_fallthru
    _
  // Predicated region
  $region10: #{tri_model_forward.51} parent=0 // pred_check
    _
  $region11: #{tri_model_forward.51} parent=0 // pred_check_branch
    %14 = sbr.rel (0) target = $region13
  $region12: #{tri_model_forward.51} parent=0 // pred_region
    _
  $region13: #{tri_model_forward.51} parent=0 // pred_fallthru
    _
  // Predicated region
  $region14: #{tri_model_forward.51} parent=0 // pred_check
    _
  $region15: #{tri_model_forward.51} parent=0 // pred_check_branch
    %16 = sbr.rel (0) target = $region17
  $region16: #{tri_model_forward.51} parent=0 // pred_region
    _
  $region17: #{tri_model_forward.51} parent=0 // pred_fallthru
    _
  %p18 = scmp.eq.s32.totalorder 0, 0
  // Predicated region
  $region18: #{tri_model_forward.51} parent=0 // pred_check
    %p19 = pneg %p18
  $region19: #{tri_model_forward.51} parent=0 // pred_check_branch
    %21 = sbr.rel (%p19) target = $region21
  $region20: #{tri_model_forward.51} parent=0 // pred_region
    %vm22 = vcmask 523264
    %23 = vst.msk [vmem:[#allocation2] sm:$0xff] %vm22, 0.0
    %24 = vst.msk [vmem:[#allocation2 + $0x8] sm:$0xff] %vm22, 0.0
  $region21: #{tri_model_forward.51} parent=0 // pred_fallthru
    _
  %v25 = vld [vmem:[#allocation2] sm:$0xff]
  %v26 = vld [vmem:[#allocation2 + $0x8] sm:$0xff]
  %v27 = vld [vmem:[%s0] sm:$0xf]
  %v28 = vld [vmem:[%s0 + $0x4] sm:$0xf]
  %v29 = vld [vmem:[%s1] sm:$0xf]
  %v30 = vld [vmem:[%s1 + $0x4] sm:$0xf]
  %v31 = vld [vmem:[%s1 + $0x8] sm:$0xf]
  %v32 = vld [vmem:[%s1 + $0xc] sm:$0xf]
  %v33 = vld [vmem:[%s1 + $0x10] sm:$0xf]
  %v34 = vld [vmem:[%s1 + $0x14] sm:$0xf]
  %v35 = vld [vmem:[%s1 + $0x18] sm:$0xf]
  %v36 = vld [vmem:[%s1 + $0x1c] sm:$0xf]
  %v39 = vunpack.c.l.b16 %v27
  %v40 = vunpack.c.l.b16 %v28
  %v41 = vpack.c.b16 %v40, %v39
  %v50 = vunpack.c.l.b16 %v29
  %v51 = vunpack.c.l.b16 %v30
  %v52 = vunpack.c.l.b16 %v31
  %v53 = vunpack.c.l.b16 %v32
  %v54 = vunpack.c.l.b16 %v33
  %v55 = vunpack.c.l.b16 %v34
  %v56 = vunpack.c.l.b16 %v35
  %v57 = vunpack.c.l.b16 %v36
  %v58 = vpack.c.b16 %v51, %v50
  %v59 = vpack.c.b16 %v53, %v52
  %v60 = vpack.c.b16 %v55, %v54
  %v61 = vpack.c.b16 %v57, %v56
  %vm66 = vcmask 523264
  %v68 = vsel %vm66, %v41, 0
  %70 = vmatpush.bf16.msra.mxu0 0
  %71 = vmatpush.bf16.msra.mxu0 0
  %72 = vmatpush.bf16.msra.mxu0 0
  %73 = vmatpush.bf16.msra.mxu0 0
  %74 = vmatpush.bf16.msra.mxu0 %v61
  %75 = vmatpush.bf16.msra.mxu0 %v60
  %76 = vmatpush.bf16.msra.mxu0 %v59
  %77 = vmatpush.bf16.msra.mxu0 %v58
  %78 = vmatmul.bf16.gmra.mxu0 %v68
  %v79 = vpop.f32.mrf.mxu0
  %v80 = vadd.f32 0.0, %v79
  %v81 = vpop.f32.mrf.mxu0
  %v82 = vadd.f32 0.0, %v81
  %83 = vdwg.mxu0
  %v84 = vadd.f32 %v25, %v80
  %v85 = vadd.f32 %v26, %v82
  %86 = vst.msk [vmem:[#allocation2] sm:$0xff] %vm66, %v84
  %87 = vst.msk [vmem:[#allocation2 + $0x8] sm:$0xff] %vm66, %v85
  // Predicated region
  $region22: #{tri_model_forward.51} parent=0 // pred_check
    %p88 = pneg %p18
  $region23: #{tri_model_forward.51} parent=0 // pred_check_branch
    %90 = sbr.rel (%p88) target = $region25
  $region24: #{tri_model_forward.51} parent=0 // pred_region
    %v91 = vld [vmem:[#allocation2] sm:$0xff]
    %v92 = vld [vmem:[#allocation2 + $0x8] sm:$0xff]
    %v93 = vld [vmem:[%s2] sm:$0x1]
    %v94 = vunpack.c.l.bf16 %v93
    %v95 = vperm.slane %v94, 0
    %v96 = vadd.f32 %v91, %v95
    %v97 = vadd.f32 %v92, %v95
    %v98 = vld [vmem:[%s3] sm:$0xf]
    %v99 = vld [vmem:[%s3 + $0x4] sm:$0xf]
    %v100 = vunpack.c.l.bf16 %v98
    %v101 = vunpack.c.l.bf16 %v99
    %v102 = vadd.f32 %v96, %v100
    %v103 = vadd.f32 %v97, %v101
    %v104 = vpack.c.bf16 %v102, %v102
    %v105 = vpack.c.bf16 %v103, %v103
    %vm106 = vcmask 519168
    %107 = vst.msk [vmem:[%s4] sm:$0xf] %vm106, %v104
    %108 = vst.msk [vmem:[%s4 + $0x4] sm:$0xf] %vm106, %v105
  $region25: #{tri_model_forward.51} parent=0 // pred_fallthru
    _
  // Predicated region
  $region26: #{tri_model_forward.51} parent=0 // pred_check
    _
  $region27: #{tri_model_forward.51} parent=0 // pred_check_branch
    %110 = sbr.rel (0) target = $region29
  $region28: #{tri_model_forward.51} parent=0 // pred_region
    _
  $region29: #{tri_model_forward.51} parent=0 // pred_fallthru
    _
  // Predicated region
  $region30: #{tri_model_forward.51} parent=0 // pred_check
    _
  $region31: #{tri_model_forward.51} parent=0 // pred_check_branch
    %112 = sbr.rel (0) target = $region33
  $region32: #{tri_model_forward.51} parent=0 // pred_region
    _
  $region33: #{tri_model_forward.51} parent=0 // pred_fallthru
    _

// kernel: tri_model_forward.52
$region0: #{tri_model_forward.52}
  #allocation0 [shape = 'u32[]', space=smem, size = 0x4, offset = 0x4, fixed_abs, tag = 'smem constant byte address 0x4 - core index']
  #allocation1 [shape = 'u32[72,128]{1,0:T(1,128)}', space=vmem, size = 0x9000, scoped, tag = 'internal scratch']
  #allocation2 [shape = 'bf16[16,64]{1,0:T(8,128)(2,1)}', space=vmem, size = 0x1000, scoped, tag = 'scratch operand']
  %s0 = inlined_call_operand.vmem [shape: bf16[16,64], index: 0, kind: input, shape index: {}]
  %s1 = inlined_call_operand.vmem [shape: bf16[1,64], index: 1, kind: input, shape index: {}]
  %s2 = inlined_call_operand.vmem [shape: bf16[1,64], index: 2, kind: input, shape index: {}]
  %s3 = inlined_call_operand.vmem [shape: bf16[64,256], index: 3, kind: input, shape index: {}]
  %s4 = inlined_call_operand.vmem [shape: bf16[1,256], index: 4, kind: input, shape index: {}]
  %s5 = inlined_call_operand.vmem [shape: bf16[16,256], index: 5, kind: output, shape index: {}]
  %s6 = sld [smem:[#allocation0]]
  $region34: #{tri_model_forward.52} parent=0
    _
  %s8 = ssub.s32 1, %s6
  %s9 = scalar_select 0, %s8, %s6
  // Predicated region
  $region2: #{tri_model_forward.52} parent=0 // pred_check
    _
  $region3: #{tri_model_forward.52} parent=0 // pred_check_branch
    %11 = sbr.rel (0) target = $region5
  $region4: #{tri_model_forward.52} parent=0 // pred_region
    _
  $region5: #{tri_model_forward.52} parent=0 // pred_fallthru
    _
  // Predicated region
  $region6: #{tri_model_forward.52} parent=0 // pred_check
    _
  $region7: #{tri_model_forward.52} parent=0 // pred_check_branch
    %13 = sbr.rel (0) target = $region9
  $region8: #{tri_model_forward.52} parent=0 // pred_region
    _
  $region9: #{tri_model_forward.52} parent=0 // pred_fallthru
    _
  // Predicated region
  $region10: #{tri_model_forward.52} parent=0 // pred_check
    _
  $region11: #{tri_model_forward.52} parent=0 // pred_check_branch
    %15 = sbr.rel (0) target = $region13
  $region12: #{tri_model_forward.52} parent=0 // pred_region
    _
  $region13: #{tri_model_forward.52} parent=0 // pred_fallthru
    _
  // Predicated region
  $region14: #{tri_model_forward.52} parent=0 // pred_check
    _
  $region15: #{tri_model_forward.52} parent=0 // pred_check_branch
    %17 = sbr.rel (0) target = $region17
  $region16: #{tri_model_forward.52} parent=0 // pred_region
    _
  $region17: #{tri_model_forward.52} parent=0 // pred_fallthru
    _
  // Predicated region
  $region18: #{tri_model_forward.52} parent=0 // pred_check
    _
  $region19: #{tri_model_forward.52} parent=0 // pred_check_branch
    %19 = sbr.rel (0) target = $region21
  $region20: #{tri_model_forward.52} parent=0 // pred_region
    _
  $region21: #{tri_model_forward.52} parent=0 // pred_fallthru
    _
  %p21 = scmp.eq.s32.totalorder 0, 0
  // Predicated region
  $region22: #{tri_model_forward.52} parent=0 // pred_check
    %p22 = pneg %p21
  $region23: #{tri_model_forward.52} parent=0 // pred_check_branch
    %24 = sbr.rel (%p22) target = $region25
  $region24: #{tri_model_forward.52} parent=0 // pred_region
    %v25 = vld [vmem:[%s0] sm:$0xf]
    %v26 = vld [vmem:[%s0 + $0x4] sm:$0xf]
    %v27 = vunpack.c.l.bf16 %v25
    %v28 = vunpack.c.l.bf16 %v26
    %vm29 = vcmask 523264
    %v30 = vsel %vm29, %v27, 0.0
    %31 = vadd.xlane.f32.xlu0 %v30
    %v32 = vpop.xlane.xlu0 %31
    %v33 = vsel %vm29, %v28, 0.0
    %34 = vadd.xlane.f32.xlu0 %v33
    %v35 = vpop.xlane.xlu0 %34
    %v36 = vrcp.pop 64.0
    %v37 = vmul.f32 64.0, %v36
    %v38 = vsub.f32 1.0, %v37
    %v39 = vmul.f32 %v36, %v38
    %v40 = vadd.f32 %v36, %v39
    %vm41 = vweird.f32 %v36
    %v42 = vsel %vm41, %v36, %v40
    %v43 = vmul.f32 %v32, %v42
    %v44 = vmul.f32 %v35, %v42
    %v45 = vsub.f32 %v27, %v43
    %v46 = vsub.f32 %v28, %v44
    %v47 = vmul.f32 %v45, %v45
    %v48 = vmul.f32 %v46, %v46
    %v49 = vsel %vm29, %v47, 0.0
    %50 = vadd.xlane.f32.xlu0 %v49
    %v51 = vpop.xlane.xlu0 %50
    %v52 = vsel %vm29, %v48, 0.0
    %53 = vadd.xlane.f32.xlu0 %v52
    %v54 = vpop.xlane.xlu0 %53
    %v55 = vmul.f32 %v51, %v42
    %v56 = vmul.f32 %v54, %v42
    %v57 = vadd.f32 %v55, 1e-12
    %v58 = vadd.f32 %v56, 1e-12
    %v59 = vrsqrt.pop %v57
    %v60 = vmul.f32 %v59, %v57
    %v61 = vmul.f32 %v60, %v59
    %v62 = vmul.f32 0.5, %v61
    %v63 = vsub.f32 1.5, %v62
    %v64 = vmul.f32 %v59, %v63
    %vm65 = vweird.f32 %v57
    %vm66 = vweird.f32 %v59
    %vm67 = vmor %vm65, %vm66
    %v68 = vsel %vm67, %v59, %v64
    %v69 = vrsqrt.pop %v58
    %v70 = vmul.f32 %v69, %v58
    %v71 = vmul.f32 %v70, %v69
    %v72 = vmul.f32 0.5, %v71
    %v73 = vsub.f32 1.5, %v72
    %v74 = vmul.f32 %v69, %v73
    %vm75 = vweird.f32 %v58
    %vm76 = vweird.f32 %v69
    %vm77 = vmor %vm75, %vm76
    %v78 = vsel %vm77, %v69, %v74
    %v79 = vmul.f32 %v45, %v68
    %v80 = vmul.f32 %v46, %v78
    %v81 = vld [vmem:[%s1] sm:$0x1]
    %v82 = vunpack.c.l.bf16 %v81
    %v83 = vperm.slane %v82, 0
    %v84 = vmul.f32 %v79, %v83
    %v85 = vmul.f32 %v80, %v83
    %v86 = vld [vmem:[%s2] sm:$0x1]
    %v87 = vunpack.c.l.bf16 %v86
    %v88 = vperm.slane %v87, 0
    %v89 = vadd.f32 %v84, %v88
    %v90 = vadd.f32 %v85, %v88
    %v91 = vpack.c.bf16 %v89, %v89
    %v92 = vpack.c.bf16 %v90, %v90
    %vm93 = vcmask 519168
    %94 = vst.msk [vmem:[#allocation2] sm:$0xf] %vm93, %v91
    %95 = vst.msk [vmem:[#allocation2 + $0x4] sm:$0xf] %vm93, %v92
  $region25: #{tri_model_forward.52} parent=0 // pred_fallthru
    _
  %v96 = vld [vmem:[#allocation2] sm:$0xf]
  %v97 = vld [vmem:[#allocation2 + $0x4] sm:$0xf]
  %v98 = vld [vmem:[%s3] sm:$0xff]
  %v99 = vld [vmem:[%s3 + $0x8] sm:$0xff]
  %v100 = vld [vmem:[%s3 + $0x10] sm:$0xff]
  %v101 = vld [vmem:[%s3 + $0x18] sm:$0xff]
  %v102 = vld [vmem:[%s3 + $0x20] sm:$0xff]
  %v103 = vld [vmem:[%s3 + $0x28] sm:$0xff]
  %v104 = vld [vmem:[%s3 + $0x30] sm:$0xff]
  %v105 = vld [vmem:[%s3 + $0x38] sm:$0xff]
  %v106 = vld [vmem:[%s4] sm:$0x3]
  %v107 = vunpack.c.l.bf16 %v106
  %v109 = vperm.slane %v107, 0
  %v110 = vperm.slane %v107, 2
  %v113 = vperm.slane %v109, 0
  %v114 = vperm.slane %v110, 0
  %v117 = vunpack.c.l.b16 %v96
  %v118 = vunpack.c.l.b16 %v97
  %v119 = vpack.c.b16 %v118, %v117
  %v128 = vunpack.c.l.b16 %v98
  %v129 = vunpack.c.h.b16 %v98
  %v130 = vunpack.c.l.b16 %v99
  %v131 = vunpack.c.h.b16 %v99
  %v132 = vunpack.c.l.b16 %v100
  %v133 = vunpack.c.h.b16 %v100
  %v134 = vunpack.c.l.b16 %v101
  %v135 = vunpack.c.h.b16 %v101
  %v136 = vunpack.c.l.b16 %v102
  %v137 = vunpack.c.h.b16 %v102
  %v138 = vunpack.c.l.b16 %v103
  %v139 = vunpack.c.h.b16 %v103
  %v140 = vunpack.c.l.b16 %v104
  %v141 = vunpack.c.h.b16 %v104
  %v142 = vunpack.c.l.b16 %v105
  %v143 = vunpack.c.h.b16 %v105
  %v144 = vpack.c.b16 %v130, %v128
  %v145 = vpack.c.b16 %v131, %v129
  %v146 = vpack.c.b16 %v134, %v132
  %v147 = vpack.c.b16 %v135, %v133
  %v148 = vpack.c.b16 %v138, %v136
  %v149 = vpack.c.b16 %v139, %v137
  %v150 = vpack.c.b16 %v142, %v140
  %v151 = vpack.c.b16 %v143, %v141
  %vm160 = vcmask 523264
  %v162 = vsel %vm160, %v119, 0
  %164 = vmatpush.bf16.msra.mxu0 0
  %165 = vmatpush.bf16.msra.mxu0 0
  %166 = vmatpush.bf16.msra.mxu0 0
  %167 = vmatpush.bf16.msra.mxu0 0
  %168 = vmatpush.bf16.msra.mxu0 %v150
  %169 = vmatpush.bf16.msra.mxu0 %v148
  %170 = vmatpush.bf16.msra.mxu0 %v146
  %171 = vmatpush.bf16.msra.mxu0 %v144
  %172 = vmatmul.bf16.gmra.mxu0 %v162
  %v173 = vpop.f32.mrf.mxu0
  %v174 = vadd.f32 %v113, %v173
  %v175 = vpop.f32.mrf.mxu0
  %v176 = vadd.f32 %v113, %v175
  %177 = vdwg.mxu0
  %178 = vmatpush.bf16.msra.mxu0 0
  %179 = vmatpush.bf16.msra.mxu0 0
  %180 = vmatpush.bf16.msra.mxu0 0
  %181 = vmatpush.bf16.msra.mxu0 0
  %182 = vmatpush.bf16.msra.mxu0 %v151
  %183 = vmatpush.bf16.msra.mxu0 %v149
  %184 = vmatpush.bf16.msra.mxu0 %v147
  %185 = vmatpush.bf16.msra.mxu0 %v145
  %186 = vmatmul.bf16.gmra.mxu0 %v162
  %v187 = vpop.f32.mrf.mxu0
  %v188 = vadd.f32 %v114, %v187
  %v189 = vpop.f32.mrf.mxu0
  %v190 = vadd.f32 %v114, %v189
  %191 = vdwg.mxu0
  %v192 = vmul.f32 %v174, %v174
  %v193 = vmul.f32 %v188, %v188
  %v194 = vmul.f32 %v176, %v176
  %v195 = vmul.f32 %v190, %v190
  %v196 = vmul.f32 %v174, %v192
  %v197 = vmul.f32 %v188, %v193
  %v198 = vmul.f32 %v176, %v194
  %v199 = vmul.f32 %v190, %v195
  %v200 = vmul.f32 %v196, 0.044715
  %v201 = vmul.f32 %v197, 0.044715
  %v202 = vmul.f32 %v198, 0.044715
  %v203 = vmul.f32 %v199, 0.044715
  %v204 = vadd.f32 %v174, %v200
  %v205 = vadd.f32 %v188, %v201
  %v206 = vadd.f32 %v176, %v202
  %v207 = vadd.f32 %v190, %v203
  %v208 = vmul.f32 %v204, 0.7978846
  %v209 = vmul.f32 %v205, 0.7978846
  %v210 = vmul.f32 %v206, 0.7978846
  %v211 = vmul.f32 %v207, 0.7978846
  %v212 = vtanh.pop %v208
  %v213 = vtanh.pop %v209
  %v214 = vtanh.pop %v210
  %v215 = vtanh.pop %v211
  %v216 = vadd.f32 %v212, 1.0
  %v217 = vadd.f32 %v213, 1.0
  %v218 = vadd.f32 %v214, 1.0
  %v219 = vadd.f32 %v215, 1.0
  %v220 = vmul.f32 %v216, 0.5
  %v221 = vmul.f32 %v217, 0.5
  %v222 = vmul.f32 %v218, 0.5
  %v223 = vmul.f32 %v219, 0.5
  %v224 = vmul.f32 %v174, %v220
  %v225 = vmul.f32 %v188, %v221
  %v226 = vmul.f32 %v176, %v222
  %v227 = vmul.f32 %v190, %v223
  %v228 = vpack.c.bf16 %v225, %v224
  %v229 = vpack.c.bf16 %v227, %v226
  %230 = vst [vmem:[%s5] sm:$0xff] %v228
  %231 = vst [vmem:[%s5 + $0x8] sm:$0xff] %v229
  // Predicated region
  $region26: #{tri_model_forward.52} parent=0 // pred_check
    _
  $region27: #{tri_model_forward.52} parent=0 // pred_check_branch
    %233 = sbr.rel (0) target = $region29
  $region28: #{tri_model_forward.52} parent=0 // pred_region
    _
  $region29: #{tri_model_forward.52} parent=0 // pred_fallthru
    _
  // Predicated region
  $region30: #{tri_model_forward.52} parent=0 // pred_check
    _
  $region31: #{tri_model_forward.52} parent=0 // pred_check_branch
    %235 = sbr.rel (0) target = $region33
  $region32: #{tri_model_forward.52} parent=0 // pred_region
    _
  $region33: #{tri_model_forward.52} parent=0 // pred_fallthru
    _

// kernel: tri_model_forward.53
$region0: #{tri_model_forward.53}
  #allocation0 [shape = 'u32[]', space=smem, size = 0x4, offset = 0x4, fixed_abs, tag = 'smem constant byte address 0x4 - core index']
  #allocation1 [shape = 'u32[72,128]{1,0:T(1,128)}', space=vmem, size = 0x9000, scoped, tag = 'internal scratch']
  #allocation2 [shape = 'f32[16,64]{1,0:T(8,128)}', space=vmem, size = 0x2000, scoped, tag = 'scratch operand']
  %s0 = inlined_call_operand.vmem [shape: bf16[16,256], index: 0, kind: input, shape index: {}]
  %s1 = inlined_call_operand.vmem [shape: bf16[256,64], index: 1, kind: input, shape index: {}]
  %s2 = inlined_call_operand.vmem [shape: bf16[1,64], index: 2, kind: input, shape index: {}]
  %s3 = inlined_call_operand.vmem [shape: bf16[16,64], index: 3, kind: input, shape index: {}]
  %s4 = inlined_call_operand.vmem [shape: bf16[16,64], index: 4, kind: output, shape index: {}]
  %s5 = sld [smem:[#allocation0]]
  $region34: #{tri_model_forward.53} parent=0
    _
  %s7 = ssub.s32 1, %s5
  %s8 = scalar_select 0, %s7, %s5
  // Predicated region
  $region2: #{tri_model_forward.53} parent=0 // pred_check
    _
  $region3: #{tri_model_forward.53} parent=0 // pred_check_branch
    %10 = sbr.rel (0) target = $region5
  $region4: #{tri_model_forward.53} parent=0 // pred_region
    _
  $region5: #{tri_model_forward.53} parent=0 // pred_fallthru
    _
  // Predicated region
  $region6: #{tri_model_forward.53} parent=0 // pred_check
    _
  $region7: #{tri_model_forward.53} parent=0 // pred_check_branch
    %12 = sbr.rel (0) target = $region9
  $region8: #{tri_model_forward.53} parent=0 // pred_region
    _
  $region9: #{tri_model_forward.53} parent=0 // pred_fallthru
    _
  // Predicated region
  $region10: #{tri_model_forward.53} parent=0 // pred_check
    _
  $region11: #{tri_model_forward.53} parent=0 // pred_check_branch
    %14 = sbr.rel (0) target = $region13
  $region12: #{tri_model_forward.53} parent=0 // pred_region
    _
  $region13: #{tri_model_forward.53} parent=0 // pred_fallthru
    _
  // Predicated region
  $region14: #{tri_model_forward.53} parent=0 // pred_check
    _
  $region15: #{tri_model_forward.53} parent=0 // pred_check_branch
    %16 = sbr.rel (0) target = $region17
  $region16: #{tri_model_forward.53} parent=0 // pred_region
    _
  $region17: #{tri_model_forward.53} parent=0 // pred_fallthru
    _
  %p17 = scmp.eq.s32.totalorder 0, 0
  // Predicated region
  $region18: #{tri_model_forward.53} parent=0 // pred_check
    %p18 = pneg %p17
  $region19: #{tri_model_forward.53} parent=0 // pred_check_branch
    %20 = sbr.rel (%p18) target = $region21
  $region20: #{tri_model_forward.53} parent=0 // pred_region
    %vm21 = vcmask 523264
    %22 = vst.msk [vmem:[#allocation2] sm:$0xff] %vm21, 0.0
    %23 = vst.msk [vmem:[#allocation2 + $0x8] sm:$0xff] %vm21, 0.0
  $region21: #{tri_model_forward.53} parent=0 // pred_fallthru
    _
  %v24 = vld [vmem:[#allocation2] sm:$0xff]
  %v25 = vld [vmem:[#allocation2 + $0x8] sm:$0xff]
  %v26 = vld [vmem:[%s0] sm:$0xff]
  %v27 = vld [vmem:[%s0 + $0x8] sm:$0xff]
  %v28 = vld [vmem:[%s1] sm:$0xf]
  %v29 = vld [vmem:[%s1 + $0x4] sm:$0xf]
  %v30 = vld [vmem:[%s1 + $0x8] sm:$0xf]
  %v31 = vld [vmem:[%s1 + $0xc] sm:$0xf]
  %v32 = vld [vmem:[%s1 + $0x10] sm:$0xf]
  %v33 = vld [vmem:[%s1 + $0x14] sm:$0xf]
  %v34 = vld [vmem:[%s1 + $0x18] sm:$0xf]
  %v35 = vld [vmem:[%s1 + $0x1c] sm:$0xf]
  %v36 = vld [vmem:[%s1 + $0x20] sm:$0xf]
  %v37 = vld [vmem:[%s1 + $0x24] sm:$0xf]
  %v38 = vld [vmem:[%s1 + $0x28] sm:$0xf]
  %v39 = vld [vmem:[%s1 + $0x2c] sm:$0xf]
  %v40 = vld [vmem:[%s1 + $0x30] sm:$0xf]
  %v41 = vld [vmem:[%s1 + $0x34] sm:$0xf]
  %v42 = vld [vmem:[%s1 + $0x38] sm:$0xf]
  %v43 = vld [vmem:[%s1 + $0x3c] sm:$0xf]
  %v44 = vld [vmem:[%s1 + $0x40] sm:$0xf]
  %v45 = vld [vmem:[%s1 + $0x44] sm:$0xf]
  %v46 = vld [vmem:[%s1 + $0x48] sm:$0xf]
  %v47 = vld [vmem:[%s1 + $0x4c] sm:$0xf]
  %v48 = vld [vmem:[%s1 + $0x50] sm:$0xf]
  %v49 = vld [vmem:[%s1 + $0x54] sm:$0xf]
  %v50 = vld [vmem:[%s1 + $0x58] sm:$0xf]
  %v51 = vld [vmem:[%s1 + $0x5c] sm:$0xf]
  %v52 = vld [vmem:[%s1 + $0x60] sm:$0xf]
  %v53 = vld [vmem:[%s1 + $0x64] sm:$0xf]
  %v54 = vld [vmem:[%s1 + $0x68] sm:$0xf]
  %v55 = vld [vmem:[%s1 + $0x6c] sm:$0xf]
  %v56 = vld [vmem:[%s1 + $0x70] sm:$0xf]
  %v57 = vld [vmem:[%s1 + $0x74] sm:$0xf]
  %v58 = vld [vmem:[%s1 + $0x78] sm:$0xf]
  %v59 = vld [vmem:[%s1 + $0x7c] sm:$0xf]
  %v62 = vunpack.c.l.b16 %v26
  %v63 = vunpack.c.h.b16 %v26
  %v64 = vunpack.c.l.b16 %v27
  %v65 = vunpack.c.h.b16 %v27
  %v66 = vpack.c.b16 %v64, %v62
  %v67 = vpack.c.b16 %v65, %v63
  %v102 = vunpack.c.l.b16 %v28
  %v103 = vunpack.c.l.b16 %v29
  %v104 = vunpack.c.l.b16 %v30
  %v105 = vunpack.c.l.b16 %v31
  %v106 = vunpack.c.l.b16 %v32
  %v107 = vunpack.c.l.b16 %v33
  %v108 = vunpack.c.l.b16 %v34
  %v109 = vunpack.c.l.b16 %v35
  %v110 = vunpack.c.l.b16 %v36
  %v111 = vunpack.c.l.b16 %v37
  %v112 = vunpack.c.l.b16 %v38
  %v113 = vunpack.c.l.b16 %v39
  %v114 = vunpack.c.l.b16 %v40
  %v115 = vunpack.c.l.b16 %v41
  %v116 = vunpack.c.l.b16 %v42
  %v117 = vunpack.c.l.b16 %v43
  %v118 = vunpack.c.l.b16 %v44
  %v119 = vunpack.c.l.b16 %v45
  %v120 = vunpack.c.l.b16 %v46
  %v121 = vunpack.c.l.b16 %v47
  %v122 = vunpack.c.l.b16 %v48
  %v123 = vunpack.c.l.b16 %v49
  %v124 = vunpack.c.l.b16 %v50
  %v125 = vunpack.c.l.b16 %v51
  %v126 = vunpack.c.l.b16 %v52
  %v127 = vunpack.c.l.b16 %v53
  %v128 = vunpack.c.l.b16 %v54
  %v129 = vunpack.c.l.b16 %v55
  %v130 = vunpack.c.l.b16 %v56
  %v131 = vunpack.c.l.b16 %v57
  %v132 = vunpack.c.l.b16 %v58
  %v133 = vunpack.c.l.b16 %v59
  %v134 = vpack.c.b16 %v103, %v102
  %v135 = vpack.c.b16 %v105, %v104
  %v136 = vpack.c.b16 %v107, %v106
  %v137 = vpack.c.b16 %v109, %v108
  %v138 = vpack.c.b16 %v111, %v110
  %v139 = vpack.c.b16 %v113, %v112
  %v140 = vpack.c.b16 %v115, %v114
  %v141 = vpack.c.b16 %v117, %v116
  %v142 = vpack.c.b16 %v119, %v118
  %v143 = vpack.c.b16 %v121, %v120
  %v144 = vpack.c.b16 %v123, %v122
  %v145 = vpack.c.b16 %v125, %v124
  %v146 = vpack.c.b16 %v127, %v126
  %v147 = vpack.c.b16 %v129, %v128
  %v148 = vpack.c.b16 %v131, %v130
  %v149 = vpack.c.b16 %v133, %v132
  %166 = vmatpush.bf16.msra.mxu0 %v141
  %167 = vmatpush.bf16.msra.mxu0 %v140
  %168 = vmatpush.bf16.msra.mxu0 %v139
  %169 = vmatpush.bf16.msra.mxu0 %v138
  %170 = vmatpush.bf16.msra.mxu0 %v137
  %171 = vmatpush.bf16.msra.mxu0 %v136
  %172 = vmatpush.bf16.msra.mxu0 %v135
  %173 = vmatpush.bf16.msra.mxu0 %v134
  %174 = vmatmul.bf16.gmra.mxu0 %v66
  %v175 = vpop.f32.mrf.mxu0
  %v176 = vadd.f32 0.0, %v175
  %v177 = vpop.f32.mrf.mxu0
  %v178 = vadd.f32 0.0, %v177
  %179 = vdwg.mxu0
  %180 = vmatpush.bf16.msra.mxu0 %v149
  %181 = vmatpush.bf16.msra.mxu0 %v148
  %182 = vmatpush.bf16.msra.mxu0 %v147
  %183 = vmatpush.bf16.msra.mxu0 %v146
  %184 = vmatpush.bf16.msra.mxu0 %v145
  %185 = vmatpush.bf16.msra.mxu0 %v144
  %186 = vmatpush.bf16.msra.mxu0 %v143
  %187 = vmatpush.bf16.msra.mxu0 %v142
  %188 = vmatmul.bf16.gmra.mxu0 %v67
  %v189 = vpop.f32.mrf.mxu0
  %v190 = vadd.f32 %v176, %v189
  %v191 = vpop.f32.mrf.mxu0
  %v192 = vadd.f32 %v178, %v191
  %193 = vdwg.mxu0
  %v194 = vadd.f32 %v24, %v190
  %v195 = vadd.f32 %v25, %v192
  %vm196 = vcmask 523264
  %197 = vst.msk [vmem:[#allocation2] sm:$0xff] %vm196, %v194
  %198 = vst.msk [vmem:[#allocation2 + $0x8] sm:$0xff] %vm196, %v195
  // Predicated region
  $region22: #{tri_model_forward.53} parent=0 // pred_check
    %p199 = pneg %p17
  $region23: #{tri_model_forward.53} parent=0 // pred_check_branch
    %201 = sbr.rel (%p199) target = $region25
  $region24: #{tri_model_forward.53} parent=0 // pred_region
    %v202 = vld [vmem:[#allocation2] sm:$0xff]
    %v203 = vld [vmem:[#allocation2 + $0x8] sm:$0xff]
    %v204 = vld [vmem:[%s2] sm:$0x1]
    %v205 = vunpack.c.l.bf16 %v204
    %v206 = vperm.slane %v205, 0
    %v207 = vadd.f32 %v202, %v206
    %v208 = vadd.f32 %v203, %v206
    %v209 = vld [vmem:[%s3] sm:$0xf]
    %v210 = vld [vmem:[%s3 + $0x4] sm:$0xf]
    %v211 = vunpack.c.l.bf16 %v209
    %v212 = vunpack.c.l.bf16 %v210
    %v213 = vadd.f32 %v207, %v211
    %v214 = vadd.f32 %v208, %v212
    %v215 = vpack.c.bf16 %v213, %v213
    %v216 = vpack.c.bf16 %v214, %v214
    %vm217 = vcmask 519168
    %218 = vst.msk [vmem:[%s4] sm:$0xf] %vm217, %v215
    %219 = vst.msk [vmem:[%s4 + $0x4] sm:$0xf] %vm217, %v216
  $region25: #{tri_model_forward.53} parent=0 // pred_fallthru
    _
  // Predicated region
  $region26: #{tri_model_forward.53} parent=0 // pred_check
    _
  $region27: #{tri_model_forward.53} parent=0 // pred_check_branch
    %221 = sbr.rel (0) target = $region29
  $region28: #{tri_model_forward.53} parent=0 // pred_region
    _
  $region29: #{tri_model_forward.53} parent=0 // pred_fallthru
    _
  // Predicated region
  $region30: #{tri_model_forward.53} parent=0 // pred_check
    _
  $region31: #{tri_model_forward.53} parent=0 // pred_check_branch
    %223 = sbr.rel (0) target = $region33
  $region32: #{tri_model_forward.53} parent=0 // pred_region
    _
  $region33: #{tri_model_forward.53} parent=0 // pred_fallthru
    _

// kernel: tri_model_forward.59
$region0: #{tri_model_forward.59}
  #allocation0 [shape = 'u32[]', space=smem, size = 0x4, offset = 0x4, fixed_abs, tag = 'smem constant byte address 0x4 - core index']
  #allocation1 [shape = 'u32[72,128]{1,0:T(1,128)}', space=vmem, size = 0x9000, scoped, tag = 'internal scratch']
  %s0 = inlined_call_operand.vmem [shape: bf16[2,8,64], index: 0, kind: input, shape index: {}]
  %s1 = inlined_call_operand.vmem [shape: bf16[1,64], index: 1, kind: input, shape index: {}]
  %s2 = inlined_call_operand.vmem [shape: bf16[1,64], index: 2, kind: input, shape index: {}]
  %s3 = inlined_call_operand.vmem [shape: bf16[64,128], index: 3, kind: input, shape index: {}]
  %s4 = inlined_call_operand.vmem [shape: bf16[1,128], index: 4, kind: input, shape index: {}]
  %s5 = inlined_call_operand.hbm [shape: f32[2,128], index: 5, kind: output, shape index: {}]
  %s6 = sld [smem:[#allocation0]]
  $region30: #{tri_model_forward.59} parent=0
    _
  %s8 = ssub.s32 1, %s6
  %s9 = scalar_select 0, %s8, %s6
  $region1: #{tri_model_forward.59} parent=0
    #allocation2 [shape = 'u8[1024]{0}', space=vmem, size = 0x400, scoped, tag = 'output window, operand 0, single buffered']
    #allocation3 [shape = 's32[1]{0}', space=sflag, size = 0x4, scoped, tag = 'scoped memory for tri_model_forward.59']
    %10 = vsyncpa [#allocation3], 0
    // Predicated region
    $region2: #{tri_model_forward.59} parent=1 // pred_check
      _
    $region3: #{tri_model_forward.59} parent=1 // pred_check_branch
      %12 = sbr.rel (0) target = $region5
    $region4: #{tri_model_forward.59} parent=1 // pred_region
      _
    $region5: #{tri_model_forward.59} parent=1 // pred_fallthru
      _
    // Predicated region
    $region6: #{tri_model_forward.59} parent=1 // pred_check
      _
    $region7: #{tri_model_forward.59} parent=1 // pred_check_branch
      %14 = sbr.rel (0) target = $region9
    $region8: #{tri_model_forward.59} parent=1 // pred_region
      _
    $region9: #{tri_model_forward.59} parent=1 // pred_fallthru
      _
    // Predicated region
    $region10: #{tri_model_forward.59} parent=1 // pred_check
      _
    $region11: #{tri_model_forward.59} parent=1 // pred_check_branch
      %16 = sbr.rel (0) target = $region13
    $region12: #{tri_model_forward.59} parent=1 // pred_region
      _
    $region13: #{tri_model_forward.59} parent=1 // pred_fallthru
      _
    // Predicated region
    $region14: #{tri_model_forward.59} parent=1 // pred_check
      _
    $region15: #{tri_model_forward.59} parent=1 // pred_check_branch
      %18 = sbr.rel (0) target = $region17
    $region16: #{tri_model_forward.59} parent=1 // pred_region
      _
    $region17: #{tri_model_forward.59} parent=1 // pred_fallthru
      _
    // Predicated region
    $region18: #{tri_model_forward.59} parent=1 // pred_check
      _
    $region19: #{tri_model_forward.59} parent=1 // pred_check_branch
      %20 = sbr.rel (0) target = $region21
    $region20: #{tri_model_forward.59} parent=1 // pred_region
      _
    $region21: #{tri_model_forward.59} parent=1 // pred_fallthru
      _
    %v22 = vld [vmem:[%s0] sm:$0xf]
    %v23 = vld [vmem:[%s0 + $0x4] sm:$0xf]
    %v24 = vunpack.c.l.bf16 %v22
    %v25 = vunpack.c.l.bf16 %v23
    %vm26 = vcmask 523264
    %v27 = vsel %vm26, %v24, 0.0
    %v28 = vrot.slane %v27, 4
    %v29 = vadd.f32 %v27, %v28
    %v30 = vrot.slane %v29, 2
    %v31 = vadd.f32 %v29, %v30
    %v32 = vrot.slane %v31, 1
    %v33 = vadd.f32 %v31, %v32
    %v34 = vsel %vm26, %v25, 0.0
    %v35 = vrot.slane %v34, 4
    %v36 = vadd.f32 %v34, %v35
    %v37 = vrot.slane %v36, 2
    %v38 = vadd.f32 %v36, %v37
    %v39 = vrot.slane %v38, 1
    %v40 = vadd.f32 %v38, %v39
    %v41 = vrcp.pop 8.0
    %v42 = vmul.f32 8.0, %v41
    %v43 = vsub.f32 1.0, %v42
    %v44 = vmul.f32 %v41, %v43
    %v45 = vadd.f32 %v41, %v44
    %vm46 = vweird.f32 %v41
    %v47 = vsel %vm46, %v41, %v45
    %v48 = vmul.f32 %v33, %v47
    %v49 = vmul.f32 %v40, %v47
    %vm52 = vcmask 1041409
    %v53 = vsel %vm52, %v49, %v48
    %vm55 = vcmask 517120
    %v56 = vsel %vm55, %v53, 0.0
    %57 = vadd.xlane.f32.xlu0 %v56
    %v58 = vpop.xlane.xlu0 %57
    %v59 = vrcp.pop 64.0
    %v60 = vmul.f32 64.0, %v59
    %v61 = vsub.f32 1.0, %v60
    %v62 = vmul.f32 %v59, %v61
    %v63 = vadd.f32 %v59, %v62
    %vm64 = vweird.f32 %v59
    %v65 = vsel %vm64, %v59, %v63
    %v66 = vmul.f32 %v58, %v65
    %v68 = vrot.slane %v66, 1
    %v71 = vsub.f32 %v48, %v66
    %v72 = vsub.f32 %v49, %v68
    %v73 = vmul.f32 %v71, %v71
    %v74 = vmul.f32 %v72, %v72
    %v77 = vrot.slane %v74, 7
    %v78 = vsel %vm52, %v77, %v73
    %v80 = vsel %vm55, %v78, 0.0
    %81 = vadd.xlane.f32.xlu0 %v80
    %v82 = vpop.xlane.xlu0 %81
    %v83 = vmul.f32 %v82, %v65
    %v84 = vadd.f32 %v83, 1e-12
    %v85 = vrsqrt.pop %v84
    %v86 = vmul.f32 %v85, %v84
    %v87 = vmul.f32 %v86, %v85
    %v88 = vmul.f32 0.5, %v87
    %v89 = vsub.f32 1.5, %v88
    %v90 = vmul.f32 %v85, %v89
    %vm91 = vweird.f32 %v84
    %vm92 = vweird.f32 %v85
    %vm93 = vmor %vm91, %vm92
    %v94 = vsel %vm93, %v85, %v90
    %v96 = vrot.slane %v94, 1
    %v99 = vmul.f32 %v71, %v94
    %v100 = vmul.f32 %v72, %v96
    %v101 = vld [vmem:[%s1] sm:$0x1]
    %v102 = vunpack.c.l.bf16 %v101
    %v103 = vperm.slane %v102, 0
    %v104 = vmul.f32 %v99, %v103
    %v105 = vmul.f32 %v100, %v103
    %v106 = vld [vmem:[%s2] sm:$0x1]
    %v107 = vunpack.c.l.bf16 %v106
    %v108 = vperm.slane %v107, 0
    %v109 = vadd.f32 %v104, %v108
    %v110 = vadd.f32 %v105, %v108
    %v111 = vpack.c.bf16 %v109, %v109
    %v112 = vpack.c.bf16 %v110, %v110
    %v113 = vld [vmem:[%s3] sm:$0xf]
    %v114 = vld [vmem:[%s3 + $0x4] sm:$0xf]
    %v115 = vld [vmem:[%s3 + $0x8] sm:$0xf]
    %v116 = vld [vmem:[%s3 + $0xc] sm:$0xf]
    %v117 = vld [vmem:[%s3 + $0x10] sm:$0xf]
    %v118 = vld [vmem:[%s3 + $0x14] sm:$0xf]
    %v119 = vld [vmem:[%s3 + $0x18] sm:$0xf]
    %v120 = vld [vmem:[%s3 + $0x1c] sm:$0xf]
    %v121 = vld [vmem:[%s4] sm:$0x1]
    %v122 = vunpack.c.l.bf16 %v121
    %v123 = vperm.slane %v122, 0
    %v126 = vunpack.c.l.b16 %v111
    %v127 = vunpack.c.l.b16 %v112
    %v128 = vrot.slane %v127, 7
    %v129 = vsel %vm52, %v128, %v126
    %v130 = vpack.c.b16 %v129, %v129
    %v139 = vunpack.c.l.b16 %v113
    %v140 = vunpack.c.l.b16 %v114
    %v141 = vunpack.c.l.b16 %v115
    %v142 = vunpack.c.l.b16 %v116
    %v143 = vunpack.c.l.b16 %v117
    %v144 = vunpack.c.l.b16 %v118
    %v145 = vunpack.c.l.b16 %v119
    %v146 = vunpack.c.l.b16 %v120
    %v147 = vpack.c.b16 %v140, %v139
    %v148 = vpack.c.b16 %v142, %v141
    %v149 = vpack.c.b16 %v144, %v143
    %v150 = vpack.c.b16 %v146, %v145
    %v156 = vsel %vm26, %v130, 0
    %158 = vmatpush.bf16.msra.mxu0 0
    %159 = vmatpush.bf16.msra.mxu0 0
    %160 = vmatpush.bf16.msra.mxu0 0
    %161 = vmatpush.bf16.msra.mxu0 0
    %162 = vmatpush.bf16.msra.mxu0 %v150
    %163 = vmatpush.bf16.msra.mxu0 %v149
    %164 = vmatpush.bf16.msra.mxu0 %v148
    %165 = vmatpush.bf16.msra.mxu0 %v147
    %166 = vmatmul.bf16.gmra.mxu0 %v156
    %v167 = vpop.f32.mrf.mxu0
    %v168 = vadd.f32 %v123, %v167
    %v169 = vpop.f32.mrf.mxu0
    %170 = vdwg.mxu0
    %171 = vst [vmem:[#allocation2] sm:$0x3] %v168
    // Predicated region
    $region22: #{tri_model_forward.59} parent=1 // pred_check
      _
    $region23: #{tri_model_forward.59} parent=1 // pred_check_branch
      %173 = sbr.rel (0) target = $region25
    $region24: #{tri_model_forward.59} parent=1 // pred_region
      %175 = vsyncadd [#allocation3], 0
      %s177 = sshll.u32 [#allocation2], 4
      %s178 = int_to_ptr.vmem [resolvable:$true] %s177
      %s179 = sshll.u32 %s5, 4
      %s180 = int_to_ptr.hbm [resolvable:$true] %s179
      %182 = dma.vmem_to_hbm [thread:$0]  %s178, 32, %s180, [#allocation3]
    $region25: #{tri_model_forward.59} parent=1 // pred_fallthru
      _
    // Predicated region
    $region26: #{tri_model_forward.59} parent=1 // pred_check
      _
    $region27: #{tri_model_forward.59} parent=1 // pred_check_branch
      %184 = sbr.rel (0) target = $region29
    $region28: #{tri_model_forward.59} parent=1 // pred_region
      %186 = dma.done [#allocation3], 32
    $region29: #{tri_model_forward.59} parent=1 // pred_fallthru
      _
    %187 = vsyncpa [#allocation3], 1

</llo_original>
